<compile_context>
chip_gen: v7x
topology: tpu7x:2x2x1
jax: 0.10.0
libtpu: 0.0.40
codegen_flags: <defaults>
</compile_context>

<pallas_src>
import jax
import jax.numpy as jnp
from jax.experimental import pallas as pl
from jax.experimental.pallas import tpu as pltpu

# defines.DATA_X_DIMENSIONALITY (input feature dimensionality of the flow data)
DATA_X_DIMENSIONALITY = 72

# Original 10 Linear layers of the module (encoder then decoder).
_RAW_LAYER_DIMS = [
    (DATA_X_DIMENSIONALITY, 128), (128, 96), (96, 64), (64, 32), (32, 16),
    (16, 32), (32, 64), (64, 96), (96, 128), (128, DATA_X_DIMENSIONALITY),
]
# ReLU after every layer except the encoder bottleneck Linear(32,16).
_RAW_RELU_FLAGS = [True, True, True, True, False, True, True, True, True, True]

# After fusing the bottleneck pair, the kernel runs 9 matmul+bias+ReLU stages
# (every fused layer is followed by a ReLU).
_N_LAYERS = 9
_PAD = 128        # uniform lane-dense feature width for every layer
_MAX_TILE = 2048  # batch tile upper bound (VMEM stays far below limits)
_MIN_TILE = 256


def _ae_kernel(x_ref, w_ref, b_ref, o_ref):
    """x_ref: (TILE,128) bf16, w_ref: (9,128,128) bf16, b_ref: (9,1,128) f32,
    o_ref: (TILE,128) bf16."""
    half = x_ref.shape[0] // 2
    # Two independent row halves, statically interleaved through the serial
    # layer chain so one half's MXU work hides the other's VPU epilogue.
    h0 = x_ref[:half, :]
    h1 = x_ref[half:, :]
    for l in range(_N_LAYERS):
        w = w_ref[l]
        b = b_ref[l]
        a0 = jnp.dot(h0, w, preferred_element_type=jnp.float32) + b
        a1 = jnp.dot(h1, w, preferred_element_type=jnp.float32) + b
        h0 = jnp.maximum(a0, 0.0).astype(jnp.bfloat16)
        h1 = jnp.maximum(a1, 0.0).astype(jnp.bfloat16)
    o_ref[:half, :] = h0
    o_ref[half:, :] = h1


def _choose_tile(batch):
    """Pick a batch tile: big enough to amortize per-grid-step overhead and
    fill the MXU, but small enough that there are >= 2 grid steps when there
    is enough work (so v7x's two TensorCores both get batch blocks)."""
    per_core = -(-batch // 2)                       # cdiv(B, 2)
    tile = -(-per_core // _MIN_TILE) * _MIN_TILE    # round up to 256
    return max(_MIN_TILE, min(_MAX_TILE, tile))


@jax.jit
def autoencoder_forward(x, w_stack, b_stack):
    """x: (B, D) float32.  w_stack: (9,128,128) bf16 (in,out layout, zero
    padded).  b_stack: (9,1,128) float32 (zero padded).  Returns (B, D) f32."""
    B, D = x.shape
    assert D == DATA_X_DIMENSIONALITY

    tile = _choose_tile(B)
    grid = (pl.cdiv(B, tile),)

    # Feature-lane zero pad (D -> 128) + bf16 cast only; no batch padding is
    # materialized.  Zero lanes (and zero weight rows) keep padded lanes
    # finite; the ragged final batch block is handled by Pallas and its junk
    # tail rows are independent and sliced off below.
    x_pad = jnp.pad(x.astype(jnp.bfloat16), ((0, 0), (0, _PAD - D)))

    x_spec = pl.BlockSpec((tile, _PAD), lambda i: (i, 0))
    # Constant block index across the grid -> Pallas keeps weights/biases
    # resident in VMEM and does not re-issue their DMA every batch step.
    w_spec = pl.BlockSpec((_N_LAYERS, _PAD, _PAD), lambda i: (0, 0, 0))
    b_spec = pl.BlockSpec((_N_LAYERS, 1, _PAD), lambda i: (0, 0, 0))
    out_spec = pl.BlockSpec((tile, _PAD), lambda i: (i, 0))

    out = pl.pallas_call(
        _ae_kernel,
        out_shape=jax.ShapeDtypeStruct((B, _PAD), jnp.bfloat16),
        grid_spec=pltpu.PrefetchScalarGridSpec(
            num_scalar_prefetch=0,
            grid=grid,
            in_specs=[x_spec, w_spec, b_spec],
            out_specs=out_spec,
        ),
        compiler_params=pltpu.CompilerParams(
            dimension_semantics=("parallel",),
        ),
    )(x_pad, w_stack, b_stack)

    return out[:, :D].astype(jnp.float32)


# ---------------------------------------------------------------------------
# Deterministic parameter construction (synthetic, PyTorch-style shapes).
# ---------------------------------------------------------------------------
def _init_params(key):
    """Raw per-layer params mirroring the nn.Module:
       linears: list of (W (out,in), b (out,))
       bns_before_next[i]: BN affine folded into linear i (or None)."""
    n_raw = len(_RAW_LAYER_DIMS)
    linears = []
    bns_before_next = [None] * n_raw

    keys = jax.random.split(key, 4 * n_raw + 8)
    k_idx = 0
    for (din, dout) in _RAW_LAYER_DIMS:
        bound = 1.0 / jnp.sqrt(jnp.float32(din))
        W = jax.random.uniform(keys[k_idx], (dout, din), jnp.float32, -bound, bound); k_idx += 1
        b = jax.random.uniform(keys[k_idx], (dout,), jnp.float32, -bound, bound); k_idx += 1
        linears.append((W, b))

    # BatchNorm1d sits after the ReLU of layers 0..3 (encoder) and 5..8
    # (decoder); it is folded into the following linear (1..4 and 6..9).
    bn_fold_targets = [1, 2, 3, 4, 6, 7, 8, 9]
    for tgt in bn_fold_targets:
        feat = _RAW_LAYER_DIMS[tgt][0]
        gamma = 1.0 + 0.05 * jax.random.normal(keys[k_idx], (feat,), jnp.float32); k_idx += 1
        beta = 0.05 * jax.random.normal(keys[k_idx], (feat,), jnp.float32); k_idx += 1
        # Fresh-module running stats (mean=0, var=1); eps = 1e-5 as in PyTorch.
        rmean = jnp.zeros((feat,), jnp.float32)
        rvar = jnp.ones((feat,), jnp.float32)
        bns_before_next[tgt] = (gamma, beta, rmean, rvar)

    return linears, bns_before_next


def _fold_bn(linears, bns_before_next, eps=1e-5):
    """Fold each BN affine into the following Linear; return 10 layers of
    (in,out) f32 weights and (out,) f32 biases."""
    weights, biases = [], []
    for idx, (W, b) in enumerate(linears):
        bn = bns_before_next[idx]
        if bn is not None:
            gamma, beta, rmean, rvar = bn
            scale = gamma / jnp.sqrt(rvar + eps)          # (in,)
            shift = beta - rmean * scale                  # (in,)
            W_eff = W * scale[None, :]                    # (out, in) scaled per-input
            b_eff = b + W @ shift                         # (out,)
        else:
            W_eff, b_eff = W, b
        weights.append(jnp.asarray(W_eff.T, jnp.float32))  # (in, out)
        biases.append(jnp.asarray(b_eff, jnp.float32))      # (out,)
    return weights, biases


def _fuse_bottleneck(weights10, biases10):
    """Fuse layers 4 (32->16, no ReLU) and 5 (16->32) into one 32->32 linear,
    computed in f32 (exact in eval: Dropout identity, nothing in between)."""
    w4, w5 = weights10[4], weights10[5]     # (32,16), (16,32)
    b4, b5 = biases10[4], biases10[5]       # (16,), (32,)
    w45 = w4 @ w5                           # (32,32)
    b45 = b4 @ w5 + b5                      # (32,)
    weights9 = weights10[:4] + [w45] + weights10[6:]
    biases9 = biases10[:4] + [b45] + biases10[6:]
    return weights9, biases9


def _pad_and_stack(weights, biases):
    """Zero-pad every layer to (128,128) / (1,128) and stack.  Padded output
    lanes have zero weight columns AND zero bias, so padded lanes stay exactly
    zero through the whole network."""
    w_stack = jnp.zeros((_N_LAYERS, _PAD, _PAD), jnp.float32)
    b_stack = jnp.zeros((_N_LAYERS, 1, _PAD), jnp.float32)
    for i, (w, b) in enumerate(zip(weights, biases)):
        din, dout = w.shape
        w_stack = w_stack.at[i, :din, :dout].set(w)
        b_stack = b_stack.at[i, 0, :dout].set(b)
    return w_stack.astype(jnp.bfloat16), b_stack


def _reference_forward_bf16(x, weights9, biases9):
    """Same math as the kernel (bf16 operands, f32 accumulation, bf16 store)."""
    h = x.astype(jnp.bfloat16)
    for w, b in zip(weights9, biases9):
        h = jnp.dot(h, w.astype(jnp.bfloat16),
                    preferred_element_type=jnp.float32) + b[None, :]
        h = jnp.maximum(h, 0.0).astype(jnp.bfloat16)
    return h.astype(jnp.float32)


def _reference_forward_f32(x, weights10, biases10):
    """Pure-f32 unfolded 10-layer eval forward (checks the bottleneck fusion)."""
    h = x
    for (w, b), relu in zip(zip(weights10, biases10), _RAW_RELU_FLAGS):
        h = h @ w + b[None, :]
        if relu:
            h = jnp.maximum(h, 0.0)
    return h


if __name__ == "__main__":
    key = jax.random.PRNGKey(0)
    k_params, k_x = jax.random.split(key)

    linears, bns = _init_params(k_params)
    weights10, biases10 = _fold_bn(linears, bns)                # 10 layers, f32
    weights9, biases9 = _fuse_bottleneck(weights10, biases10)   # 9 layers, f32
    w_stack, b_stack = _pad_and_stack(weights9, biases9)

    B = 6  # small, intentionally not a multiple of the batch tile
    x = jax.random.normal(k_x, (B, DATA_X_DIMENSIONALITY), jnp.float32)

    y = jax.block_until_ready(autoencoder_forward(x, w_stack, b_stack))

    y_bf16_ref = _reference_forward_bf16(x, weights9, biases9)
    y_f32_ref = _reference_forward_f32(x, weights10, biases10)

    assert y.shape == (B, DATA_X_DIMENSIONALITY)
    assert jnp.allclose(y, y_bf16_ref, atol=1e-2, rtol=1e-2), "mismatch vs bf16 reference"
    assert jnp.allclose(y, y_f32_ref, atol=5e-2, rtol=5e-2), "mismatch vs f32 reference"

    print("KERNEL_OK")
</pallas_src>

<mosaic_0001>
module attributes {stable_mosaic.version = 11 : i64} {
  func.func @_ae_kernel(%arg0: i32, %arg1: memref<256x128xbf16, #tpu.memory_space<vmem>>, %arg2: memref<9x128x128xbf16, #tpu.memory_space<vmem>>, %arg3: memref<9x1x128xf32, #tpu.memory_space<vmem>>, %arg4: memref<256x128xbf16, #tpu.memory_space<vmem>>) attributes {dimension_semantics = [#tpu.dimension_semantics<parallel>], iteration_bounds = array<i64: 1>, scalar_prefetch = 0 : i64, scratch_operands = 0 : i64, tpu.core_type = #tpu.core_type<tc>, window_params = [{transform_indices = @transform_0, window_bounds = array<i64: 256, 128>}, {pipeline_mode = #tpu.pipeline_mode<synchronous>, transform_indices = @transform_1, window_bounds = array<i64: 9, 128, 128>}, {pipeline_mode = #tpu.pipeline_mode<synchronous>, transform_indices = @transform_2, window_bounds = array<i64: 9, 1, 128>}, {transform_indices = @transform_3, window_bounds = array<i64: 256, 128>}]} {
    %c0 = arith.constant 0 : index
    %c0_0 = arith.constant 0 : index
    %0 = vector.load %arg1[%c0, %c0_0] : memref<256x128xbf16, #tpu.memory_space<vmem>>, vector<128x128xbf16>
    %c128 = arith.constant 128 : index
    %c0_1 = arith.constant 0 : index
    %1 = vector.load %arg1[%c128, %c0_1] : memref<256x128xbf16, #tpu.memory_space<vmem>>, vector<128x128xbf16>
    %c0_2 = arith.constant 0 : index
    %c0_3 = arith.constant 0 : index
    %c0_4 = arith.constant 0 : index
    %2 = vector.load %arg2[%c0_2, %c0_3, %c0_4] : memref<9x128x128xbf16, #tpu.memory_space<vmem>>, vector<1x128x128xbf16>
    %3 = vector.shape_cast %2 : vector<1x128x128xbf16> to vector<128x128xbf16>
    %c0_5 = arith.constant 0 : index
    %c0_6 = arith.constant 0 : index
    %c0_7 = arith.constant 0 : index
    %4 = vector.load %arg3[%c0_5, %c0_6, %c0_7] : memref<9x1x128xf32, #tpu.memory_space<vmem>>, vector<1x1x128xf32>
    %5 = vector.shape_cast %4 : vector<1x1x128xf32> to vector<1x128xf32>
    %cst = arith.constant dense<0.000000e+00> : vector<128x128xf32>
    %6 = tpu.matmul %0, %3, %cst {dimension_numbers = #tpu.dot_dimension_numbers<[1], [0], [0], [1], [0, 0, 1, 1], [], []>} : vector<128x128xbf16>, vector<128x128xbf16>, vector<128x128xf32> -> vector<128x128xf32>
    %7 = vector.broadcast %5 : vector<1x128xf32> to vector<128x128xf32>
    %8 = arith.addf %6, %7 : vector<128x128xf32>
    %cst_8 = arith.constant dense<0.000000e+00> : vector<128x128xf32>
    %9 = tpu.matmul %1, %3, %cst_8 {dimension_numbers = #tpu.dot_dimension_numbers<[1], [0], [0], [1], [0, 0, 1, 1], [], []>} : vector<128x128xbf16>, vector<128x128xbf16>, vector<128x128xf32> -> vector<128x128xf32>
    %10 = vector.broadcast %5 : vector<1x128xf32> to vector<128x128xf32>
    %11 = arith.addf %9, %10 : vector<128x128xf32>
    %cst_9 = arith.constant 0.000000e+00 : f32
    %12 = vector.broadcast %cst_9 : f32 to vector<128x128xf32>
    %13 = arith.maximumf %8, %12 : vector<128x128xf32>
    %14 = arith.truncf %13 : vector<128x128xf32> to vector<128x128xbf16>
    %cst_10 = arith.constant 0.000000e+00 : f32
    %15 = vector.broadcast %cst_10 : f32 to vector<128x128xf32>
    %16 = arith.maximumf %11, %15 : vector<128x128xf32>
    %17 = arith.truncf %16 : vector<128x128xf32> to vector<128x128xbf16>
    %c1 = arith.constant 1 : index
    %c0_11 = arith.constant 0 : index
    %c0_12 = arith.constant 0 : index
    %18 = vector.load %arg2[%c1, %c0_11, %c0_12] : memref<9x128x128xbf16, #tpu.memory_space<vmem>>, vector<1x128x128xbf16>
    %19 = vector.shape_cast %18 : vector<1x128x128xbf16> to vector<128x128xbf16>
    %c1_13 = arith.constant 1 : index
    %c0_14 = arith.constant 0 : index
    %c0_15 = arith.constant 0 : index
    %20 = vector.load %arg3[%c1_13, %c0_14, %c0_15] : memref<9x1x128xf32, #tpu.memory_space<vmem>>, vector<1x1x128xf32>
    %21 = vector.shape_cast %20 : vector<1x1x128xf32> to vector<1x128xf32>
    %cst_16 = arith.constant dense<0.000000e+00> : vector<128x128xf32>
    %22 = tpu.matmul %14, %19, %cst_16 {dimension_numbers = #tpu.dot_dimension_numbers<[1], [0], [0], [1], [0, 0, 1, 1], [], []>} : vector<128x128xbf16>, vector<128x128xbf16>, vector<128x128xf32> -> vector<128x128xf32>
    %23 = vector.broadcast %21 : vector<1x128xf32> to vector<128x128xf32>
    %24 = arith.addf %22, %23 : vector<128x128xf32>
    %cst_17 = arith.constant dense<0.000000e+00> : vector<128x128xf32>
    %25 = tpu.matmul %17, %19, %cst_17 {dimension_numbers = #tpu.dot_dimension_numbers<[1], [0], [0], [1], [0, 0, 1, 1], [], []>} : vector<128x128xbf16>, vector<128x128xbf16>, vector<128x128xf32> -> vector<128x128xf32>
    %26 = vector.broadcast %21 : vector<1x128xf32> to vector<128x128xf32>
    %27 = arith.addf %25, %26 : vector<128x128xf32>
    %cst_18 = arith.constant 0.000000e+00 : f32
    %28 = vector.broadcast %cst_18 : f32 to vector<128x128xf32>
    %29 = arith.maximumf %24, %28 : vector<128x128xf32>
    %30 = arith.truncf %29 : vector<128x128xf32> to vector<128x128xbf16>
    %cst_19 = arith.constant 0.000000e+00 : f32
    %31 = vector.broadcast %cst_19 : f32 to vector<128x128xf32>
    %32 = arith.maximumf %27, %31 : vector<128x128xf32>
    %33 = arith.truncf %32 : vector<128x128xf32> to vector<128x128xbf16>
    %c2 = arith.constant 2 : index
    %c0_20 = arith.constant 0 : index
    %c0_21 = arith.constant 0 : index
    %34 = vector.load %arg2[%c2, %c0_20, %c0_21] : memref<9x128x128xbf16, #tpu.memory_space<vmem>>, vector<1x128x128xbf16>
    %35 = vector.shape_cast %34 : vector<1x128x128xbf16> to vector<128x128xbf16>
    %c2_22 = arith.constant 2 : index
    %c0_23 = arith.constant 0 : index
    %c0_24 = arith.constant 0 : index
    %36 = vector.load %arg3[%c2_22, %c0_23, %c0_24] : memref<9x1x128xf32, #tpu.memory_space<vmem>>, vector<1x1x128xf32>
    %37 = vector.shape_cast %36 : vector<1x1x128xf32> to vector<1x128xf32>
    %cst_25 = arith.constant dense<0.000000e+00> : vector<128x128xf32>
    %38 = tpu.matmul %30, %35, %cst_25 {dimension_numbers = #tpu.dot_dimension_numbers<[1], [0], [0], [1], [0, 0, 1, 1], [], []>} : vector<128x128xbf16>, vector<128x128xbf16>, vector<128x128xf32> -> vector<128x128xf32>
    %39 = vector.broadcast %37 : vector<1x128xf32> to vector<128x128xf32>
    %40 = arith.addf %38, %39 : vector<128x128xf32>
    %cst_26 = arith.constant dense<0.000000e+00> : vector<128x128xf32>
    %41 = tpu.matmul %33, %35, %cst_26 {dimension_numbers = #tpu.dot_dimension_numbers<[1], [0], [0], [1], [0, 0, 1, 1], [], []>} : vector<128x128xbf16>, vector<128x128xbf16>, vector<128x128xf32> -> vector<128x128xf32>
    %42 = vector.broadcast %37 : vector<1x128xf32> to vector<128x128xf32>
    %43 = arith.addf %41, %42 : vector<128x128xf32>
    %cst_27 = arith.constant 0.000000e+00 : f32
    %44 = vector.broadcast %cst_27 : f32 to vector<128x128xf32>
    %45 = arith.maximumf %40, %44 : vector<128x128xf32>
    %46 = arith.truncf %45 : vector<128x128xf32> to vector<128x128xbf16>
    %cst_28 = arith.constant 0.000000e+00 : f32
    %47 = vector.broadcast %cst_28 : f32 to vector<128x128xf32>
    %48 = arith.maximumf %43, %47 : vector<128x128xf32>
    %49 = arith.truncf %48 : vector<128x128xf32> to vector<128x128xbf16>
    %c3 = arith.constant 3 : index
    %c0_29 = arith.constant 0 : index
    %c0_30 = arith.constant 0 : index
    %50 = vector.load %arg2[%c3, %c0_29, %c0_30] : memref<9x128x128xbf16, #tpu.memory_space<vmem>>, vector<1x128x128xbf16>
    %51 = vector.shape_cast %50 : vector<1x128x128xbf16> to vector<128x128xbf16>
    %c3_31 = arith.constant 3 : index
    %c0_32 = arith.constant 0 : index
    %c0_33 = arith.constant 0 : index
    %52 = vector.load %arg3[%c3_31, %c0_32, %c0_33] : memref<9x1x128xf32, #tpu.memory_space<vmem>>, vector<1x1x128xf32>
    %53 = vector.shape_cast %52 : vector<1x1x128xf32> to vector<1x128xf32>
    %cst_34 = arith.constant dense<0.000000e+00> : vector<128x128xf32>
    %54 = tpu.matmul %46, %51, %cst_34 {dimension_numbers = #tpu.dot_dimension_numbers<[1], [0], [0], [1], [0, 0, 1, 1], [], []>} : vector<128x128xbf16>, vector<128x128xbf16>, vector<128x128xf32> -> vector<128x128xf32>
    %55 = vector.broadcast %53 : vector<1x128xf32> to vector<128x128xf32>
    %56 = arith.addf %54, %55 : vector<128x128xf32>
    %cst_35 = arith.constant dense<0.000000e+00> : vector<128x128xf32>
    %57 = tpu.matmul %49, %51, %cst_35 {dimension_numbers = #tpu.dot_dimension_numbers<[1], [0], [0], [1], [0, 0, 1, 1], [], []>} : vector<128x128xbf16>, vector<128x128xbf16>, vector<128x128xf32> -> vector<128x128xf32>
    %58 = vector.broadcast %53 : vector<1x128xf32> to vector<128x128xf32>
    %59 = arith.addf %57, %58 : vector<128x128xf32>
    %cst_36 = arith.constant 0.000000e+00 : f32
    %60 = vector.broadcast %cst_36 : f32 to vector<128x128xf32>
    %61 = arith.maximumf %56, %60 : vector<128x128xf32>
    %62 = arith.truncf %61 : vector<128x128xf32> to vector<128x128xbf16>
    %cst_37 = arith.constant 0.000000e+00 : f32
    %63 = vector.broadcast %cst_37 : f32 to vector<128x128xf32>
    %64 = arith.maximumf %59, %63 : vector<128x128xf32>
    %65 = arith.truncf %64 : vector<128x128xf32> to vector<128x128xbf16>
    %c4 = arith.constant 4 : index
    %c0_38 = arith.constant 0 : index
    %c0_39 = arith.constant 0 : index
    %66 = vector.load %arg2[%c4, %c0_38, %c0_39] : memref<9x128x128xbf16, #tpu.memory_space<vmem>>, vector<1x128x128xbf16>
    %67 = vector.shape_cast %66 : vector<1x128x128xbf16> to vector<128x128xbf16>
    %c4_40 = arith.constant 4 : index
    %c0_41 = arith.constant 0 : index
    %c0_42 = arith.constant 0 : index
    %68 = vector.load %arg3[%c4_40, %c0_41, %c0_42] : memref<9x1x128xf32, #tpu.memory_space<vmem>>, vector<1x1x128xf32>
    %69 = vector.shape_cast %68 : vector<1x1x128xf32> to vector<1x128xf32>
    %cst_43 = arith.constant dense<0.000000e+00> : vector<128x128xf32>
    %70 = tpu.matmul %62, %67, %cst_43 {dimension_numbers = #tpu.dot_dimension_numbers<[1], [0], [0], [1], [0, 0, 1, 1], [], []>} : vector<128x128xbf16>, vector<128x128xbf16>, vector<128x128xf32> -> vector<128x128xf32>
    %71 = vector.broadcast %69 : vector<1x128xf32> to vector<128x128xf32>
    %72 = arith.addf %70, %71 : vector<128x128xf32>
    %cst_44 = arith.constant dense<0.000000e+00> : vector<128x128xf32>
    %73 = tpu.matmul %65, %67, %cst_44 {dimension_numbers = #tpu.dot_dimension_numbers<[1], [0], [0], [1], [0, 0, 1, 1], [], []>} : vector<128x128xbf16>, vector<128x128xbf16>, vector<128x128xf32> -> vector<128x128xf32>
    %74 = vector.broadcast %69 : vector<1x128xf32> to vector<128x128xf32>
    %75 = arith.addf %73, %74 : vector<128x128xf32>
    %cst_45 = arith.constant 0.000000e+00 : f32
    %76 = vector.broadcast %cst_45 : f32 to vector<128x128xf32>
    %77 = arith.maximumf %72, %76 : vector<128x128xf32>
    %78 = arith.truncf %77 : vector<128x128xf32> to vector<128x128xbf16>
    %cst_46 = arith.constant 0.000000e+00 : f32
    %79 = vector.broadcast %cst_46 : f32 to vector<128x128xf32>
    %80 = arith.maximumf %75, %79 : vector<128x128xf32>
    %81 = arith.truncf %80 : vector<128x128xf32> to vector<128x128xbf16>
    %c5 = arith.constant 5 : index
    %c0_47 = arith.constant 0 : index
    %c0_48 = arith.constant 0 : index
    %82 = vector.load %arg2[%c5, %c0_47, %c0_48] : memref<9x128x128xbf16, #tpu.memory_space<vmem>>, vector<1x128x128xbf16>
    %83 = vector.shape_cast %82 : vector<1x128x128xbf16> to vector<128x128xbf16>
    %c5_49 = arith.constant 5 : index
    %c0_50 = arith.constant 0 : index
    %c0_51 = arith.constant 0 : index
    %84 = vector.load %arg3[%c5_49, %c0_50, %c0_51] : memref<9x1x128xf32, #tpu.memory_space<vmem>>, vector<1x1x128xf32>
    %85 = vector.shape_cast %84 : vector<1x1x128xf32> to vector<1x128xf32>
    %cst_52 = arith.constant dense<0.000000e+00> : vector<128x128xf32>
    %86 = tpu.matmul %78, %83, %cst_52 {dimension_numbers = #tpu.dot_dimension_numbers<[1], [0], [0], [1], [0, 0, 1, 1], [], []>} : vector<128x128xbf16>, vector<128x128xbf16>, vector<128x128xf32> -> vector<128x128xf32>
    %87 = vector.broadcast %85 : vector<1x128xf32> to vector<128x128xf32>
    %88 = arith.addf %86, %87 : vector<128x128xf32>
    %cst_53 = arith.constant dense<0.000000e+00> : vector<128x128xf32>
    %89 = tpu.matmul %81, %83, %cst_53 {dimension_numbers = #tpu.dot_dimension_numbers<[1], [0], [0], [1], [0, 0, 1, 1], [], []>} : vector<128x128xbf16>, vector<128x128xbf16>, vector<128x128xf32> -> vector<128x128xf32>
    %90 = vector.broadcast %85 : vector<1x128xf32> to vector<128x128xf32>
    %91 = arith.addf %89, %90 : vector<128x128xf32>
    %cst_54 = arith.constant 0.000000e+00 : f32
    %92 = vector.broadcast %cst_54 : f32 to vector<128x128xf32>
    %93 = arith.maximumf %88, %92 : vector<128x128xf32>
    %94 = arith.truncf %93 : vector<128x128xf32> to vector<128x128xbf16>
    %cst_55 = arith.constant 0.000000e+00 : f32
    %95 = vector.broadcast %cst_55 : f32 to vector<128x128xf32>
    %96 = arith.maximumf %91, %95 : vector<128x128xf32>
    %97 = arith.truncf %96 : vector<128x128xf32> to vector<128x128xbf16>
    %c6 = arith.constant 6 : index
    %c0_56 = arith.constant 0 : index
    %c0_57 = arith.constant 0 : index
    %98 = vector.load %arg2[%c6, %c0_56, %c0_57] : memref<9x128x128xbf16, #tpu.memory_space<vmem>>, vector<1x128x128xbf16>
    %99 = vector.shape_cast %98 : vector<1x128x128xbf16> to vector<128x128xbf16>
    %c6_58 = arith.constant 6 : index
    %c0_59 = arith.constant 0 : index
    %c0_60 = arith.constant 0 : index
    %100 = vector.load %arg3[%c6_58, %c0_59, %c0_60] : memref<9x1x128xf32, #tpu.memory_space<vmem>>, vector<1x1x128xf32>
    %101 = vector.shape_cast %100 : vector<1x1x128xf32> to vector<1x128xf32>
    %cst_61 = arith.constant dense<0.000000e+00> : vector<128x128xf32>
    %102 = tpu.matmul %94, %99, %cst_61 {dimension_numbers = #tpu.dot_dimension_numbers<[1], [0], [0], [1], [0, 0, 1, 1], [], []>} : vector<128x128xbf16>, vector<128x128xbf16>, vector<128x128xf32> -> vector<128x128xf32>
    %103 = vector.broadcast %101 : vector<1x128xf32> to vector<128x128xf32>
    %104 = arith.addf %102, %103 : vector<128x128xf32>
    %cst_62 = arith.constant dense<0.000000e+00> : vector<128x128xf32>
    %105 = tpu.matmul %97, %99, %cst_62 {dimension_numbers = #tpu.dot_dimension_numbers<[1], [0], [0], [1], [0, 0, 1, 1], [], []>} : vector<128x128xbf16>, vector<128x128xbf16>, vector<128x128xf32> -> vector<128x128xf32>
    %106 = vector.broadcast %101 : vector<1x128xf32> to vector<128x128xf32>
    %107 = arith.addf %105, %106 : vector<128x128xf32>
    %cst_63 = arith.constant 0.000000e+00 : f32
    %108 = vector.broadcast %cst_63 : f32 to vector<128x128xf32>
    %109 = arith.maximumf %104, %108 : vector<128x128xf32>
    %110 = arith.truncf %109 : vector<128x128xf32> to vector<128x128xbf16>
    %cst_64 = arith.constant 0.000000e+00 : f32
    %111 = vector.broadcast %cst_64 : f32 to vector<128x128xf32>
    %112 = arith.maximumf %107, %111 : vector<128x128xf32>
    %113 = arith.truncf %112 : vector<128x128xf32> to vector<128x128xbf16>
    %c7 = arith.constant 7 : index
    %c0_65 = arith.constant 0 : index
    %c0_66 = arith.constant 0 : index
    %114 = vector.load %arg2[%c7, %c0_65, %c0_66] : memref<9x128x128xbf16, #tpu.memory_space<vmem>>, vector<1x128x128xbf16>
    %115 = vector.shape_cast %114 : vector<1x128x128xbf16> to vector<128x128xbf16>
    %c7_67 = arith.constant 7 : index
    %c0_68 = arith.constant 0 : index
    %c0_69 = arith.constant 0 : index
    %116 = vector.load %arg3[%c7_67, %c0_68, %c0_69] : memref<9x1x128xf32, #tpu.memory_space<vmem>>, vector<1x1x128xf32>
    %117 = vector.shape_cast %116 : vector<1x1x128xf32> to vector<1x128xf32>
    %cst_70 = arith.constant dense<0.000000e+00> : vector<128x128xf32>
    %118 = tpu.matmul %110, %115, %cst_70 {dimension_numbers = #tpu.dot_dimension_numbers<[1], [0], [0], [1], [0, 0, 1, 1], [], []>} : vector<128x128xbf16>, vector<128x128xbf16>, vector<128x128xf32> -> vector<128x128xf32>
    %119 = vector.broadcast %117 : vector<1x128xf32> to vector<128x128xf32>
    %120 = arith.addf %118, %119 : vector<128x128xf32>
    %cst_71 = arith.constant dense<0.000000e+00> : vector<128x128xf32>
    %121 = tpu.matmul %113, %115, %cst_71 {dimension_numbers = #tpu.dot_dimension_numbers<[1], [0], [0], [1], [0, 0, 1, 1], [], []>} : vector<128x128xbf16>, vector<128x128xbf16>, vector<128x128xf32> -> vector<128x128xf32>
    %122 = vector.broadcast %117 : vector<1x128xf32> to vector<128x128xf32>
    %123 = arith.addf %121, %122 : vector<128x128xf32>
    %cst_72 = arith.constant 0.000000e+00 : f32
    %124 = vector.broadcast %cst_72 : f32 to vector<128x128xf32>
    %125 = arith.maximumf %120, %124 : vector<128x128xf32>
    %126 = arith.truncf %125 : vector<128x128xf32> to vector<128x128xbf16>
    %cst_73 = arith.constant 0.000000e+00 : f32
    %127 = vector.broadcast %cst_73 : f32 to vector<128x128xf32>
    %128 = arith.maximumf %123, %127 : vector<128x128xf32>
    %129 = arith.truncf %128 : vector<128x128xf32> to vector<128x128xbf16>
    %c8 = arith.constant 8 : index
    %c0_74 = arith.constant 0 : index
    %c0_75 = arith.constant 0 : index
    %130 = vector.load %arg2[%c8, %c0_74, %c0_75] : memref<9x128x128xbf16, #tpu.memory_space<vmem>>, vector<1x128x128xbf16>
    %131 = vector.shape_cast %130 : vector<1x128x128xbf16> to vector<128x128xbf16>
    %c8_76 = arith.constant 8 : index
    %c0_77 = arith.constant 0 : index
    %c0_78 = arith.constant 0 : index
    %132 = vector.load %arg3[%c8_76, %c0_77, %c0_78] : memref<9x1x128xf32, #tpu.memory_space<vmem>>, vector<1x1x128xf32>
    %133 = vector.shape_cast %132 : vector<1x1x128xf32> to vector<1x128xf32>
    %cst_79 = arith.constant dense<0.000000e+00> : vector<128x128xf32>
    %134 = tpu.matmul %126, %131, %cst_79 {dimension_numbers = #tpu.dot_dimension_numbers<[1], [0], [0], [1], [0, 0, 1, 1], [], []>} : vector<128x128xbf16>, vector<128x128xbf16>, vector<128x128xf32> -> vector<128x128xf32>
    %135 = vector.broadcast %133 : vector<1x128xf32> to vector<128x128xf32>
    %136 = arith.addf %134, %135 : vector<128x128xf32>
    %cst_80 = arith.constant dense<0.000000e+00> : vector<128x128xf32>
    %137 = tpu.matmul %129, %131, %cst_80 {dimension_numbers = #tpu.dot_dimension_numbers<[1], [0], [0], [1], [0, 0, 1, 1], [], []>} : vector<128x128xbf16>, vector<128x128xbf16>, vector<128x128xf32> -> vector<128x128xf32>
    %138 = vector.broadcast %133 : vector<1x128xf32> to vector<128x128xf32>
    %139 = arith.addf %137, %138 : vector<128x128xf32>
    %cst_81 = arith.constant 0.000000e+00 : f32
    %140 = vector.broadcast %cst_81 : f32 to vector<128x128xf32>
    %141 = arith.maximumf %136, %140 : vector<128x128xf32>
    %142 = arith.truncf %141 : vector<128x128xf32> to vector<128x128xbf16>
    %cst_82 = arith.constant 0.000000e+00 : f32
    %143 = vector.broadcast %cst_82 : f32 to vector<128x128xf32>
    %144 = arith.maximumf %139, %143 : vector<128x128xf32>
    %145 = arith.truncf %144 : vector<128x128xf32> to vector<128x128xbf16>
    %c0_83 = arith.constant 0 : index
    %c0_84 = arith.constant 0 : index
    %146 = vector.load %arg4[%c0_83, %c0_84] : memref<256x128xbf16, #tpu.memory_space<vmem>>, vector<128x128xbf16>
    tpu.vector_store %arg4[%c0_83, %c0_84], %142 {strides = array<i32>} : memref<256x128xbf16, #tpu.memory_space<vmem>>, vector<128x128xbf16>,
    %c128_85 = arith.constant 128 : index
    %c0_86 = arith.constant 0 : index
    %147 = vector.load %arg4[%c128_85, %c0_86] : memref<256x128xbf16, #tpu.memory_space<vmem>>, vector<128x128xbf16>
    tpu.vector_store %arg4[%c128_85, %c0_86], %145 {strides = array<i32>} : memref<256x128xbf16, #tpu.memory_space<vmem>>, vector<128x128xbf16>,
    return
  }
  func.func @transform_0(%arg0: i32) -> (i32, i32) {
    %c0_i32 = arith.constant 0 : i32
    %c0_i32_0 = arith.constant 0 : i32
    return %arg0, %c0_i32 : i32, i32
  }
  func.func @transform_1(%arg0: i32) -> (i32, i32, i32) {
    %c0_i32 = arith.constant 0 : i32
    %c0_i32_0 = arith.constant 0 : i32
    %c0_i32_1 = arith.constant 0 : i32
    %c0_i32_2 = arith.constant 0 : i32
    return %c0_i32, %c0_i32_0, %c0_i32_1 : i32, i32, i32
  }
  func.func @transform_2(%arg0: i32) -> (i32, i32, i32) {
    %c0_i32 = arith.constant 0 : i32
    %c0_i32_0 = arith.constant 0 : i32
    %c0_i32_1 = arith.constant 0 : i32
    %c0_i32_2 = arith.constant 0 : i32
    return %c0_i32, %c0_i32_0, %c0_i32_1 : i32, i32, i32
  }
  func.func @transform_3(%arg0: i32) -> (i32, i32) {
    %c0_i32 = arith.constant 0 : i32
    %c0_i32_0 = arith.constant 0 : i32
    return %arg0, %c0_i32 : i32, i32
  }
}

</mosaic_0001>

<llo_original>
// kernel: autoencoder_forward.1
$region0: #{autoencoder_forward.1}
  #allocation0 [shape = 'u32[]', space=smem, size = 0x4, offset = 0x4, fixed_abs, tag = 'smem constant byte address 0x4 - core index']
  #allocation1 [shape = 'u32[144,128]{1,0:T(1,128)}', space=vmem, size = 0x12000, scoped, tag = 'internal scratch']
  %s0 = inlined_call_operand.vmem [shape: bf16[6,128], index: 0, kind: input, shape index: {}]
  %s1 = inlined_call_operand.hbm [shape: bf16[9,128,128], index: 1, kind: input, shape index: {}]
  %s2 = inlined_call_operand.vmem [shape: f32[9,1,128], index: 2, kind: input, shape index: {}]
  %s3 = inlined_call_operand.vmem [shape: bf16[6,128], index: 3, kind: output, shape index: {}]
  %s4 = sld [smem:[#allocation0]]
  $region56: #{autoencoder_forward.1} parent=0
    _
  %s6 = ssub.s32 1, %s4
  %s7 = scalar_select 0, %s6, %s4
  $region1: #{autoencoder_forward.1} parent=0
    #allocation2 [shape = 'u8[294912]{0}', space=vmem, size = 0x48000, scoped, tag = 'input window, operand 1, single buffered']
    #allocation3 [shape = 's32[1]{0}', space=sflag, size = 0x4, scoped, tag = 'scoped memory for autoencoder_forward.1']
    #allocation4 [shape = 'u8[65536]{0}', space=vmem, size = 0x10000, scoped, tag = 'output window, operand 0, single buffered']
    %8 = vsyncpa [#allocation3], 0
    // Predicated region
    $region2: #{autoencoder_forward.1} parent=1 // pred_check
      _
    $region3: #{autoencoder_forward.1} parent=1 // pred_check_branch
      %10 = sbr.rel (0) target = $region5
    $region4: #{autoencoder_forward.1} parent=1 // pred_region
      _
    $region5: #{autoencoder_forward.1} parent=1 // pred_fallthru
      _
    // Predicated region
    $region6: #{autoencoder_forward.1} parent=1 // pred_check
      _
    $region7: #{autoencoder_forward.1} parent=1 // pred_check_branch
      %12 = sbr.rel (0) target = $region9
    $region8: #{autoencoder_forward.1} parent=1 // pred_region
      %s14 = ssub.s32 9216, 9216
      %15 = vsyncadd [#allocation3], %s14
      %s16 = sshll.u32 [#allocation2], 4
      %s17 = int_to_ptr.vmem [resolvable:$true] %s16
      %22 = dma.hbm_to_vmem [thread:$0]  %s1, 9216, %s17, [#allocation3], 64, 64, 4
    $region9: #{autoencoder_forward.1} parent=1 // pred_fallthru
      _
    // Predicated region
    $region10: #{autoencoder_forward.1} parent=1 // pred_check
      _
    $region11: #{autoencoder_forward.1} parent=1 // pred_check_branch
      %24 = sbr.rel (0) target = $region13
    $region12: #{autoencoder_forward.1} parent=1 // pred_region
      _
    $region13: #{autoencoder_forward.1} parent=1 // pred_fallthru
      _
    // Predicated region
    $region14: #{autoencoder_forward.1} parent=1 // pred_check
      _
    $region15: #{autoencoder_forward.1} parent=1 // pred_check_branch
      %26 = sbr.rel (0) target = $region17
    $region16: #{autoencoder_forward.1} parent=1 // pred_region
      %27 = dma.done [#allocation3], 9216
    $region17: #{autoencoder_forward.1} parent=1 // pred_fallthru
      _
    %v29 = vld [vmem:[%s0] sm:$0xf]
    %v30 = vld [vmem:[%s0 + $0x4] sm:$0xf]
    %v31 = vld [vmem:[%s0 + $0x8] sm:$0xf]
    %v32 = vld [vmem:[%s0 + $0xc] sm:$0xf]
    %v33 = vld [vmem:[%s0 + $0x10] sm:$0xf]
    %v34 = vld [vmem:[%s0 + $0x14] sm:$0xf]
    %v35 = vld [vmem:[%s0 + $0x18] sm:$0xf]
    %v36 = vld [vmem:[%s0 + $0x1c] sm:$0xf]
    %v37 = vld [vmem:[%s0 + $0x20] sm:$0xf]
    %v38 = vld [vmem:[%s0 + $0x24] sm:$0xf]
    %v39 = vld [vmem:[%s0 + $0x28] sm:$0xf]
    %v40 = vld [vmem:[%s0 + $0x2c] sm:$0xf]
    %v41 = vld [vmem:[%s0 + $0x30] sm:$0xf]
    %v42 = vld [vmem:[%s0 + $0x34] sm:$0xf]
    %v43 = vld [vmem:[%s0 + $0x38] sm:$0xf]
    %v44 = vld [vmem:[%s0 + $0x3c] sm:$0xf]
    %v45 = vld [vmem:[%s0 + $0x40] sm:$0xf]
    %v46 = vld [vmem:[%s0 + $0x44] sm:$0xf]
    %v47 = vld [vmem:[%s0 + $0x48] sm:$0xf]
    %v48 = vld [vmem:[%s0 + $0x4c] sm:$0xf]
    %v49 = vld [vmem:[%s0 + $0x50] sm:$0xf]
    %v50 = vld [vmem:[%s0 + $0x54] sm:$0xf]
    %v51 = vld [vmem:[%s0 + $0x58] sm:$0xf]
    %v52 = vld [vmem:[%s0 + $0x5c] sm:$0xf]
    %v53 = vld [vmem:[%s0 + $0x60] sm:$0xf]
    %v54 = vld [vmem:[%s0 + $0x64] sm:$0xf]
    %v55 = vld [vmem:[%s0 + $0x68] sm:$0xf]
    %v56 = vld [vmem:[%s0 + $0x6c] sm:$0xf]
    %v57 = vld [vmem:[%s0 + $0x70] sm:$0xf]
    %v58 = vld [vmem:[%s0 + $0x74] sm:$0xf]
    %v59 = vld [vmem:[%s0 + $0x78] sm:$0xf]
    %v60 = vld [vmem:[%s0 + $0x7c] sm:$0xf]
    %v61 = vld [vmem:[#allocation2] sm:$0xf]
    %v62 = vld [vmem:[#allocation2 + $0x4] sm:$0xf]
    %v63 = vld [vmem:[#allocation2 + $0x8] sm:$0xf]
    %v64 = vld [vmem:[#allocation2 + $0xc] sm:$0xf]
    %v65 = vld [vmem:[#allocation2 + $0x10] sm:$0xf]
    %v66 = vld [vmem:[#allocation2 + $0x14] sm:$0xf]
    %v67 = vld [vmem:[#allocation2 + $0x18] sm:$0xf]
    %v68 = vld [vmem:[#allocation2 + $0x1c] sm:$0xf]
    %v69 = vld [vmem:[#allocation2 + $0x20] sm:$0xf]
    %v70 = vld [vmem:[#allocation2 + $0x24] sm:$0xf]
    %v71 = vld [vmem:[#allocation2 + $0x28] sm:$0xf]
    %v72 = vld [vmem:[#allocation2 + $0x2c] sm:$0xf]
    %v73 = vld [vmem:[#allocation2 + $0x30] sm:$0xf]
    %v74 = vld [vmem:[#allocation2 + $0x34] sm:$0xf]
    %v75 = vld [vmem:[#allocation2 + $0x38] sm:$0xf]
    %v76 = vld [vmem:[#allocation2 + $0x3c] sm:$0xf]
    %v77 = vld [vmem:[%s2] sm:$0x1]
    %v79 = vlaneseq
    %v80 = vshrl.u32 %v79, 7
    %v81 = vsub.s32 0, %v80
    %v82 = vrot.slane %v77, %v81
    %v100 = vunpack.c.l.b16 %v29
    %v101 = vunpack.c.l.b16 %v30
    %v102 = vunpack.c.l.b16 %v31
    %v103 = vunpack.c.l.b16 %v32
    %v104 = vunpack.c.l.b16 %v33
    %v105 = vunpack.c.l.b16 %v34
    %v106 = vunpack.c.l.b16 %v35
    %v107 = vunpack.c.l.b16 %v36
    %v108 = vunpack.c.l.b16 %v37
    %v109 = vunpack.c.l.b16 %v38
    %v110 = vunpack.c.l.b16 %v39
    %v111 = vunpack.c.l.b16 %v40
    %v112 = vunpack.c.l.b16 %v41
    %v113 = vunpack.c.l.b16 %v42
    %v114 = vunpack.c.l.b16 %v43
    %v115 = vunpack.c.l.b16 %v44
    %v116 = vpack.c.b16 %v101, %v100
    %v117 = vpack.c.b16 %v103, %v102
    %v118 = vpack.c.b16 %v105, %v104
    %v119 = vpack.c.b16 %v107, %v106
    %v120 = vpack.c.b16 %v109, %v108
    %v121 = vpack.c.b16 %v111, %v110
    %v122 = vpack.c.b16 %v113, %v112
    %v123 = vpack.c.b16 %v115, %v114
    %v148 = vunpack.c.l.b16 %v61
    %v149 = vunpack.c.l.b16 %v62
    %v150 = vunpack.c.l.b16 %v63
    %v151 = vunpack.c.l.b16 %v64
    %v152 = vunpack.c.l.b16 %v65
    %v153 = vunpack.c.l.b16 %v66
    %v154 = vunpack.c.l.b16 %v67
    %v155 = vunpack.c.l.b16 %v68
    %v156 = vunpack.c.l.b16 %v69
    %v157 = vunpack.c.l.b16 %v70
    %v158 = vunpack.c.l.b16 %v71
    %v159 = vunpack.c.l.b16 %v72
    %v160 = vunpack.c.l.b16 %v73
    %v161 = vunpack.c.l.b16 %v74
    %v162 = vunpack.c.l.b16 %v75
    %v163 = vunpack.c.l.b16 %v76
    %v164 = vpack.c.b16 %v149, %v148
    %v165 = vpack.c.b16 %v151, %v150
    %v166 = vpack.c.b16 %v153, %v152
    %v167 = vpack.c.b16 %v155, %v154
    %v168 = vpack.c.b16 %v157, %v156
    %v169 = vpack.c.b16 %v159, %v158
    %v170 = vpack.c.b16 %v161, %v160
    %v171 = vpack.c.b16 %v163, %v162
    %180 = vmatprep.subr.bf16.mxu0 0
    %181 = vmatpush1.bf16.msra.mxu0 %v164
    %182 = vmatprep.subr.bf16.mxu0 0
    %183 = vmatpush1.bf16.msra.mxu0 %v165
    %184 = vmatprep.subr.bf16.mxu0 0
    %185 = vmatpush1.bf16.msra.mxu0 %v166
    %186 = vmatprep.subr.bf16.mxu0 0
    %187 = vmatpush1.bf16.msra.mxu0 %v167
    %188 = vmatprep.subr.bf16.mxu0 0
    %189 = vmatpush1.bf16.msra.mxu0 %v168
    %190 = vmatprep.subr.bf16.mxu0 0
    %191 = vmatpush1.bf16.msra.mxu0 %v169
    %192 = vmatprep.subr.bf16.mxu0 0
    %193 = vmatpush1.bf16.msra.mxu0 %v170
    %194 = vmatprep.subr.bf16.mxu0 0
    %195 = vmatpush1.bf16.msra.mxu0 %v171
    %196 = vmatprep.subr.bf16.mxu0 0
    %197 = vmatpush1.bf16.msra.mxu0 0
    %198 = vmatprep.subr.bf16.mxu0 0
    %199 = vmatpush1.bf16.msra.mxu0 0
    %200 = vmatprep.subr.bf16.mxu0 0
    %201 = vmatpush1.bf16.msra.mxu0 0
    %202 = vmatprep.subr.bf16.mxu0 0
    %203 = vmatpush1.bf16.msra.mxu0 0
    %204 = vmatprep.subr.bf16.mxu0 0
    %205 = vmatpush1.bf16.msra.mxu0 0
    %206 = vmatprep.subr.bf16.mxu0 0
    %207 = vmatpush1.bf16.msra.mxu0 0
    %208 = vmatprep.subr.bf16.mxu0 0
    %209 = vmatpush1.bf16.msra.mxu0 0
    %210 = vmatprep.subr.bf16.mxu0 0
    %211 = vmatpush1.bf16.msra.mxu0 0
    %212 = vmatprep.mubr.bf16.mxu0 0
    %213 = vmatmul.mubr.bf16.gmra.mrb[0].mxu0 %v116
    %v214 = vpop.f32.mrb[0].mxu0
    %v215 = vadd.f32 %v82, %v214
    %v216 = vpop.f32.mrb[0].mxu0
    %v217 = vpop.f32.mrb[0].mxu0
    %v218 = vadd.f32 %v82, %v217
    %v219 = vpop.f32.mrb[0].mxu0
    %220 = vmatprep.mubr.bf16.mxu0 0
    %221 = vmatmul.mubr.bf16.gmra.mrb[0].mxu0 %v117
    %v222 = vpop.f32.mrb[0].mxu0
    %v223 = vadd.f32 %v82, %v222
    %v224 = vpop.f32.mrb[0].mxu0
    %v225 = vpop.f32.mrb[0].mxu0
    %v226 = vadd.f32 %v82, %v225
    %v227 = vpop.f32.mrb[0].mxu0
    %228 = vmatprep.mubr.bf16.mxu0 0
    %229 = vmatmul.mubr.bf16.gmra.mrb[0].mxu0 %v118
    %v230 = vpop.f32.mrb[0].mxu0
    %v231 = vadd.f32 %v82, %v230
    %v232 = vpop.f32.mrb[0].mxu0
    %v233 = vpop.f32.mrb[0].mxu0
    %v234 = vadd.f32 %v82, %v233
    %v235 = vpop.f32.mrb[0].mxu0
    %236 = vmatprep.mubr.bf16.mxu0 0
    %237 = vmatmul.mubr.bf16.gmra.mrb[0].mxu0 %v119
    %v238 = vpop.f32.mrb[0].mxu0
    %v239 = vadd.f32 %v82, %v238
    %v240 = vpop.f32.mrb[0].mxu0
    %v241 = vpop.f32.mrb[0].mxu0
    %v242 = vadd.f32 %v82, %v241
    %v243 = vpop.f32.mrb[0].mxu0
    %244 = vmatprep.mubr.bf16.mxu0 0
    %245 = vmatmul.mubr.bf16.gmra.mrb[0].mxu0 %v120
    %v246 = vpop.f32.mrb[0].mxu0
    %v247 = vadd.f32 %v82, %v246
    %v248 = vpop.f32.mrb[0].mxu0
    %v249 = vpop.f32.mrb[0].mxu0
    %v250 = vadd.f32 %v82, %v249
    %v251 = vpop.f32.mrb[0].mxu0
    %252 = vmatprep.mubr.bf16.mxu0 0
    %253 = vmatmul.mubr.bf16.gmra.mrb[0].mxu0 %v121
    %v254 = vpop.f32.mrb[0].mxu0
    %v255 = vadd.f32 %v82, %v254
    %v256 = vpop.f32.mrb[0].mxu0
    %v257 = vpop.f32.mrb[0].mxu0
    %v258 = vadd.f32 %v82, %v257
    %v259 = vpop.f32.mrb[0].mxu0
    %260 = vmatprep.mubr.bf16.mxu0 0
    %261 = vmatmul.mubr.bf16.gmra.mrb[0].mxu0 %v122
    %v262 = vpop.f32.mrb[0].mxu0
    %v263 = vadd.f32 %v82, %v262
    %v264 = vpop.f32.mrb[0].mxu0
    %v265 = vpop.f32.mrb[0].mxu0
    %v266 = vadd.f32 %v82, %v265
    %v267 = vpop.f32.mrb[0].mxu0
    %268 = vmatprep.mubr.bf16.mxu0 0
    %269 = vmatmul.mubr.bf16.gmra.mrb[0].mxu0 %v123
    %v270 = vpop.f32.mrb[0].mxu0
    %v271 = vadd.f32 %v82, %v270
    %v272 = vpop.f32.mrb[0].mxu0
    %v273 = vpop.f32.mrb[0].mxu0
    %v274 = vadd.f32 %v82, %v273
    %v275 = vpop.f32.mrb[0].mxu0
    %276 = vdwg.mxu0
    %v293 = vunpack.c.l.b16 %v45
    %v294 = vunpack.c.l.b16 %v46
    %v295 = vunpack.c.l.b16 %v47
    %v296 = vunpack.c.l.b16 %v48
    %v297 = vunpack.c.l.b16 %v49
    %v298 = vunpack.c.l.b16 %v50
    %v299 = vunpack.c.l.b16 %v51
    %v300 = vunpack.c.l.b16 %v52
    %v301 = vunpack.c.l.b16 %v53
    %v302 = vunpack.c.l.b16 %v54
    %v303 = vunpack.c.l.b16 %v55
    %v304 = vunpack.c.l.b16 %v56
    %v305 = vunpack.c.l.b16 %v57
    %v306 = vunpack.c.l.b16 %v58
    %v307 = vunpack.c.l.b16 %v59
    %v308 = vunpack.c.l.b16 %v60
    %v309 = vpack.c.b16 %v294, %v293
    %v310 = vpack.c.b16 %v296, %v295
    %v311 = vpack.c.b16 %v298, %v297
    %v312 = vpack.c.b16 %v300, %v299
    %v313 = vpack.c.b16 %v302, %v301
    %v314 = vpack.c.b16 %v304, %v303
    %v315 = vpack.c.b16 %v306, %v305
    %v316 = vpack.c.b16 %v308, %v307
    %325 = vmatprep.subr.bf16.mxu0 0
    %326 = vmatpush1.bf16.msra.mxu0 %v164
    %327 = vmatprep.subr.bf16.mxu0 0
    %328 = vmatpush1.bf16.msra.mxu0 %v165
    %329 = vmatprep.subr.bf16.mxu0 0
    %330 = vmatpush1.bf16.msra.mxu0 %v166
    %331 = vmatprep.subr.bf16.mxu0 0
    %332 = vmatpush1.bf16.msra.mxu0 %v167
    %333 = vmatprep.subr.bf16.mxu0 0
    %334 = vmatpush1.bf16.msra.mxu0 %v168
    %335 = vmatprep.subr.bf16.mxu0 0
    %336 = vmatpush1.bf16.msra.mxu0 %v169
    %337 = vmatprep.subr.bf16.mxu0 0
    %338 = vmatpush1.bf16.msra.mxu0 %v170
    %339 = vmatprep.subr.bf16.mxu0 0
    %340 = vmatpush1.bf16.msra.mxu0 %v171
    %341 = vmatprep.subr.bf16.mxu0 0
    %342 = vmatpush1.bf16.msra.mxu0 0
    %343 = vmatprep.subr.bf16.mxu0 0
    %344 = vmatpush1.bf16.msra.mxu0 0
    %345 = vmatprep.subr.bf16.mxu0 0
    %346 = vmatpush1.bf16.msra.mxu0 0
    %347 = vmatprep.subr.bf16.mxu0 0
    %348 = vmatpush1.bf16.msra.mxu0 0
    %349 = vmatprep.subr.bf16.mxu0 0
    %350 = vmatpush1.bf16.msra.mxu0 0
    %351 = vmatprep.subr.bf16.mxu0 0
    %352 = vmatpush1.bf16.msra.mxu0 0
    %353 = vmatprep.subr.bf16.mxu0 0
    %354 = vmatpush1.bf16.msra.mxu0 0
    %355 = vmatprep.subr.bf16.mxu0 0
    %356 = vmatpush1.bf16.msra.mxu0 0
    %357 = vmatprep.mubr.bf16.mxu0 0
    %358 = vmatmul.mubr.bf16.gmra.mrb[0].mxu0 %v309
    %v359 = vpop.f32.mrb[0].mxu0
    %v360 = vadd.f32 %v82, %v359
    %v361 = vpop.f32.mrb[0].mxu0
    %v362 = vpop.f32.mrb[0].mxu0
    %v363 = vadd.f32 %v82, %v362
    %v364 = vpop.f32.mrb[0].mxu0
    %365 = vmatprep.mubr.bf16.mxu0 0
    %366 = vmatmul.mubr.bf16.gmra.mrb[0].mxu0 %v310
    %v367 = vpop.f32.mrb[0].mxu0
    %v368 = vadd.f32 %v82, %v367
    %v369 = vpop.f32.mrb[0].mxu0
    %v370 = vpop.f32.mrb[0].mxu0
    %v371 = vadd.f32 %v82, %v370
    %v372 = vpop.f32.mrb[0].mxu0
    %373 = vmatprep.mubr.bf16.mxu0 0
    %374 = vmatmul.mubr.bf16.gmra.mrb[0].mxu0 %v311
    %v375 = vpop.f32.mrb[0].mxu0
    %v376 = vadd.f32 %v82, %v375
    %v377 = vpop.f32.mrb[0].mxu0
    %v378 = vpop.f32.mrb[0].mxu0
    %v379 = vadd.f32 %v82, %v378
    %v380 = vpop.f32.mrb[0].mxu0
    %381 = vmatprep.mubr.bf16.mxu0 0
    %382 = vmatmul.mubr.bf16.gmra.mrb[0].mxu0 %v312
    %v383 = vpop.f32.mrb[0].mxu0
    %v384 = vadd.f32 %v82, %v383
    %v385 = vpop.f32.mrb[0].mxu0
    %v386 = vpop.f32.mrb[0].mxu0
    %v387 = vadd.f32 %v82, %v386
    %v388 = vpop.f32.mrb[0].mxu0
    %389 = vmatprep.mubr.bf16.mxu0 0
    %390 = vmatmul.mubr.bf16.gmra.mrb[0].mxu0 %v313
    %v391 = vpop.f32.mrb[0].mxu0
    %v392 = vadd.f32 %v82, %v391
    %v393 = vpop.f32.mrb[0].mxu0
    %v394 = vpop.f32.mrb[0].mxu0
    %v395 = vadd.f32 %v82, %v394
    %v396 = vpop.f32.mrb[0].mxu0
    %397 = vmatprep.mubr.bf16.mxu0 0
    %398 = vmatmul.mubr.bf16.gmra.mrb[0].mxu0 %v314
    %v399 = vpop.f32.mrb[0].mxu0
    %v400 = vadd.f32 %v82, %v399
    %v401 = vpop.f32.mrb[0].mxu0
    %v402 = vpop.f32.mrb[0].mxu0
    %v403 = vadd.f32 %v82, %v402
    %v404 = vpop.f32.mrb[0].mxu0
    %405 = vmatprep.mubr.bf16.mxu0 0
    %406 = vmatmul.mubr.bf16.gmra.mrb[0].mxu0 %v315
    %v407 = vpop.f32.mrb[0].mxu0
    %v408 = vadd.f32 %v82, %v407
    %v409 = vpop.f32.mrb[0].mxu0
    %v410 = vpop.f32.mrb[0].mxu0
    %v411 = vadd.f32 %v82, %v410
    %v412 = vpop.f32.mrb[0].mxu0
    %413 = vmatprep.mubr.bf16.mxu0 0
    %414 = vmatmul.mubr.bf16.gmra.mrb[0].mxu0 %v316
    %v415 = vpop.f32.mrb[0].mxu0
    %v416 = vadd.f32 %v82, %v415
    %v417 = vpop.f32.mrb[0].mxu0
    %v418 = vpop.f32.mrb[0].mxu0
    %v419 = vadd.f32 %v82, %v418
    %v420 = vpop.f32.mrb[0].mxu0
    %421 = vdwg.mxu0
    %v422 = vmax.f32 %v215, 0.0
    %v423 = vmax.f32 %v218, 0.0
    %v424 = vmax.f32 %v223, 0.0
    %v425 = vmax.f32 %v226, 0.0
    %v426 = vmax.f32 %v231, 0.0
    %v427 = vmax.f32 %v234, 0.0
    %v428 = vmax.f32 %v239, 0.0
    %v429 = vmax.f32 %v242, 0.0
    %v430 = vmax.f32 %v247, 0.0
    %v431 = vmax.f32 %v250, 0.0
    %v432 = vmax.f32 %v255, 0.0
    %v433 = vmax.f32 %v258, 0.0
    %v434 = vmax.f32 %v263, 0.0
    %v435 = vmax.f32 %v266, 0.0
    %v436 = vmax.f32 %v271, 0.0
    %v437 = vmax.f32 %v274, 0.0
    %v438 = vpack.c.bf16 %v423, %v422
    %v439 = vpack.c.bf16 %v425, %v424
    %v440 = vpack.c.bf16 %v427, %v426
    %v441 = vpack.c.bf16 %v429, %v428
    %v442 = vpack.c.bf16 %v431, %v430
    %v443 = vpack.c.bf16 %v433, %v432
    %v444 = vpack.c.bf16 %v435, %v434
    %v445 = vpack.c.bf16 %v437, %v436
    %v446 = vmax.f32 %v360, 0.0
    %v447 = vmax.f32 %v363, 0.0
    %v448 = vmax.f32 %v368, 0.0
    %v449 = vmax.f32 %v371, 0.0
    %v450 = vmax.f32 %v376, 0.0
    %v451 = vmax.f32 %v379, 0.0
    %v452 = vmax.f32 %v384, 0.0
    %v453 = vmax.f32 %v387, 0.0
    %v454 = vmax.f32 %v392, 0.0
    %v455 = vmax.f32 %v395, 0.0
    %v456 = vmax.f32 %v400, 0.0
    %v457 = vmax.f32 %v403, 0.0
    %v458 = vmax.f32 %v408, 0.0
    %v459 = vmax.f32 %v411, 0.0
    %v460 = vmax.f32 %v416, 0.0
    %v461 = vmax.f32 %v419, 0.0
    %v462 = vpack.c.bf16 %v447, %v446
    %v463 = vpack.c.bf16 %v449, %v448
    %v464 = vpack.c.bf16 %v451, %v450
    %v465 = vpack.c.bf16 %v453, %v452
    %v466 = vpack.c.bf16 %v455, %v454
    %v467 = vpack.c.bf16 %v457, %v456
    %v468 = vpack.c.bf16 %v459, %v458
    %v469 = vpack.c.bf16 %v461, %v460
    %s470 = scalar_lea.vmem [#allocation2], 64
    %v471 = vld [vmem:[%s470] sm:$0xf]
    %v472 = vld [vmem:[%s470 + $0x4] sm:$0xf]
    %v473 = vld [vmem:[%s470 + $0x8] sm:$0xf]
    %v474 = vld [vmem:[%s470 + $0xc] sm:$0xf]
    %v475 = vld [vmem:[%s470 + $0x10] sm:$0xf]
    %v476 = vld [vmem:[%s470 + $0x14] sm:$0xf]
    %v477 = vld [vmem:[%s470 + $0x18] sm:$0xf]
    %v478 = vld [vmem:[%s470 + $0x1c] sm:$0xf]
    %v479 = vld [vmem:[%s470 + $0x20] sm:$0xf]
    %v480 = vld [vmem:[%s470 + $0x24] sm:$0xf]
    %v481 = vld [vmem:[%s470 + $0x28] sm:$0xf]
    %v482 = vld [vmem:[%s470 + $0x2c] sm:$0xf]
    %v483 = vld [vmem:[%s470 + $0x30] sm:$0xf]
    %v484 = vld [vmem:[%s470 + $0x34] sm:$0xf]
    %v485 = vld [vmem:[%s470 + $0x38] sm:$0xf]
    %v486 = vld [vmem:[%s470 + $0x3c] sm:$0xf]
    %s487 = scalar_lea.vmem %s2, 1
    %v488 = vld [vmem:[%s487] sm:$0x1]
    %v490 = vlaneseq
    %v491 = vshrl.u32 %v490, 7
    %v492 = vsub.s32 0, %v491
    %v493 = vrot.slane %v488, %v492
    %v511 = vunpack.c.l.b16 %v471
    %v512 = vunpack.c.l.b16 %v472
    %v513 = vunpack.c.l.b16 %v473
    %v514 = vunpack.c.l.b16 %v474
    %v515 = vunpack.c.l.b16 %v475
    %v516 = vunpack.c.l.b16 %v476
    %v517 = vunpack.c.l.b16 %v477
    %v518 = vunpack.c.l.b16 %v478
    %v519 = vunpack.c.l.b16 %v479
    %v520 = vunpack.c.l.b16 %v480
    %v521 = vunpack.c.l.b16 %v481
    %v522 = vunpack.c.l.b16 %v482
    %v523 = vunpack.c.l.b16 %v483
    %v524 = vunpack.c.l.b16 %v484
    %v525 = vunpack.c.l.b16 %v485
    %v526 = vunpack.c.l.b16 %v486
    %v527 = vpack.c.b16 %v512, %v511
    %v528 = vpack.c.b16 %v514, %v513
    %v529 = vpack.c.b16 %v516, %v515
    %v530 = vpack.c.b16 %v518, %v517
    %v531 = vpack.c.b16 %v520, %v519
    %v532 = vpack.c.b16 %v522, %v521
    %v533 = vpack.c.b16 %v524, %v523
    %v534 = vpack.c.b16 %v526, %v525
    %543 = vmatprep.subr.bf16.mxu0 0
    %544 = vmatpush1.bf16.msra.mxu0 %v527
    %545 = vmatprep.subr.bf16.mxu0 0
    %546 = vmatpush1.bf16.msra.mxu0 %v528
    %547 = vmatprep.subr.bf16.mxu0 0
    %548 = vmatpush1.bf16.msra.mxu0 %v529
    %549 = vmatprep.subr.bf16.mxu0 0
    %550 = vmatpush1.bf16.msra.mxu0 %v530
    %551 = vmatprep.subr.bf16.mxu0 0
    %552 = vmatpush1.bf16.msra.mxu0 %v531
    %553 = vmatprep.subr.bf16.mxu0 0
    %554 = vmatpush1.bf16.msra.mxu0 %v532
    %555 = vmatprep.subr.bf16.mxu0 0
    %556 = vmatpush1.bf16.msra.mxu0 %v533
    %557 = vmatprep.subr.bf16.mxu0 0
    %558 = vmatpush1.bf16.msra.mxu0 %v534
    %559 = vmatprep.subr.bf16.mxu0 0
    %560 = vmatpush1.bf16.msra.mxu0 0
    %561 = vmatprep.subr.bf16.mxu0 0
    %562 = vmatpush1.bf16.msra.mxu0 0
    %563 = vmatprep.subr.bf16.mxu0 0
    %564 = vmatpush1.bf16.msra.mxu0 0
    %565 = vmatprep.subr.bf16.mxu0 0
    %566 = vmatpush1.bf16.msra.mxu0 0
    %567 = vmatprep.subr.bf16.mxu0 0
    %568 = vmatpush1.bf16.msra.mxu0 0
    %569 = vmatprep.subr.bf16.mxu0 0
    %570 = vmatpush1.bf16.msra.mxu0 0
    %571 = vmatprep.subr.bf16.mxu0 0
    %572 = vmatpush1.bf16.msra.mxu0 0
    %573 = vmatprep.subr.bf16.mxu0 0
    %574 = vmatpush1.bf16.msra.mxu0 0
    %575 = vmatprep.mubr.bf16.mxu0 0
    %576 = vmatmul.mubr.bf16.gmra.mrb[0].mxu0 %v438
    %v577 = vpop.f32.mrb[0].mxu0
    %v578 = vadd.f32 %v493, %v577
    %v579 = vpop.f32.mrb[0].mxu0
    %v580 = vpop.f32.mrb[0].mxu0
    %v581 = vadd.f32 %v493, %v580
    %v582 = vpop.f32.mrb[0].mxu0
    %583 = vmatprep.mubr.bf16.mxu0 0
    %584 = vmatmul.mubr.bf16.gmra.mrb[0].mxu0 %v439
    %v585 = vpop.f32.mrb[0].mxu0
    %v586 = vadd.f32 %v493, %v585
    %v587 = vpop.f32.mrb[0].mxu0
    %v588 = vpop.f32.mrb[0].mxu0
    %v589 = vadd.f32 %v493, %v588
    %v590 = vpop.f32.mrb[0].mxu0
    %591 = vmatprep.mubr.bf16.mxu0 0
    %592 = vmatmul.mubr.bf16.gmra.mrb[0].mxu0 %v440
    %v593 = vpop.f32.mrb[0].mxu0
    %v594 = vadd.f32 %v493, %v593
    %v595 = vpop.f32.mrb[0].mxu0
    %v596 = vpop.f32.mrb[0].mxu0
    %v597 = vadd.f32 %v493, %v596
    %v598 = vpop.f32.mrb[0].mxu0
    %599 = vmatprep.mubr.bf16.mxu0 0
    %600 = vmatmul.mubr.bf16.gmra.mrb[0].mxu0 %v441
    %v601 = vpop.f32.mrb[0].mxu0
    %v602 = vadd.f32 %v493, %v601
    %v603 = vpop.f32.mrb[0].mxu0
    %v604 = vpop.f32.mrb[0].mxu0
    %v605 = vadd.f32 %v493, %v604
    %v606 = vpop.f32.mrb[0].mxu0
    %607 = vmatprep.mubr.bf16.mxu0 0
    %608 = vmatmul.mubr.bf16.gmra.mrb[0].mxu0 %v442
    %v609 = vpop.f32.mrb[0].mxu0
    %v610 = vadd.f32 %v493, %v609
    %v611 = vpop.f32.mrb[0].mxu0
    %v612 = vpop.f32.mrb[0].mxu0
    %v613 = vadd.f32 %v493, %v612
    %v614 = vpop.f32.mrb[0].mxu0
    %615 = vmatprep.mubr.bf16.mxu0 0
    %616 = vmatmul.mubr.bf16.gmra.mrb[0].mxu0 %v443
    %v617 = vpop.f32.mrb[0].mxu0
    %v618 = vadd.f32 %v493, %v617
    %v619 = vpop.f32.mrb[0].mxu0
    %v620 = vpop.f32.mrb[0].mxu0
    %v621 = vadd.f32 %v493, %v620
    %v622 = vpop.f32.mrb[0].mxu0
    %623 = vmatprep.mubr.bf16.mxu0 0
    %624 = vmatmul.mubr.bf16.gmra.mrb[0].mxu0 %v444
    %v625 = vpop.f32.mrb[0].mxu0
    %v626 = vadd.f32 %v493, %v625
    %v627 = vpop.f32.mrb[0].mxu0
    %v628 = vpop.f32.mrb[0].mxu0
    %v629 = vadd.f32 %v493, %v628
    %v630 = vpop.f32.mrb[0].mxu0
    %631 = vmatprep.mubr.bf16.mxu0 0
    %632 = vmatmul.mubr.bf16.gmra.mrb[0].mxu0 %v445
    %v633 = vpop.f32.mrb[0].mxu0
    %v634 = vadd.f32 %v493, %v633
    %v635 = vpop.f32.mrb[0].mxu0
    %v636 = vpop.f32.mrb[0].mxu0
    %v637 = vadd.f32 %v493, %v636
    %v638 = vpop.f32.mrb[0].mxu0
    %639 = vdwg.mxu0
    %640 = vmatprep.subr.bf16.mxu0 0
    %641 = vmatpush1.bf16.msra.mxu0 %v527
    %642 = vmatprep.subr.bf16.mxu0 0
    %643 = vmatpush1.bf16.msra.mxu0 %v528
    %644 = vmatprep.subr.bf16.mxu0 0
    %645 = vmatpush1.bf16.msra.mxu0 %v529
    %646 = vmatprep.subr.bf16.mxu0 0
    %647 = vmatpush1.bf16.msra.mxu0 %v530
    %648 = vmatprep.subr.bf16.mxu0 0
    %649 = vmatpush1.bf16.msra.mxu0 %v531
    %650 = vmatprep.subr.bf16.mxu0 0
    %651 = vmatpush1.bf16.msra.mxu0 %v532
    %652 = vmatprep.subr.bf16.mxu0 0
    %653 = vmatpush1.bf16.msra.mxu0 %v533
    %654 = vmatprep.subr.bf16.mxu0 0
    %655 = vmatpush1.bf16.msra.mxu0 %v534
    %656 = vmatprep.subr.bf16.mxu0 0
    %657 = vmatpush1.bf16.msra.mxu0 0
    %658 = vmatprep.subr.bf16.mxu0 0
    %659 = vmatpush1.bf16.msra.mxu0 0
    %660 = vmatprep.subr.bf16.mxu0 0
    %661 = vmatpush1.bf16.msra.mxu0 0
    %662 = vmatprep.subr.bf16.mxu0 0
    %663 = vmatpush1.bf16.msra.mxu0 0
    %664 = vmatprep.subr.bf16.mxu0 0
    %665 = vmatpush1.bf16.msra.mxu0 0
    %666 = vmatprep.subr.bf16.mxu0 0
    %667 = vmatpush1.bf16.msra.mxu0 0
    %668 = vmatprep.subr.bf16.mxu0 0
    %669 = vmatpush1.bf16.msra.mxu0 0
    %670 = vmatprep.subr.bf16.mxu0 0
    %671 = vmatpush1.bf16.msra.mxu0 0
    %672 = vmatprep.mubr.bf16.mxu0 0
    %673 = vmatmul.mubr.bf16.gmra.mrb[0].mxu0 %v462
    %v674 = vpop.f32.mrb[0].mxu0
    %v675 = vadd.f32 %v493, %v674
    %v676 = vpop.f32.mrb[0].mxu0
    %v677 = vpop.f32.mrb[0].mxu0
    %v678 = vadd.f32 %v493, %v677
    %v679 = vpop.f32.mrb[0].mxu0
    %680 = vmatprep.mubr.bf16.mxu0 0
    %681 = vmatmul.mubr.bf16.gmra.mrb[0].mxu0 %v463
    %v682 = vpop.f32.mrb[0].mxu0
    %v683 = vadd.f32 %v493, %v682
    %v684 = vpop.f32.mrb[0].mxu0
    %v685 = vpop.f32.mrb[0].mxu0
    %v686 = vadd.f32 %v493, %v685
    %v687 = vpop.f32.mrb[0].mxu0
    %688 = vmatprep.mubr.bf16.mxu0 0
    %689 = vmatmul.mubr.bf16.gmra.mrb[0].mxu0 %v464
    %v690 = vpop.f32.mrb[0].mxu0
    %v691 = vadd.f32 %v493, %v690
    %v692 = vpop.f32.mrb[0].mxu0
    %v693 = vpop.f32.mrb[0].mxu0
    %v694 = vadd.f32 %v493, %v693
    %v695 = vpop.f32.mrb[0].mxu0
    %696 = vmatprep.mubr.bf16.mxu0 0
    %697 = vmatmul.mubr.bf16.gmra.mrb[0].mxu0 %v465
    %v698 = vpop.f32.mrb[0].mxu0
    %v699 = vadd.f32 %v493, %v698
    %v700 = vpop.f32.mrb[0].mxu0
    %v701 = vpop.f32.mrb[0].mxu0
    %v702 = vadd.f32 %v493, %v701
    %v703 = vpop.f32.mrb[0].mxu0
    %704 = vmatprep.mubr.bf16.mxu0 0
    %705 = vmatmul.mubr.bf16.gmra.mrb[0].mxu0 %v466
    %v706 = vpop.f32.mrb[0].mxu0
    %v707 = vadd.f32 %v493, %v706
    %v708 = vpop.f32.mrb[0].mxu0
    %v709 = vpop.f32.mrb[0].mxu0
    %v710 = vadd.f32 %v493, %v709
    %v711 = vpop.f32.mrb[0].mxu0
    %712 = vmatprep.mubr.bf16.mxu0 0
    %713 = vmatmul.mubr.bf16.gmra.mrb[0].mxu0 %v467
    %v714 = vpop.f32.mrb[0].mxu0
    %v715 = vadd.f32 %v493, %v714
    %v716 = vpop.f32.mrb[0].mxu0
    %v717 = vpop.f32.mrb[0].mxu0
    %v718 = vadd.f32 %v493, %v717
    %v719 = vpop.f32.mrb[0].mxu0
    %720 = vmatprep.mubr.bf16.mxu0 0
    %721 = vmatmul.mubr.bf16.gmra.mrb[0].mxu0 %v468
    %v722 = vpop.f32.mrb[0].mxu0
    %v723 = vadd.f32 %v493, %v722
    %v724 = vpop.f32.mrb[0].mxu0
    %v725 = vpop.f32.mrb[0].mxu0
    %v726 = vadd.f32 %v493, %v725
    %v727 = vpop.f32.mrb[0].mxu0
    %728 = vmatprep.mubr.bf16.mxu0 0
    %729 = vmatmul.mubr.bf16.gmra.mrb[0].mxu0 %v469
    %v730 = vpop.f32.mrb[0].mxu0
    %v731 = vadd.f32 %v493, %v730
    %v732 = vpop.f32.mrb[0].mxu0
    %v733 = vpop.f32.mrb[0].mxu0
    %v734 = vadd.f32 %v493, %v733
    %v735 = vpop.f32.mrb[0].mxu0
    %736 = vdwg.mxu0
    %v737 = vmax.f32 %v578, 0.0
    %v738 = vmax.f32 %v581, 0.0
    %v739 = vmax.f32 %v586, 0.0
    %v740 = vmax.f32 %v589, 0.0
    %v741 = vmax.f32 %v594, 0.0
    %v742 = vmax.f32 %v597, 0.0
    %v743 = vmax.f32 %v602, 0.0
    %v744 = vmax.f32 %v605, 0.0
    %v745 = vmax.f32 %v610, 0.0
    %v746 = vmax.f32 %v613, 0.0
    %v747 = vmax.f32 %v618, 0.0
    %v748 = vmax.f32 %v621, 0.0
    %v749 = vmax.f32 %v626, 0.0
    %v750 = vmax.f32 %v629, 0.0
    %v751 = vmax.f32 %v634, 0.0
    %v752 = vmax.f32 %v637, 0.0
    %v753 = vpack.c.bf16 %v738, %v737
    %v754 = vpack.c.bf16 %v740, %v739
    %v755 = vpack.c.bf16 %v742, %v741
    %v756 = vpack.c.bf16 %v744, %v743
    %v757 = vpack.c.bf16 %v746, %v745
    %v758 = vpack.c.bf16 %v748, %v747
    %v759 = vpack.c.bf16 %v750, %v749
    %v760 = vpack.c.bf16 %v752, %v751
    %v761 = vmax.f32 %v675, 0.0
    %v762 = vmax.f32 %v678, 0.0
    %v763 = vmax.f32 %v683, 0.0
    %v764 = vmax.f32 %v686, 0.0
    %v765 = vmax.f32 %v691, 0.0
    %v766 = vmax.f32 %v694, 0.0
    %v767 = vmax.f32 %v699, 0.0
    %v768 = vmax.f32 %v702, 0.0
    %v769 = vmax.f32 %v707, 0.0
    %v770 = vmax.f32 %v710, 0.0
    %v771 = vmax.f32 %v715, 0.0
    %v772 = vmax.f32 %v718, 0.0
    %v773 = vmax.f32 %v723, 0.0
    %v774 = vmax.f32 %v726, 0.0
    %v775 = vmax.f32 %v731, 0.0
    %v776 = vmax.f32 %v734, 0.0
    %v777 = vpack.c.bf16 %v762, %v761
    %v778 = vpack.c.bf16 %v764, %v763
    %v779 = vpack.c.bf16 %v766, %v765
    %v780 = vpack.c.bf16 %v768, %v767
    %v781 = vpack.c.bf16 %v770, %v769
    %v782 = vpack.c.bf16 %v772, %v771
    %v783 = vpack.c.bf16 %v774, %v773
    %v784 = vpack.c.bf16 %v776, %v775
    %s785 = scalar_lea.vmem [#allocation2], 128
    %v786 = vld [vmem:[%s785] sm:$0xf]
    %v787 = vld [vmem:[%s785 + $0x4] sm:$0xf]
    %v788 = vld [vmem:[%s785 + $0x8] sm:$0xf]
    %v789 = vld [vmem:[%s785 + $0xc] sm:$0xf]
    %v790 = vld [vmem:[%s785 + $0x10] sm:$0xf]
    %v791 = vld [vmem:[%s785 + $0x14] sm:$0xf]
    %v792 = vld [vmem:[%s785 + $0x18] sm:$0xf]
    %v793 = vld [vmem:[%s785 + $0x1c] sm:$0xf]
    %v794 = vld [vmem:[%s785 + $0x20] sm:$0xf]
    %v795 = vld [vmem:[%s785 + $0x24] sm:$0xf]
    %v796 = vld [vmem:[%s785 + $0x28] sm:$0xf]
    %v797 = vld [vmem:[%s785 + $0x2c] sm:$0xf]
    %v798 = vld [vmem:[%s785 + $0x30] sm:$0xf]
    %v799 = vld [vmem:[%s785 + $0x34] sm:$0xf]
    %v800 = vld [vmem:[%s785 + $0x38] sm:$0xf]
    %v801 = vld [vmem:[%s785 + $0x3c] sm:$0xf]
    %s802 = scalar_lea.vmem %s2, 2
    %v803 = vld [vmem:[%s802] sm:$0x1]
    %v805 = vlaneseq
    %v806 = vshrl.u32 %v805, 7
    %v807 = vsub.s32 0, %v806
    %v808 = vrot.slane %v803, %v807
    %v826 = vunpack.c.l.b16 %v786
    %v827 = vunpack.c.l.b16 %v787
    %v828 = vunpack.c.l.b16 %v788
    %v829 = vunpack.c.l.b16 %v789
    %v830 = vunpack.c.l.b16 %v790
    %v831 = vunpack.c.l.b16 %v791
    %v832 = vunpack.c.l.b16 %v792
    %v833 = vunpack.c.l.b16 %v793
    %v834 = vunpack.c.l.b16 %v794
    %v835 = vunpack.c.l.b16 %v795
    %v836 = vunpack.c.l.b16 %v796
    %v837 = vunpack.c.l.b16 %v797
    %v838 = vunpack.c.l.b16 %v798
    %v839 = vunpack.c.l.b16 %v799
    %v840 = vunpack.c.l.b16 %v800
    %v841 = vunpack.c.l.b16 %v801
    %v842 = vpack.c.b16 %v827, %v826
    %v843 = vpack.c.b16 %v829, %v828
    %v844 = vpack.c.b16 %v831, %v830
    %v845 = vpack.c.b16 %v833, %v832
    %v846 = vpack.c.b16 %v835, %v834
    %v847 = vpack.c.b16 %v837, %v836
    %v848 = vpack.c.b16 %v839, %v838
    %v849 = vpack.c.b16 %v841, %v840
    %858 = vmatprep.subr.bf16.mxu0 0
    %859 = vmatpush1.bf16.msra.mxu0 %v842
    %860 = vmatprep.subr.bf16.mxu0 0
    %861 = vmatpush1.bf16.msra.mxu0 %v843
    %862 = vmatprep.subr.bf16.mxu0 0
    %863 = vmatpush1.bf16.msra.mxu0 %v844
    %864 = vmatprep.subr.bf16.mxu0 0
    %865 = vmatpush1.bf16.msra.mxu0 %v845
    %866 = vmatprep.subr.bf16.mxu0 0
    %867 = vmatpush1.bf16.msra.mxu0 %v846
    %868 = vmatprep.subr.bf16.mxu0 0
    %869 = vmatpush1.bf16.msra.mxu0 %v847
    %870 = vmatprep.subr.bf16.mxu0 0
    %871 = vmatpush1.bf16.msra.mxu0 %v848
    %872 = vmatprep.subr.bf16.mxu0 0
    %873 = vmatpush1.bf16.msra.mxu0 %v849
    %874 = vmatprep.subr.bf16.mxu0 0
    %875 = vmatpush1.bf16.msra.mxu0 0
    %876 = vmatprep.subr.bf16.mxu0 0
    %877 = vmatpush1.bf16.msra.mxu0 0
    %878 = vmatprep.subr.bf16.mxu0 0
    %879 = vmatpush1.bf16.msra.mxu0 0
    %880 = vmatprep.subr.bf16.mxu0 0
    %881 = vmatpush1.bf16.msra.mxu0 0
    %882 = vmatprep.subr.bf16.mxu0 0
    %883 = vmatpush1.bf16.msra.mxu0 0
    %884 = vmatprep.subr.bf16.mxu0 0
    %885 = vmatpush1.bf16.msra.mxu0 0
    %886 = vmatprep.subr.bf16.mxu0 0
    %887 = vmatpush1.bf16.msra.mxu0 0
    %888 = vmatprep.subr.bf16.mxu0 0
    %889 = vmatpush1.bf16.msra.mxu0 0
    %890 = vmatprep.mubr.bf16.mxu0 0
    %891 = vmatmul.mubr.bf16.gmra.mrb[0].mxu0 %v753
    %v892 = vpop.f32.mrb[0].mxu0
    %v893 = vadd.f32 %v808, %v892
    %v894 = vpop.f32.mrb[0].mxu0
    %v895 = vpop.f32.mrb[0].mxu0
    %v896 = vadd.f32 %v808, %v895
    %v897 = vpop.f32.mrb[0].mxu0
    %898 = vmatprep.mubr.bf16.mxu0 0
    %899 = vmatmul.mubr.bf16.gmra.mrb[0].mxu0 %v754
    %v900 = vpop.f32.mrb[0].mxu0
    %v901 = vadd.f32 %v808, %v900
    %v902 = vpop.f32.mrb[0].mxu0
    %v903 = vpop.f32.mrb[0].mxu0
    %v904 = vadd.f32 %v808, %v903
    %v905 = vpop.f32.mrb[0].mxu0
    %906 = vmatprep.mubr.bf16.mxu0 0
    %907 = vmatmul.mubr.bf16.gmra.mrb[0].mxu0 %v755
    %v908 = vpop.f32.mrb[0].mxu0
    %v909 = vadd.f32 %v808, %v908
    %v910 = vpop.f32.mrb[0].mxu0
    %v911 = vpop.f32.mrb[0].mxu0
    %v912 = vadd.f32 %v808, %v911
    %v913 = vpop.f32.mrb[0].mxu0
    %914 = vmatprep.mubr.bf16.mxu0 0
    %915 = vmatmul.mubr.bf16.gmra.mrb[0].mxu0 %v756
    %v916 = vpop.f32.mrb[0].mxu0
    %v917 = vadd.f32 %v808, %v916
    %v918 = vpop.f32.mrb[0].mxu0
    %v919 = vpop.f32.mrb[0].mxu0
    %v920 = vadd.f32 %v808, %v919
    %v921 = vpop.f32.mrb[0].mxu0
    %922 = vmatprep.mubr.bf16.mxu0 0
    %923 = vmatmul.mubr.bf16.gmra.mrb[0].mxu0 %v757
    %v924 = vpop.f32.mrb[0].mxu0
    %v925 = vadd.f32 %v808, %v924
    %v926 = vpop.f32.mrb[0].mxu0
    %v927 = vpop.f32.mrb[0].mxu0
    %v928 = vadd.f32 %v808, %v927
    %v929 = vpop.f32.mrb[0].mxu0
    %930 = vmatprep.mubr.bf16.mxu0 0
    %931 = vmatmul.mubr.bf16.gmra.mrb[0].mxu0 %v758
    %v932 = vpop.f32.mrb[0].mxu0
    %v933 = vadd.f32 %v808, %v932
    %v934 = vpop.f32.mrb[0].mxu0
    %v935 = vpop.f32.mrb[0].mxu0
    %v936 = vadd.f32 %v808, %v935
    %v937 = vpop.f32.mrb[0].mxu0
    %938 = vmatprep.mubr.bf16.mxu0 0
    %939 = vmatmul.mubr.bf16.gmra.mrb[0].mxu0 %v759
    %v940 = vpop.f32.mrb[0].mxu0
    %v941 = vadd.f32 %v808, %v940
    %v942 = vpop.f32.mrb[0].mxu0
    %v943 = vpop.f32.mrb[0].mxu0
    %v944 = vadd.f32 %v808, %v943
    %v945 = vpop.f32.mrb[0].mxu0
    %946 = vmatprep.mubr.bf16.mxu0 0
    %947 = vmatmul.mubr.bf16.gmra.mrb[0].mxu0 %v760
    %v948 = vpop.f32.mrb[0].mxu0
    %v949 = vadd.f32 %v808, %v948
    %v950 = vpop.f32.mrb[0].mxu0
    %v951 = vpop.f32.mrb[0].mxu0
    %v952 = vadd.f32 %v808, %v951
    %v953 = vpop.f32.mrb[0].mxu0
    %954 = vdwg.mxu0
    %955 = vmatprep.subr.bf16.mxu0 0
    %956 = vmatpush1.bf16.msra.mxu0 %v842
    %957 = vmatprep.subr.bf16.mxu0 0
    %958 = vmatpush1.bf16.msra.mxu0 %v843
    %959 = vmatprep.subr.bf16.mxu0 0
    %960 = vmatpush1.bf16.msra.mxu0 %v844
    %961 = vmatprep.subr.bf16.mxu0 0
    %962 = vmatpush1.bf16.msra.mxu0 %v845
    %963 = vmatprep.subr.bf16.mxu0 0
    %964 = vmatpush1.bf16.msra.mxu0 %v846
    %965 = vmatprep.subr.bf16.mxu0 0
    %966 = vmatpush1.bf16.msra.mxu0 %v847
    %967 = vmatprep.subr.bf16.mxu0 0
    %968 = vmatpush1.bf16.msra.mxu0 %v848
    %969 = vmatprep.subr.bf16.mxu0 0
    %970 = vmatpush1.bf16.msra.mxu0 %v849
    %971 = vmatprep.subr.bf16.mxu0 0
    %972 = vmatpush1.bf16.msra.mxu0 0
    %973 = vmatprep.subr.bf16.mxu0 0
    %974 = vmatpush1.bf16.msra.mxu0 0
    %975 = vmatprep.subr.bf16.mxu0 0
    %976 = vmatpush1.bf16.msra.mxu0 0
    %977 = vmatprep.subr.bf16.mxu0 0
    %978 = vmatpush1.bf16.msra.mxu0 0
    %979 = vmatprep.subr.bf16.mxu0 0
    %980 = vmatpush1.bf16.msra.mxu0 0
    %981 = vmatprep.subr.bf16.mxu0 0
    %982 = vmatpush1.bf16.msra.mxu0 0
    %983 = vmatprep.subr.bf16.mxu0 0
    %984 = vmatpush1.bf16.msra.mxu0 0
    %985 = vmatprep.subr.bf16.mxu0 0
    %986 = vmatpush1.bf16.msra.mxu0 0
    %987 = vmatprep.mubr.bf16.mxu0 0
    %988 = vmatmul.mubr.bf16.gmra.mrb[0].mxu0 %v777
    %v989 = vpop.f32.mrb[0].mxu0
    %v990 = vadd.f32 %v808, %v989
    %v991 = vpop.f32.mrb[0].mxu0
    %v992 = vpop.f32.mrb[0].mxu0
    %v993 = vadd.f32 %v808, %v992
    %v994 = vpop.f32.mrb[0].mxu0
    %995 = vmatprep.mubr.bf16.mxu0 0
    %996 = vmatmul.mubr.bf16.gmra.mrb[0].mxu0 %v778
    %v997 = vpop.f32.mrb[0].mxu0
    %v998 = vadd.f32 %v808, %v997
    %v999 = vpop.f32.mrb[0].mxu0
    %v1000 = vpop.f32.mrb[0].mxu0
    %v1001 = vadd.f32 %v808, %v1000
    %v1002 = vpop.f32.mrb[0].mxu0
    %1003 = vmatprep.mubr.bf16.mxu0 0
    %1004 = vmatmul.mubr.bf16.gmra.mrb[0].mxu0 %v779
    %v1005 = vpop.f32.mrb[0].mxu0
    %v1006 = vadd.f32 %v808, %v1005
    %v1007 = vpop.f32.mrb[0].mxu0
    %v1008 = vpop.f32.mrb[0].mxu0
    %v1009 = vadd.f32 %v808, %v1008
    %v1010 = vpop.f32.mrb[0].mxu0
    %1011 = vmatprep.mubr.bf16.mxu0 0
    %1012 = vmatmul.mubr.bf16.gmra.mrb[0].mxu0 %v780
    %v1013 = vpop.f32.mrb[0].mxu0
    %v1014 = vadd.f32 %v808, %v1013
    %v1015 = vpop.f32.mrb[0].mxu0
    %v1016 = vpop.f32.mrb[0].mxu0
    %v1017 = vadd.f32 %v808, %v1016
    %v1018 = vpop.f32.mrb[0].mxu0
    %1019 = vmatprep.mubr.bf16.mxu0 0
    %1020 = vmatmul.mubr.bf16.gmra.mrb[0].mxu0 %v781
    %v1021 = vpop.f32.mrb[0].mxu0
    %v1022 = vadd.f32 %v808, %v1021
    %v1023 = vpop.f32.mrb[0].mxu0
    %v1024 = vpop.f32.mrb[0].mxu0
    %v1025 = vadd.f32 %v808, %v1024
    %v1026 = vpop.f32.mrb[0].mxu0
    %1027 = vmatprep.mubr.bf16.mxu0 0
    %1028 = vmatmul.mubr.bf16.gmra.mrb[0].mxu0 %v782
    %v1029 = vpop.f32.mrb[0].mxu0
    %v1030 = vadd.f32 %v808, %v1029
    %v1031 = vpop.f32.mrb[0].mxu0
    %v1032 = vpop.f32.mrb[0].mxu0
    %v1033 = vadd.f32 %v808, %v1032
    %v1034 = vpop.f32.mrb[0].mxu0
    %1035 = vmatprep.mubr.bf16.mxu0 0
    %1036 = vmatmul.mubr.bf16.gmra.mrb[0].mxu0 %v783
    %v1037 = vpop.f32.mrb[0].mxu0
    %v1038 = vadd.f32 %v808, %v1037
    %v1039 = vpop.f32.mrb[0].mxu0
    %v1040 = vpop.f32.mrb[0].mxu0
    %v1041 = vadd.f32 %v808, %v1040
    %v1042 = vpop.f32.mrb[0].mxu0
    %1043 = vmatprep.mubr.bf16.mxu0 0
    %1044 = vmatmul.mubr.bf16.gmra.mrb[0].mxu0 %v784
    %v1045 = vpop.f32.mrb[0].mxu0
    %v1046 = vadd.f32 %v808, %v1045
    %v1047 = vpop.f32.mrb[0].mxu0
    %v1048 = vpop.f32.mrb[0].mxu0
    %v1049 = vadd.f32 %v808, %v1048
    %v1050 = vpop.f32.mrb[0].mxu0
    %1051 = vdwg.mxu0
    %v1052 = vmax.f32 %v893, 0.0
    %v1053 = vmax.f32 %v896, 0.0
    %v1054 = vmax.f32 %v901, 0.0
    %v1055 = vmax.f32 %v904, 0.0
    %v1056 = vmax.f32 %v909, 0.0
    %v1057 = vmax.f32 %v912, 0.0
    %v1058 = vmax.f32 %v917, 0.0
    %v1059 = vmax.f32 %v920, 0.0
    %v1060 = vmax.f32 %v925, 0.0
    %v1061 = vmax.f32 %v928, 0.0
    %v1062 = vmax.f32 %v933, 0.0
    %v1063 = vmax.f32 %v936, 0.0
    %v1064 = vmax.f32 %v941, 0.0
    %v1065 = vmax.f32 %v944, 0.0
    %v1066 = vmax.f32 %v949, 0.0
    %v1067 = vmax.f32 %v952, 0.0
    %v1068 = vpack.c.bf16 %v1053, %v1052
    %v1069 = vpack.c.bf16 %v1055, %v1054
    %v1070 = vpack.c.bf16 %v1057, %v1056
    %v1071 = vpack.c.bf16 %v1059, %v1058
    %v1072 = vpack.c.bf16 %v1061, %v1060
    %v1073 = vpack.c.bf16 %v1063, %v1062
    %v1074 = vpack.c.bf16 %v1065, %v1064
    %v1075 = vpack.c.bf16 %v1067, %v1066
    %v1076 = vmax.f32 %v990, 0.0
    %v1077 = vmax.f32 %v993, 0.0
    %v1078 = vmax.f32 %v998, 0.0
    %v1079 = vmax.f32 %v1001, 0.0
    %v1080 = vmax.f32 %v1006, 0.0
    %v1081 = vmax.f32 %v1009, 0.0
    %v1082 = vmax.f32 %v1014, 0.0
    %v1083 = vmax.f32 %v1017, 0.0
    %v1084 = vmax.f32 %v1022, 0.0
    %v1085 = vmax.f32 %v1025, 0.0
    %v1086 = vmax.f32 %v1030, 0.0
    %v1087 = vmax.f32 %v1033, 0.0
    %v1088 = vmax.f32 %v1038, 0.0
    %v1089 = vmax.f32 %v1041, 0.0
    %v1090 = vmax.f32 %v1046, 0.0
    %v1091 = vmax.f32 %v1049, 0.0
    %v1092 = vpack.c.bf16 %v1077, %v1076
    %v1093 = vpack.c.bf16 %v1079, %v1078
    %v1094 = vpack.c.bf16 %v1081, %v1080
    %v1095 = vpack.c.bf16 %v1083, %v1082
    %v1096 = vpack.c.bf16 %v1085, %v1084
    %v1097 = vpack.c.bf16 %v1087, %v1086
    %v1098 = vpack.c.bf16 %v1089, %v1088
    %v1099 = vpack.c.bf16 %v1091, %v1090
    %s1100 = scalar_lea.vmem [#allocation2], 192
    %v1101 = vld [vmem:[%s1100] sm:$0xf]
    %v1102 = vld [vmem:[%s1100 + $0x4] sm:$0xf]
    %v1103 = vld [vmem:[%s1100 + $0x8] sm:$0xf]
    %v1104 = vld [vmem:[%s1100 + $0xc] sm:$0xf]
    %v1105 = vld [vmem:[%s1100 + $0x10] sm:$0xf]
    %v1106 = vld [vmem:[%s1100 + $0x14] sm:$0xf]
    %v1107 = vld [vmem:[%s1100 + $0x18] sm:$0xf]
    %v1108 = vld [vmem:[%s1100 + $0x1c] sm:$0xf]
    %v1109 = vld [vmem:[%s1100 + $0x20] sm:$0xf]
    %v1110 = vld [vmem:[%s1100 + $0x24] sm:$0xf]
    %v1111 = vld [vmem:[%s1100 + $0x28] sm:$0xf]
    %v1112 = vld [vmem:[%s1100 + $0x2c] sm:$0xf]
    %v1113 = vld [vmem:[%s1100 + $0x30] sm:$0xf]
    %v1114 = vld [vmem:[%s1100 + $0x34] sm:$0xf]
    %v1115 = vld [vmem:[%s1100 + $0x38] sm:$0xf]
    %v1116 = vld [vmem:[%s1100 + $0x3c] sm:$0xf]
    %s1117 = scalar_lea.vmem %s2, 3
    %v1118 = vld [vmem:[%s1117] sm:$0x1]
    %v1120 = vlaneseq
    %v1121 = vshrl.u32 %v1120, 7
    %v1122 = vsub.s32 0, %v1121
    %v1123 = vrot.slane %v1118, %v1122
    %v1141 = vunpack.c.l.b16 %v1101
    %v1142 = vunpack.c.l.b16 %v1102
    %v1143 = vunpack.c.l.b16 %v1103
    %v1144 = vunpack.c.l.b16 %v1104
    %v1145 = vunpack.c.l.b16 %v1105
    %v1146 = vunpack.c.l.b16 %v1106
    %v1147 = vunpack.c.l.b16 %v1107
    %v1148 = vunpack.c.l.b16 %v1108
    %v1149 = vunpack.c.l.b16 %v1109
    %v1150 = vunpack.c.l.b16 %v1110
    %v1151 = vunpack.c.l.b16 %v1111
    %v1152 = vunpack.c.l.b16 %v1112
    %v1153 = vunpack.c.l.b16 %v1113
    %v1154 = vunpack.c.l.b16 %v1114
    %v1155 = vunpack.c.l.b16 %v1115
    %v1156 = vunpack.c.l.b16 %v1116
    %v1157 = vpack.c.b16 %v1142, %v1141
    %v1158 = vpack.c.b16 %v1144, %v1143
    %v1159 = vpack.c.b16 %v1146, %v1145
    %v1160 = vpack.c.b16 %v1148, %v1147
    %v1161 = vpack.c.b16 %v1150, %v1149
    %v1162 = vpack.c.b16 %v1152, %v1151
    %v1163 = vpack.c.b16 %v1154, %v1153
    %v1164 = vpack.c.b16 %v1156, %v1155
    %1173 = vmatprep.subr.bf16.mxu0 0
    %1174 = vmatpush1.bf16.msra.mxu0 %v1157
    %1175 = vmatprep.subr.bf16.mxu0 0
    %1176 = vmatpush1.bf16.msra.mxu0 %v1158
    %1177 = vmatprep.subr.bf16.mxu0 0
    %1178 = vmatpush1.bf16.msra.mxu0 %v1159
    %1179 = vmatprep.subr.bf16.mxu0 0
    %1180 = vmatpush1.bf16.msra.mxu0 %v1160
    %1181 = vmatprep.subr.bf16.mxu0 0
    %1182 = vmatpush1.bf16.msra.mxu0 %v1161
    %1183 = vmatprep.subr.bf16.mxu0 0
    %1184 = vmatpush1.bf16.msra.mxu0 %v1162
    %1185 = vmatprep.subr.bf16.mxu0 0
    %1186 = vmatpush1.bf16.msra.mxu0 %v1163
    %1187 = vmatprep.subr.bf16.mxu0 0
    %1188 = vmatpush1.bf16.msra.mxu0 %v1164
    %1189 = vmatprep.subr.bf16.mxu0 0
    %1190 = vmatpush1.bf16.msra.mxu0 0
    %1191 = vmatprep.subr.bf16.mxu0 0
    %1192 = vmatpush1.bf16.msra.mxu0 0
    %1193 = vmatprep.subr.bf16.mxu0 0
    %1194 = vmatpush1.bf16.msra.mxu0 0
    %1195 = vmatprep.subr.bf16.mxu0 0
    %1196 = vmatpush1.bf16.msra.mxu0 0
    %1197 = vmatprep.subr.bf16.mxu0 0
    %1198 = vmatpush1.bf16.msra.mxu0 0
    %1199 = vmatprep.subr.bf16.mxu0 0
    %1200 = vmatpush1.bf16.msra.mxu0 0
    %1201 = vmatprep.subr.bf16.mxu0 0
    %1202 = vmatpush1.bf16.msra.mxu0 0
    %1203 = vmatprep.subr.bf16.mxu0 0
    %1204 = vmatpush1.bf16.msra.mxu0 0
    %1205 = vmatprep.mubr.bf16.mxu0 0
    %1206 = vmatmul.mubr.bf16.gmra.mrb[0].mxu0 %v1068
    %v1207 = vpop.f32.mrb[0].mxu0
    %v1208 = vadd.f32 %v1123, %v1207
    %v1209 = vpop.f32.mrb[0].mxu0
    %v1210 = vpop.f32.mrb[0].mxu0
    %v1211 = vadd.f32 %v1123, %v1210
    %v1212 = vpop.f32.mrb[0].mxu0
    %1213 = vmatprep.mubr.bf16.mxu0 0
    %1214 = vmatmul.mubr.bf16.gmra.mrb[0].mxu0 %v1069
    %v1215 = vpop.f32.mrb[0].mxu0
    %v1216 = vadd.f32 %v1123, %v1215
    %v1217 = vpop.f32.mrb[0].mxu0
    %v1218 = vpop.f32.mrb[0].mxu0
    %v1219 = vadd.f32 %v1123, %v1218
    %v1220 = vpop.f32.mrb[0].mxu0
    %1221 = vmatprep.mubr.bf16.mxu0 0
    %1222 = vmatmul.mubr.bf16.gmra.mrb[0].mxu0 %v1070
    %v1223 = vpop.f32.mrb[0].mxu0
    %v1224 = vadd.f32 %v1123, %v1223
    %v1225 = vpop.f32.mrb[0].mxu0
    %v1226 = vpop.f32.mrb[0].mxu0
    %v1227 = vadd.f32 %v1123, %v1226
    %v1228 = vpop.f32.mrb[0].mxu0
    %1229 = vmatprep.mubr.bf16.mxu0 0
    %1230 = vmatmul.mubr.bf16.gmra.mrb[0].mxu0 %v1071
    %v1231 = vpop.f32.mrb[0].mxu0
    %v1232 = vadd.f32 %v1123, %v1231
    %v1233 = vpop.f32.mrb[0].mxu0
    %v1234 = vpop.f32.mrb[0].mxu0
    %v1235 = vadd.f32 %v1123, %v1234
    %v1236 = vpop.f32.mrb[0].mxu0
    %1237 = vmatprep.mubr.bf16.mxu0 0
    %1238 = vmatmul.mubr.bf16.gmra.mrb[0].mxu0 %v1072
    %v1239 = vpop.f32.mrb[0].mxu0
    %v1240 = vadd.f32 %v1123, %v1239
    %v1241 = vpop.f32.mrb[0].mxu0
    %v1242 = vpop.f32.mrb[0].mxu0
    %v1243 = vadd.f32 %v1123, %v1242
    %v1244 = vpop.f32.mrb[0].mxu0
    %1245 = vmatprep.mubr.bf16.mxu0 0
    %1246 = vmatmul.mubr.bf16.gmra.mrb[0].mxu0 %v1073
    %v1247 = vpop.f32.mrb[0].mxu0
    %v1248 = vadd.f32 %v1123, %v1247
    %v1249 = vpop.f32.mrb[0].mxu0
    %v1250 = vpop.f32.mrb[0].mxu0
    %v1251 = vadd.f32 %v1123, %v1250
    %v1252 = vpop.f32.mrb[0].mxu0
    %1253 = vmatprep.mubr.bf16.mxu0 0
    %1254 = vmatmul.mubr.bf16.gmra.mrb[0].mxu0 %v1074
    %v1255 = vpop.f32.mrb[0].mxu0
    %v1256 = vadd.f32 %v1123, %v1255
    %v1257 = vpop.f32.mrb[0].mxu0
    %v1258 = vpop.f32.mrb[0].mxu0
    %v1259 = vadd.f32 %v1123, %v1258
    %v1260 = vpop.f32.mrb[0].mxu0
    %1261 = vmatprep.mubr.bf16.mxu0 0
    %1262 = vmatmul.mubr.bf16.gmra.mrb[0].mxu0 %v1075
    %v1263 = vpop.f32.mrb[0].mxu0
    %v1264 = vadd.f32 %v1123, %v1263
    %v1265 = vpop.f32.mrb[0].mxu0
    %v1266 = vpop.f32.mrb[0].mxu0
    %v1267 = vadd.f32 %v1123, %v1266
    %v1268 = vpop.f32.mrb[0].mxu0
    %1269 = vdwg.mxu0
    %1270 = vmatprep.subr.bf16.mxu0 0
    %1271 = vmatpush1.bf16.msra.mxu0 %v1157
    %1272 = vmatprep.subr.bf16.mxu0 0
    %1273 = vmatpush1.bf16.msra.mxu0 %v1158
    %1274 = vmatprep.subr.bf16.mxu0 0
    %1275 = vmatpush1.bf16.msra.mxu0 %v1159
    %1276 = vmatprep.subr.bf16.mxu0 0
    %1277 = vmatpush1.bf16.msra.mxu0 %v1160
    %1278 = vmatprep.subr.bf16.mxu0 0
    %1279 = vmatpush1.bf16.msra.mxu0 %v1161
    %1280 = vmatprep.subr.bf16.mxu0 0
    %1281 = vmatpush1.bf16.msra.mxu0 %v1162
    %1282 = vmatprep.subr.bf16.mxu0 0
    %1283 = vmatpush1.bf16.msra.mxu0 %v1163
    %1284 = vmatprep.subr.bf16.mxu0 0
    %1285 = vmatpush1.bf16.msra.mxu0 %v1164
    %1286 = vmatprep.subr.bf16.mxu0 0
    %1287 = vmatpush1.bf16.msra.mxu0 0
    %1288 = vmatprep.subr.bf16.mxu0 0
    %1289 = vmatpush1.bf16.msra.mxu0 0
    %1290 = vmatprep.subr.bf16.mxu0 0
    %1291 = vmatpush1.bf16.msra.mxu0 0
    %1292 = vmatprep.subr.bf16.mxu0 0
    %1293 = vmatpush1.bf16.msra.mxu0 0
    %1294 = vmatprep.subr.bf16.mxu0 0
    %1295 = vmatpush1.bf16.msra.mxu0 0
    %1296 = vmatprep.subr.bf16.mxu0 0
    %1297 = vmatpush1.bf16.msra.mxu0 0
    %1298 = vmatprep.subr.bf16.mxu0 0
    %1299 = vmatpush1.bf16.msra.mxu0 0
    %1300 = vmatprep.subr.bf16.mxu0 0
    %1301 = vmatpush1.bf16.msra.mxu0 0
    %1302 = vmatprep.mubr.bf16.mxu0 0
    %1303 = vmatmul.mubr.bf16.gmra.mrb[0].mxu0 %v1092
    %v1304 = vpop.f32.mrb[0].mxu0
    %v1305 = vadd.f32 %v1123, %v1304
    %v1306 = vpop.f32.mrb[0].mxu0
    %v1307 = vpop.f32.mrb[0].mxu0
    %v1308 = vadd.f32 %v1123, %v1307
    %v1309 = vpop.f32.mrb[0].mxu0
    %1310 = vmatprep.mubr.bf16.mxu0 0
    %1311 = vmatmul.mubr.bf16.gmra.mrb[0].mxu0 %v1093
    %v1312 = vpop.f32.mrb[0].mxu0
    %v1313 = vadd.f32 %v1123, %v1312
    %v1314 = vpop.f32.mrb[0].mxu0
    %v1315 = vpop.f32.mrb[0].mxu0
    %v1316 = vadd.f32 %v1123, %v1315
    %v1317 = vpop.f32.mrb[0].mxu0
    %1318 = vmatprep.mubr.bf16.mxu0 0
    %1319 = vmatmul.mubr.bf16.gmra.mrb[0].mxu0 %v1094
    %v1320 = vpop.f32.mrb[0].mxu0
    %v1321 = vadd.f32 %v1123, %v1320
    %v1322 = vpop.f32.mrb[0].mxu0
    %v1323 = vpop.f32.mrb[0].mxu0
    %v1324 = vadd.f32 %v1123, %v1323
    %v1325 = vpop.f32.mrb[0].mxu0
    %1326 = vmatprep.mubr.bf16.mxu0 0
    %1327 = vmatmul.mubr.bf16.gmra.mrb[0].mxu0 %v1095
    %v1328 = vpop.f32.mrb[0].mxu0
    %v1329 = vadd.f32 %v1123, %v1328
    %v1330 = vpop.f32.mrb[0].mxu0
    %v1331 = vpop.f32.mrb[0].mxu0
    %v1332 = vadd.f32 %v1123, %v1331
    %v1333 = vpop.f32.mrb[0].mxu0
    %1334 = vmatprep.mubr.bf16.mxu0 0
    %1335 = vmatmul.mubr.bf16.gmra.mrb[0].mxu0 %v1096
    %v1336 = vpop.f32.mrb[0].mxu0
    %v1337 = vadd.f32 %v1123, %v1336
    %v1338 = vpop.f32.mrb[0].mxu0
    %v1339 = vpop.f32.mrb[0].mxu0
    %v1340 = vadd.f32 %v1123, %v1339
    %v1341 = vpop.f32.mrb[0].mxu0
    %1342 = vmatprep.mubr.bf16.mxu0 0
    %1343 = vmatmul.mubr.bf16.gmra.mrb[0].mxu0 %v1097
    %v1344 = vpop.f32.mrb[0].mxu0
    %v1345 = vadd.f32 %v1123, %v1344
    %v1346 = vpop.f32.mrb[0].mxu0
    %v1347 = vpop.f32.mrb[0].mxu0
    %v1348 = vadd.f32 %v1123, %v1347
    %v1349 = vpop.f32.mrb[0].mxu0
    %1350 = vmatprep.mubr.bf16.mxu0 0
    %1351 = vmatmul.mubr.bf16.gmra.mrb[0].mxu0 %v1098
    %v1352 = vpop.f32.mrb[0].mxu0
    %v1353 = vadd.f32 %v1123, %v1352
    %v1354 = vpop.f32.mrb[0].mxu0
    %v1355 = vpop.f32.mrb[0].mxu0
    %v1356 = vadd.f32 %v1123, %v1355
    %v1357 = vpop.f32.mrb[0].mxu0
    %1358 = vmatprep.mubr.bf16.mxu0 0
    %1359 = vmatmul.mubr.bf16.gmra.mrb[0].mxu0 %v1099
    %v1360 = vpop.f32.mrb[0].mxu0
    %v1361 = vadd.f32 %v1123, %v1360
    %v1362 = vpop.f32.mrb[0].mxu0
    %v1363 = vpop.f32.mrb[0].mxu0
    %v1364 = vadd.f32 %v1123, %v1363
    %v1365 = vpop.f32.mrb[0].mxu0
    %1366 = vdwg.mxu0
    %v1367 = vmax.f32 %v1208, 0.0
    %v1368 = vmax.f32 %v1211, 0.0
    %v1369 = vmax.f32 %v1216, 0.0
    %v1370 = vmax.f32 %v1219, 0.0
    %v1371 = vmax.f32 %v1224, 0.0
    %v1372 = vmax.f32 %v1227, 0.0
    %v1373 = vmax.f32 %v1232, 0.0
    %v1374 = vmax.f32 %v1235, 0.0
    %v1375 = vmax.f32 %v1240, 0.0
    %v1376 = vmax.f32 %v1243, 0.0
    %v1377 = vmax.f32 %v1248, 0.0
    %v1378 = vmax.f32 %v1251, 0.0
    %v1379 = vmax.f32 %v1256, 0.0
    %v1380 = vmax.f32 %v1259, 0.0
    %v1381 = vmax.f32 %v1264, 0.0
    %v1382 = vmax.f32 %v1267, 0.0
    %v1383 = vpack.c.bf16 %v1368, %v1367
    %v1384 = vpack.c.bf16 %v1370, %v1369
    %v1385 = vpack.c.bf16 %v1372, %v1371
    %v1386 = vpack.c.bf16 %v1374, %v1373
    %v1387 = vpack.c.bf16 %v1376, %v1375
    %v1388 = vpack.c.bf16 %v1378, %v1377
    %v1389 = vpack.c.bf16 %v1380, %v1379
    %v1390 = vpack.c.bf16 %v1382, %v1381
    %v1391 = vmax.f32 %v1305, 0.0
    %v1392 = vmax.f32 %v1308, 0.0
    %v1393 = vmax.f32 %v1313, 0.0
    %v1394 = vmax.f32 %v1316, 0.0
    %v1395 = vmax.f32 %v1321, 0.0
    %v1396 = vmax.f32 %v1324, 0.0
    %v1397 = vmax.f32 %v1329, 0.0
    %v1398 = vmax.f32 %v1332, 0.0
    %v1399 = vmax.f32 %v1337, 0.0
    %v1400 = vmax.f32 %v1340, 0.0
    %v1401 = vmax.f32 %v1345, 0.0
    %v1402 = vmax.f32 %v1348, 0.0
    %v1403 = vmax.f32 %v1353, 0.0
    %v1404 = vmax.f32 %v1356, 0.0
    %v1405 = vmax.f32 %v1361, 0.0
    %v1406 = vmax.f32 %v1364, 0.0
    %v1407 = vpack.c.bf16 %v1392, %v1391
    %v1408 = vpack.c.bf16 %v1394, %v1393
    %v1409 = vpack.c.bf16 %v1396, %v1395
    %v1410 = vpack.c.bf16 %v1398, %v1397
    %v1411 = vpack.c.bf16 %v1400, %v1399
    %v1412 = vpack.c.bf16 %v1402, %v1401
    %v1413 = vpack.c.bf16 %v1404, %v1403
    %v1414 = vpack.c.bf16 %v1406, %v1405
    %s1415 = scalar_lea.vmem [#allocation2], 256
    %v1416 = vld [vmem:[%s1415] sm:$0xf]
    %v1417 = vld [vmem:[%s1415 + $0x4] sm:$0xf]
    %v1418 = vld [vmem:[%s1415 + $0x8] sm:$0xf]
    %v1419 = vld [vmem:[%s1415 + $0xc] sm:$0xf]
    %v1420 = vld [vmem:[%s1415 + $0x10] sm:$0xf]
    %v1421 = vld [vmem:[%s1415 + $0x14] sm:$0xf]
    %v1422 = vld [vmem:[%s1415 + $0x18] sm:$0xf]
    %v1423 = vld [vmem:[%s1415 + $0x1c] sm:$0xf]
    %v1424 = vld [vmem:[%s1415 + $0x20] sm:$0xf]
    %v1425 = vld [vmem:[%s1415 + $0x24] sm:$0xf]
    %v1426 = vld [vmem:[%s1415 + $0x28] sm:$0xf]
    %v1427 = vld [vmem:[%s1415 + $0x2c] sm:$0xf]
    %v1428 = vld [vmem:[%s1415 + $0x30] sm:$0xf]
    %v1429 = vld [vmem:[%s1415 + $0x34] sm:$0xf]
    %v1430 = vld [vmem:[%s1415 + $0x38] sm:$0xf]
    %v1431 = vld [vmem:[%s1415 + $0x3c] sm:$0xf]
    %s1432 = scalar_lea.vmem %s2, 4
    %v1433 = vld [vmem:[%s1432] sm:$0x1]
    %v1435 = vlaneseq
    %v1436 = vshrl.u32 %v1435, 7
    %v1437 = vsub.s32 0, %v1436
    %v1438 = vrot.slane %v1433, %v1437
    %v1456 = vunpack.c.l.b16 %v1416
    %v1457 = vunpack.c.l.b16 %v1417
    %v1458 = vunpack.c.l.b16 %v1418
    %v1459 = vunpack.c.l.b16 %v1419
    %v1460 = vunpack.c.l.b16 %v1420
    %v1461 = vunpack.c.l.b16 %v1421
    %v1462 = vunpack.c.l.b16 %v1422
    %v1463 = vunpack.c.l.b16 %v1423
    %v1464 = vunpack.c.l.b16 %v1424
    %v1465 = vunpack.c.l.b16 %v1425
    %v1466 = vunpack.c.l.b16 %v1426
    %v1467 = vunpack.c.l.b16 %v1427
    %v1468 = vunpack.c.l.b16 %v1428
    %v1469 = vunpack.c.l.b16 %v1429
    %v1470 = vunpack.c.l.b16 %v1430
    %v1471 = vunpack.c.l.b16 %v1431
    %v1472 = vpack.c.b16 %v1457, %v1456
    %v1473 = vpack.c.b16 %v1459, %v1458
    %v1474 = vpack.c.b16 %v1461, %v1460
    %v1475 = vpack.c.b16 %v1463, %v1462
    %v1476 = vpack.c.b16 %v1465, %v1464
    %v1477 = vpack.c.b16 %v1467, %v1466
    %v1478 = vpack.c.b16 %v1469, %v1468
    %v1479 = vpack.c.b16 %v1471, %v1470
    %1488 = vmatprep.subr.bf16.mxu0 0
    %1489 = vmatpush1.bf16.msra.mxu0 %v1472
    %1490 = vmatprep.subr.bf16.mxu0 0
    %1491 = vmatpush1.bf16.msra.mxu0 %v1473
    %1492 = vmatprep.subr.bf16.mxu0 0
    %1493 = vmatpush1.bf16.msra.mxu0 %v1474
    %1494 = vmatprep.subr.bf16.mxu0 0
    %1495 = vmatpush1.bf16.msra.mxu0 %v1475
    %1496 = vmatprep.subr.bf16.mxu0 0
    %1497 = vmatpush1.bf16.msra.mxu0 %v1476
    %1498 = vmatprep.subr.bf16.mxu0 0
    %1499 = vmatpush1.bf16.msra.mxu0 %v1477
    %1500 = vmatprep.subr.bf16.mxu0 0
    %1501 = vmatpush1.bf16.msra.mxu0 %v1478
    %1502 = vmatprep.subr.bf16.mxu0 0
    %1503 = vmatpush1.bf16.msra.mxu0 %v1479
    %1504 = vmatprep.subr.bf16.mxu0 0
    %1505 = vmatpush1.bf16.msra.mxu0 0
    %1506 = vmatprep.subr.bf16.mxu0 0
    %1507 = vmatpush1.bf16.msra.mxu0 0
    %1508 = vmatprep.subr.bf16.mxu0 0
    %1509 = vmatpush1.bf16.msra.mxu0 0
    %1510 = vmatprep.subr.bf16.mxu0 0
    %1511 = vmatpush1.bf16.msra.mxu0 0
    %1512 = vmatprep.subr.bf16.mxu0 0
    %1513 = vmatpush1.bf16.msra.mxu0 0
    %1514 = vmatprep.subr.bf16.mxu0 0
    %1515 = vmatpush1.bf16.msra.mxu0 0
    %1516 = vmatprep.subr.bf16.mxu0 0
    %1517 = vmatpush1.bf16.msra.mxu0 0
    %1518 = vmatprep.subr.bf16.mxu0 0
    %1519 = vmatpush1.bf16.msra.mxu0 0
    %1520 = vmatprep.mubr.bf16.mxu0 0
    %1521 = vmatmul.mubr.bf16.gmra.mrb[0].mxu0 %v1383
    %v1522 = vpop.f32.mrb[0].mxu0
    %v1523 = vadd.f32 %v1438, %v1522
    %v1524 = vpop.f32.mrb[0].mxu0
    %v1525 = vpop.f32.mrb[0].mxu0
    %v1526 = vadd.f32 %v1438, %v1525
    %v1527 = vpop.f32.mrb[0].mxu0
    %1528 = vmatprep.mubr.bf16.mxu0 0
    %1529 = vmatmul.mubr.bf16.gmra.mrb[0].mxu0 %v1384
    %v1530 = vpop.f32.mrb[0].mxu0
    %v1531 = vadd.f32 %v1438, %v1530
    %v1532 = vpop.f32.mrb[0].mxu0
    %v1533 = vpop.f32.mrb[0].mxu0
    %v1534 = vadd.f32 %v1438, %v1533
    %v1535 = vpop.f32.mrb[0].mxu0
    %1536 = vmatprep.mubr.bf16.mxu0 0
    %1537 = vmatmul.mubr.bf16.gmra.mrb[0].mxu0 %v1385
    %v1538 = vpop.f32.mrb[0].mxu0
    %v1539 = vadd.f32 %v1438, %v1538
    %v1540 = vpop.f32.mrb[0].mxu0
    %v1541 = vpop.f32.mrb[0].mxu0
    %v1542 = vadd.f32 %v1438, %v1541
    %v1543 = vpop.f32.mrb[0].mxu0
    %1544 = vmatprep.mubr.bf16.mxu0 0
    %1545 = vmatmul.mubr.bf16.gmra.mrb[0].mxu0 %v1386
    %v1546 = vpop.f32.mrb[0].mxu0
    %v1547 = vadd.f32 %v1438, %v1546
    %v1548 = vpop.f32.mrb[0].mxu0
    %v1549 = vpop.f32.mrb[0].mxu0
    %v1550 = vadd.f32 %v1438, %v1549
    %v1551 = vpop.f32.mrb[0].mxu0
    %1552 = vmatprep.mubr.bf16.mxu0 0
    %1553 = vmatmul.mubr.bf16.gmra.mrb[0].mxu0 %v1387
    %v1554 = vpop.f32.mrb[0].mxu0
    %v1555 = vadd.f32 %v1438, %v1554
    %v1556 = vpop.f32.mrb[0].mxu0
    %v1557 = vpop.f32.mrb[0].mxu0
    %v1558 = vadd.f32 %v1438, %v1557
    %v1559 = vpop.f32.mrb[0].mxu0
    %1560 = vmatprep.mubr.bf16.mxu0 0
    %1561 = vmatmul.mubr.bf16.gmra.mrb[0].mxu0 %v1388
    %v1562 = vpop.f32.mrb[0].mxu0
    %v1563 = vadd.f32 %v1438, %v1562
    %v1564 = vpop.f32.mrb[0].mxu0
    %v1565 = vpop.f32.mrb[0].mxu0
    %v1566 = vadd.f32 %v1438, %v1565
    %v1567 = vpop.f32.mrb[0].mxu0
    %1568 = vmatprep.mubr.bf16.mxu0 0
    %1569 = vmatmul.mubr.bf16.gmra.mrb[0].mxu0 %v1389
    %v1570 = vpop.f32.mrb[0].mxu0
    %v1571 = vadd.f32 %v1438, %v1570
    %v1572 = vpop.f32.mrb[0].mxu0
    %v1573 = vpop.f32.mrb[0].mxu0
    %v1574 = vadd.f32 %v1438, %v1573
    %v1575 = vpop.f32.mrb[0].mxu0
    %1576 = vmatprep.mubr.bf16.mxu0 0
    %1577 = vmatmul.mubr.bf16.gmra.mrb[0].mxu0 %v1390
    %v1578 = vpop.f32.mrb[0].mxu0
    %v1579 = vadd.f32 %v1438, %v1578
    %v1580 = vpop.f32.mrb[0].mxu0
    %v1581 = vpop.f32.mrb[0].mxu0
    %v1582 = vadd.f32 %v1438, %v1581
    %v1583 = vpop.f32.mrb[0].mxu0
    %1584 = vdwg.mxu0
    %1585 = vmatprep.subr.bf16.mxu0 0
    %1586 = vmatpush1.bf16.msra.mxu0 %v1472
    %1587 = vmatprep.subr.bf16.mxu0 0
    %1588 = vmatpush1.bf16.msra.mxu0 %v1473
    %1589 = vmatprep.subr.bf16.mxu0 0
    %1590 = vmatpush1.bf16.msra.mxu0 %v1474
    %1591 = vmatprep.subr.bf16.mxu0 0
    %1592 = vmatpush1.bf16.msra.mxu0 %v1475
    %1593 = vmatprep.subr.bf16.mxu0 0
    %1594 = vmatpush1.bf16.msra.mxu0 %v1476
    %1595 = vmatprep.subr.bf16.mxu0 0
    %1596 = vmatpush1.bf16.msra.mxu0 %v1477
    %1597 = vmatprep.subr.bf16.mxu0 0
    %1598 = vmatpush1.bf16.msra.mxu0 %v1478
    %1599 = vmatprep.subr.bf16.mxu0 0
    %1600 = vmatpush1.bf16.msra.mxu0 %v1479
    %1601 = vmatprep.subr.bf16.mxu0 0
    %1602 = vmatpush1.bf16.msra.mxu0 0
    %1603 = vmatprep.subr.bf16.mxu0 0
    %1604 = vmatpush1.bf16.msra.mxu0 0
    %1605 = vmatprep.subr.bf16.mxu0 0
    %1606 = vmatpush1.bf16.msra.mxu0 0
    %1607 = vmatprep.subr.bf16.mxu0 0
    %1608 = vmatpush1.bf16.msra.mxu0 0
    %1609 = vmatprep.subr.bf16.mxu0 0
    %1610 = vmatpush1.bf16.msra.mxu0 0
    %1611 = vmatprep.subr.bf16.mxu0 0
    %1612 = vmatpush1.bf16.msra.mxu0 0
    %1613 = vmatprep.subr.bf16.mxu0 0
    %1614 = vmatpush1.bf16.msra.mxu0 0
    %1615 = vmatprep.subr.bf16.mxu0 0
    %1616 = vmatpush1.bf16.msra.mxu0 0
    %1617 = vmatprep.mubr.bf16.mxu0 0
    %1618 = vmatmul.mubr.bf16.gmra.mrb[0].mxu0 %v1407
    %v1619 = vpop.f32.mrb[0].mxu0
    %v1620 = vadd.f32 %v1438, %v1619
    %v1621 = vpop.f32.mrb[0].mxu0
    %v1622 = vpop.f32.mrb[0].mxu0
    %v1623 = vadd.f32 %v1438, %v1622
    %v1624 = vpop.f32.mrb[0].mxu0
    %1625 = vmatprep.mubr.bf16.mxu0 0
    %1626 = vmatmul.mubr.bf16.gmra.mrb[0].mxu0 %v1408
    %v1627 = vpop.f32.mrb[0].mxu0
    %v1628 = vadd.f32 %v1438, %v1627
    %v1629 = vpop.f32.mrb[0].mxu0
    %v1630 = vpop.f32.mrb[0].mxu0
    %v1631 = vadd.f32 %v1438, %v1630
    %v1632 = vpop.f32.mrb[0].mxu0
    %1633 = vmatprep.mubr.bf16.mxu0 0
    %1634 = vmatmul.mubr.bf16.gmra.mrb[0].mxu0 %v1409
    %v1635 = vpop.f32.mrb[0].mxu0
    %v1636 = vadd.f32 %v1438, %v1635
    %v1637 = vpop.f32.mrb[0].mxu0
    %v1638 = vpop.f32.mrb[0].mxu0
    %v1639 = vadd.f32 %v1438, %v1638
    %v1640 = vpop.f32.mrb[0].mxu0
    %1641 = vmatprep.mubr.bf16.mxu0 0
    %1642 = vmatmul.mubr.bf16.gmra.mrb[0].mxu0 %v1410
    %v1643 = vpop.f32.mrb[0].mxu0
    %v1644 = vadd.f32 %v1438, %v1643
    %v1645 = vpop.f32.mrb[0].mxu0
    %v1646 = vpop.f32.mrb[0].mxu0
    %v1647 = vadd.f32 %v1438, %v1646
    %v1648 = vpop.f32.mrb[0].mxu0
    %1649 = vmatprep.mubr.bf16.mxu0 0
    %1650 = vmatmul.mubr.bf16.gmra.mrb[0].mxu0 %v1411
    %v1651 = vpop.f32.mrb[0].mxu0
    %v1652 = vadd.f32 %v1438, %v1651
    %v1653 = vpop.f32.mrb[0].mxu0
    %v1654 = vpop.f32.mrb[0].mxu0
    %v1655 = vadd.f32 %v1438, %v1654
    %v1656 = vpop.f32.mrb[0].mxu0
    %1657 = vmatprep.mubr.bf16.mxu0 0
    %1658 = vmatmul.mubr.bf16.gmra.mrb[0].mxu0 %v1412
    %v1659 = vpop.f32.mrb[0].mxu0
    %v1660 = vadd.f32 %v1438, %v1659
    %v1661 = vpop.f32.mrb[0].mxu0
    %v1662 = vpop.f32.mrb[0].mxu0
    %v1663 = vadd.f32 %v1438, %v1662
    %v1664 = vpop.f32.mrb[0].mxu0
    %1665 = vmatprep.mubr.bf16.mxu0 0
    %1666 = vmatmul.mubr.bf16.gmra.mrb[0].mxu0 %v1413
    %v1667 = vpop.f32.mrb[0].mxu0
    %v1668 = vadd.f32 %v1438, %v1667
    %v1669 = vpop.f32.mrb[0].mxu0
    %v1670 = vpop.f32.mrb[0].mxu0
    %v1671 = vadd.f32 %v1438, %v1670
    %v1672 = vpop.f32.mrb[0].mxu0
    %1673 = vmatprep.mubr.bf16.mxu0 0
    %1674 = vmatmul.mubr.bf16.gmra.mrb[0].mxu0 %v1414
    %v1675 = vpop.f32.mrb[0].mxu0
    %v1676 = vadd.f32 %v1438, %v1675
    %v1677 = vpop.f32.mrb[0].mxu0
    %v1678 = vpop.f32.mrb[0].mxu0
    %v1679 = vadd.f32 %v1438, %v1678
    %v1680 = vpop.f32.mrb[0].mxu0
    %1681 = vdwg.mxu0
    %v1682 = vmax.f32 %v1523, 0.0
    %v1683 = vmax.f32 %v1526, 0.0
    %v1684 = vmax.f32 %v1531, 0.0
    %v1685 = vmax.f32 %v1534, 0.0
    %v1686 = vmax.f32 %v1539, 0.0
    %v1687 = vmax.f32 %v1542, 0.0
    %v1688 = vmax.f32 %v1547, 0.0
    %v1689 = vmax.f32 %v1550, 0.0
    %v1690 = vmax.f32 %v1555, 0.0
    %v1691 = vmax.f32 %v1558, 0.0
    %v1692 = vmax.f32 %v1563, 0.0
    %v1693 = vmax.f32 %v1566, 0.0
    %v1694 = vmax.f32 %v1571, 0.0
    %v1695 = vmax.f32 %v1574, 0.0
    %v1696 = vmax.f32 %v1579, 0.0
    %v1697 = vmax.f32 %v1582, 0.0
    %v1698 = vpack.c.bf16 %v1683, %v1682
    %v1699 = vpack.c.bf16 %v1685, %v1684
    %v1700 = vpack.c.bf16 %v1687, %v1686
    %v1701 = vpack.c.bf16 %v1689, %v1688
    %v1702 = vpack.c.bf16 %v1691, %v1690
    %v1703 = vpack.c.bf16 %v1693, %v1692
    %v1704 = vpack.c.bf16 %v1695, %v1694
    %v1705 = vpack.c.bf16 %v1697, %v1696
    %v1706 = vmax.f32 %v1620, 0.0
    %v1707 = vmax.f32 %v1623, 0.0
    %v1708 = vmax.f32 %v1628, 0.0
    %v1709 = vmax.f32 %v1631, 0.0
    %v1710 = vmax.f32 %v1636, 0.0
    %v1711 = vmax.f32 %v1639, 0.0
    %v1712 = vmax.f32 %v1644, 0.0
    %v1713 = vmax.f32 %v1647, 0.0
    %v1714 = vmax.f32 %v1652, 0.0
    %v1715 = vmax.f32 %v1655, 0.0
    %v1716 = vmax.f32 %v1660, 0.0
    %v1717 = vmax.f32 %v1663, 0.0
    %v1718 = vmax.f32 %v1668, 0.0
    %v1719 = vmax.f32 %v1671, 0.0
    %v1720 = vmax.f32 %v1676, 0.0
    %v1721 = vmax.f32 %v1679, 0.0
    %v1722 = vpack.c.bf16 %v1707, %v1706
    %v1723 = vpack.c.bf16 %v1709, %v1708
    %v1724 = vpack.c.bf16 %v1711, %v1710
    %v1725 = vpack.c.bf16 %v1713, %v1712
    %v1726 = vpack.c.bf16 %v1715, %v1714
    %v1727 = vpack.c.bf16 %v1717, %v1716
    %v1728 = vpack.c.bf16 %v1719, %v1718
    %v1729 = vpack.c.bf16 %v1721, %v1720
    %s1730 = scalar_lea.vmem [#allocation2], 320
    %v1731 = vld [vmem:[%s1730] sm:$0xf]
    %v1732 = vld [vmem:[%s1730 + $0x4] sm:$0xf]
    %v1733 = vld [vmem:[%s1730 + $0x8] sm:$0xf]
    %v1734 = vld [vmem:[%s1730 + $0xc] sm:$0xf]
    %v1735 = vld [vmem:[%s1730 + $0x10] sm:$0xf]
    %v1736 = vld [vmem:[%s1730 + $0x14] sm:$0xf]
    %v1737 = vld [vmem:[%s1730 + $0x18] sm:$0xf]
    %v1738 = vld [vmem:[%s1730 + $0x1c] sm:$0xf]
    %v1739 = vld [vmem:[%s1730 + $0x20] sm:$0xf]
    %v1740 = vld [vmem:[%s1730 + $0x24] sm:$0xf]
    %v1741 = vld [vmem:[%s1730 + $0x28] sm:$0xf]
    %v1742 = vld [vmem:[%s1730 + $0x2c] sm:$0xf]
    %v1743 = vld [vmem:[%s1730 + $0x30] sm:$0xf]
    %v1744 = vld [vmem:[%s1730 + $0x34] sm:$0xf]
    %v1745 = vld [vmem:[%s1730 + $0x38] sm:$0xf]
    %v1746 = vld [vmem:[%s1730 + $0x3c] sm:$0xf]
    %s1747 = scalar_lea.vmem %s2, 5
    %v1748 = vld [vmem:[%s1747] sm:$0x1]
    %v1750 = vlaneseq
    %v1751 = vshrl.u32 %v1750, 7
    %v1752 = vsub.s32 0, %v1751
    %v1753 = vrot.slane %v1748, %v1752
    %v1771 = vunpack.c.l.b16 %v1731
    %v1772 = vunpack.c.l.b16 %v1732
    %v1773 = vunpack.c.l.b16 %v1733
    %v1774 = vunpack.c.l.b16 %v1734
    %v1775 = vunpack.c.l.b16 %v1735
    %v1776 = vunpack.c.l.b16 %v1736
    %v1777 = vunpack.c.l.b16 %v1737
    %v1778 = vunpack.c.l.b16 %v1738
    %v1779 = vunpack.c.l.b16 %v1739
    %v1780 = vunpack.c.l.b16 %v1740
    %v1781 = vunpack.c.l.b16 %v1741
    %v1782 = vunpack.c.l.b16 %v1742
    %v1783 = vunpack.c.l.b16 %v1743
    %v1784 = vunpack.c.l.b16 %v1744
    %v1785 = vunpack.c.l.b16 %v1745
    %v1786 = vunpack.c.l.b16 %v1746
    %v1787 = vpack.c.b16 %v1772, %v1771
    %v1788 = vpack.c.b16 %v1774, %v1773
    %v1789 = vpack.c.b16 %v1776, %v1775
    %v1790 = vpack.c.b16 %v1778, %v1777
    %v1791 = vpack.c.b16 %v1780, %v1779
    %v1792 = vpack.c.b16 %v1782, %v1781
    %v1793 = vpack.c.b16 %v1784, %v1783
    %v1794 = vpack.c.b16 %v1786, %v1785
    %1803 = vmatprep.subr.bf16.mxu0 0
    %1804 = vmatpush1.bf16.msra.mxu0 %v1787
    %1805 = vmatprep.subr.bf16.mxu0 0
    %1806 = vmatpush1.bf16.msra.mxu0 %v1788
    %1807 = vmatprep.subr.bf16.mxu0 0
    %1808 = vmatpush1.bf16.msra.mxu0 %v1789
    %1809 = vmatprep.subr.bf16.mxu0 0
    %1810 = vmatpush1.bf16.msra.mxu0 %v1790
    %1811 = vmatprep.subr.bf16.mxu0 0
    %1812 = vmatpush1.bf16.msra.mxu0 %v1791
    %1813 = vmatprep.subr.bf16.mxu0 0
    %1814 = vmatpush1.bf16.msra.mxu0 %v1792
    %1815 = vmatprep.subr.bf16.mxu0 0
    %1816 = vmatpush1.bf16.msra.mxu0 %v1793
    %1817 = vmatprep.subr.bf16.mxu0 0
    %1818 = vmatpush1.bf16.msra.mxu0 %v1794
    %1819 = vmatprep.subr.bf16.mxu0 0
    %1820 = vmatpush1.bf16.msra.mxu0 0
    %1821 = vmatprep.subr.bf16.mxu0 0
    %1822 = vmatpush1.bf16.msra.mxu0 0
    %1823 = vmatprep.subr.bf16.mxu0 0
    %1824 = vmatpush1.bf16.msra.mxu0 0
    %1825 = vmatprep.subr.bf16.mxu0 0
    %1826 = vmatpush1.bf16.msra.mxu0 0
    %1827 = vmatprep.subr.bf16.mxu0 0
    %1828 = vmatpush1.bf16.msra.mxu0 0
    %1829 = vmatprep.subr.bf16.mxu0 0
    %1830 = vmatpush1.bf16.msra.mxu0 0
    %1831 = vmatprep.subr.bf16.mxu0 0
    %1832 = vmatpush1.bf16.msra.mxu0 0
    %1833 = vmatprep.subr.bf16.mxu0 0
    %1834 = vmatpush1.bf16.msra.mxu0 0
    %1835 = vmatprep.mubr.bf16.mxu0 0
    %1836 = vmatmul.mubr.bf16.gmra.mrb[0].mxu0 %v1698
    %v1837 = vpop.f32.mrb[0].mxu0
    %v1838 = vadd.f32 %v1753, %v1837
    %v1839 = vpop.f32.mrb[0].mxu0
    %v1840 = vpop.f32.mrb[0].mxu0
    %v1841 = vadd.f32 %v1753, %v1840
    %v1842 = vpop.f32.mrb[0].mxu0
    %1843 = vmatprep.mubr.bf16.mxu0 0
    %1844 = vmatmul.mubr.bf16.gmra.mrb[0].mxu0 %v1699
    %v1845 = vpop.f32.mrb[0].mxu0
    %v1846 = vadd.f32 %v1753, %v1845
    %v1847 = vpop.f32.mrb[0].mxu0
    %v1848 = vpop.f32.mrb[0].mxu0
    %v1849 = vadd.f32 %v1753, %v1848
    %v1850 = vpop.f32.mrb[0].mxu0
    %1851 = vmatprep.mubr.bf16.mxu0 0
    %1852 = vmatmul.mubr.bf16.gmra.mrb[0].mxu0 %v1700
    %v1853 = vpop.f32.mrb[0].mxu0
    %v1854 = vadd.f32 %v1753, %v1853
    %v1855 = vpop.f32.mrb[0].mxu0
    %v1856 = vpop.f32.mrb[0].mxu0
    %v1857 = vadd.f32 %v1753, %v1856
    %v1858 = vpop.f32.mrb[0].mxu0
    %1859 = vmatprep.mubr.bf16.mxu0 0
    %1860 = vmatmul.mubr.bf16.gmra.mrb[0].mxu0 %v1701
    %v1861 = vpop.f32.mrb[0].mxu0
    %v1862 = vadd.f32 %v1753, %v1861
    %v1863 = vpop.f32.mrb[0].mxu0
    %v1864 = vpop.f32.mrb[0].mxu0
    %v1865 = vadd.f32 %v1753, %v1864
    %v1866 = vpop.f32.mrb[0].mxu0
    %1867 = vmatprep.mubr.bf16.mxu0 0
    %1868 = vmatmul.mubr.bf16.gmra.mrb[0].mxu0 %v1702
    %v1869 = vpop.f32.mrb[0].mxu0
    %v1870 = vadd.f32 %v1753, %v1869
    %v1871 = vpop.f32.mrb[0].mxu0
    %v1872 = vpop.f32.mrb[0].mxu0
    %v1873 = vadd.f32 %v1753, %v1872
    %v1874 = vpop.f32.mrb[0].mxu0
    %1875 = vmatprep.mubr.bf16.mxu0 0
    %1876 = vmatmul.mubr.bf16.gmra.mrb[0].mxu0 %v1703
    %v1877 = vpop.f32.mrb[0].mxu0
    %v1878 = vadd.f32 %v1753, %v1877
    %v1879 = vpop.f32.mrb[0].mxu0
    %v1880 = vpop.f32.mrb[0].mxu0
    %v1881 = vadd.f32 %v1753, %v1880
    %v1882 = vpop.f32.mrb[0].mxu0
    %1883 = vmatprep.mubr.bf16.mxu0 0
    %1884 = vmatmul.mubr.bf16.gmra.mrb[0].mxu0 %v1704
    %v1885 = vpop.f32.mrb[0].mxu0
    %v1886 = vadd.f32 %v1753, %v1885
    %v1887 = vpop.f32.mrb[0].mxu0
    %v1888 = vpop.f32.mrb[0].mxu0
    %v1889 = vadd.f32 %v1753, %v1888
    %v1890 = vpop.f32.mrb[0].mxu0
    %1891 = vmatprep.mubr.bf16.mxu0 0
    %1892 = vmatmul.mubr.bf16.gmra.mrb[0].mxu0 %v1705
    %v1893 = vpop.f32.mrb[0].mxu0
    %v1894 = vadd.f32 %v1753, %v1893
    %v1895 = vpop.f32.mrb[0].mxu0
    %v1896 = vpop.f32.mrb[0].mxu0
    %v1897 = vadd.f32 %v1753, %v1896
    %v1898 = vpop.f32.mrb[0].mxu0
    %1899 = vdwg.mxu0
    %1900 = vmatprep.subr.bf16.mxu0 0
    %1901 = vmatpush1.bf16.msra.mxu0 %v1787
    %1902 = vmatprep.subr.bf16.mxu0 0
    %1903 = vmatpush1.bf16.msra.mxu0 %v1788
    %1904 = vmatprep.subr.bf16.mxu0 0
    %1905 = vmatpush1.bf16.msra.mxu0 %v1789
    %1906 = vmatprep.subr.bf16.mxu0 0
    %1907 = vmatpush1.bf16.msra.mxu0 %v1790
    %1908 = vmatprep.subr.bf16.mxu0 0
    %1909 = vmatpush1.bf16.msra.mxu0 %v1791
    %1910 = vmatprep.subr.bf16.mxu0 0
    %1911 = vmatpush1.bf16.msra.mxu0 %v1792
    %1912 = vmatprep.subr.bf16.mxu0 0
    %1913 = vmatpush1.bf16.msra.mxu0 %v1793
    %1914 = vmatprep.subr.bf16.mxu0 0
    %1915 = vmatpush1.bf16.msra.mxu0 %v1794
    %1916 = vmatprep.subr.bf16.mxu0 0
    %1917 = vmatpush1.bf16.msra.mxu0 0
    %1918 = vmatprep.subr.bf16.mxu0 0
    %1919 = vmatpush1.bf16.msra.mxu0 0
    %1920 = vmatprep.subr.bf16.mxu0 0
    %1921 = vmatpush1.bf16.msra.mxu0 0
    %1922 = vmatprep.subr.bf16.mxu0 0
    %1923 = vmatpush1.bf16.msra.mxu0 0
    %1924 = vmatprep.subr.bf16.mxu0 0
    %1925 = vmatpush1.bf16.msra.mxu0 0
    %1926 = vmatprep.subr.bf16.mxu0 0
    %1927 = vmatpush1.bf16.msra.mxu0 0
    %1928 = vmatprep.subr.bf16.mxu0 0
    %1929 = vmatpush1.bf16.msra.mxu0 0
    %1930 = vmatprep.subr.bf16.mxu0 0
    %1931 = vmatpush1.bf16.msra.mxu0 0
    %1932 = vmatprep.mubr.bf16.mxu0 0
    %1933 = vmatmul.mubr.bf16.gmra.mrb[0].mxu0 %v1722
    %v1934 = vpop.f32.mrb[0].mxu0
    %v1935 = vadd.f32 %v1753, %v1934
    %v1936 = vpop.f32.mrb[0].mxu0
    %v1937 = vpop.f32.mrb[0].mxu0
    %v1938 = vadd.f32 %v1753, %v1937
    %v1939 = vpop.f32.mrb[0].mxu0
    %1940 = vmatprep.mubr.bf16.mxu0 0
    %1941 = vmatmul.mubr.bf16.gmra.mrb[0].mxu0 %v1723
    %v1942 = vpop.f32.mrb[0].mxu0
    %v1943 = vadd.f32 %v1753, %v1942
    %v1944 = vpop.f32.mrb[0].mxu0
    %v1945 = vpop.f32.mrb[0].mxu0
    %v1946 = vadd.f32 %v1753, %v1945
    %v1947 = vpop.f32.mrb[0].mxu0
    %1948 = vmatprep.mubr.bf16.mxu0 0
    %1949 = vmatmul.mubr.bf16.gmra.mrb[0].mxu0 %v1724
    %v1950 = vpop.f32.mrb[0].mxu0
    %v1951 = vadd.f32 %v1753, %v1950
    %v1952 = vpop.f32.mrb[0].mxu0
    %v1953 = vpop.f32.mrb[0].mxu0
    %v1954 = vadd.f32 %v1753, %v1953
    %v1955 = vpop.f32.mrb[0].mxu0
    %1956 = vmatprep.mubr.bf16.mxu0 0
    %1957 = vmatmul.mubr.bf16.gmra.mrb[0].mxu0 %v1725
    %v1958 = vpop.f32.mrb[0].mxu0
    %v1959 = vadd.f32 %v1753, %v1958
    %v1960 = vpop.f32.mrb[0].mxu0
    %v1961 = vpop.f32.mrb[0].mxu0
    %v1962 = vadd.f32 %v1753, %v1961
    %v1963 = vpop.f32.mrb[0].mxu0
    %1964 = vmatprep.mubr.bf16.mxu0 0
    %1965 = vmatmul.mubr.bf16.gmra.mrb[0].mxu0 %v1726
    %v1966 = vpop.f32.mrb[0].mxu0
    %v1967 = vadd.f32 %v1753, %v1966
    %v1968 = vpop.f32.mrb[0].mxu0
    %v1969 = vpop.f32.mrb[0].mxu0
    %v1970 = vadd.f32 %v1753, %v1969
    %v1971 = vpop.f32.mrb[0].mxu0
    %1972 = vmatprep.mubr.bf16.mxu0 0
    %1973 = vmatmul.mubr.bf16.gmra.mrb[0].mxu0 %v1727
    %v1974 = vpop.f32.mrb[0].mxu0
    %v1975 = vadd.f32 %v1753, %v1974
    %v1976 = vpop.f32.mrb[0].mxu0
    %v1977 = vpop.f32.mrb[0].mxu0
    %v1978 = vadd.f32 %v1753, %v1977
    %v1979 = vpop.f32.mrb[0].mxu0
    %1980 = vmatprep.mubr.bf16.mxu0 0
    %1981 = vmatmul.mubr.bf16.gmra.mrb[0].mxu0 %v1728
    %v1982 = vpop.f32.mrb[0].mxu0
    %v1983 = vadd.f32 %v1753, %v1982
    %v1984 = vpop.f32.mrb[0].mxu0
    %v1985 = vpop.f32.mrb[0].mxu0
    %v1986 = vadd.f32 %v1753, %v1985
    %v1987 = vpop.f32.mrb[0].mxu0
    %1988 = vmatprep.mubr.bf16.mxu0 0
    %1989 = vmatmul.mubr.bf16.gmra.mrb[0].mxu0 %v1729
    %v1990 = vpop.f32.mrb[0].mxu0
    %v1991 = vadd.f32 %v1753, %v1990
    %v1992 = vpop.f32.mrb[0].mxu0
    %v1993 = vpop.f32.mrb[0].mxu0
    %v1994 = vadd.f32 %v1753, %v1993
    %v1995 = vpop.f32.mrb[0].mxu0
    %1996 = vdwg.mxu0
    %v1997 = vmax.f32 %v1838, 0.0
    %v1998 = vmax.f32 %v1841, 0.0
    %v1999 = vmax.f32 %v1846, 0.0
    %v2000 = vmax.f32 %v1849, 0.0
    %v2001 = vmax.f32 %v1854, 0.0
    %v2002 = vmax.f32 %v1857, 0.0
    %v2003 = vmax.f32 %v1862, 0.0
    %v2004 = vmax.f32 %v1865, 0.0
    %v2005 = vmax.f32 %v1870, 0.0
    %v2006 = vmax.f32 %v1873, 0.0
    %v2007 = vmax.f32 %v1878, 0.0
    %v2008 = vmax.f32 %v1881, 0.0
    %v2009 = vmax.f32 %v1886, 0.0
    %v2010 = vmax.f32 %v1889, 0.0
    %v2011 = vmax.f32 %v1894, 0.0
    %v2012 = vmax.f32 %v1897, 0.0
    %v2013 = vpack.c.bf16 %v1998, %v1997
    %v2014 = vpack.c.bf16 %v2000, %v1999
    %v2015 = vpack.c.bf16 %v2002, %v2001
    %v2016 = vpack.c.bf16 %v2004, %v2003
    %v2017 = vpack.c.bf16 %v2006, %v2005
    %v2018 = vpack.c.bf16 %v2008, %v2007
    %v2019 = vpack.c.bf16 %v2010, %v2009
    %v2020 = vpack.c.bf16 %v2012, %v2011
    %v2021 = vmax.f32 %v1935, 0.0
    %v2022 = vmax.f32 %v1938, 0.0
    %v2023 = vmax.f32 %v1943, 0.0
    %v2024 = vmax.f32 %v1946, 0.0
    %v2025 = vmax.f32 %v1951, 0.0
    %v2026 = vmax.f32 %v1954, 0.0
    %v2027 = vmax.f32 %v1959, 0.0
    %v2028 = vmax.f32 %v1962, 0.0
    %v2029 = vmax.f32 %v1967, 0.0
    %v2030 = vmax.f32 %v1970, 0.0
    %v2031 = vmax.f32 %v1975, 0.0
    %v2032 = vmax.f32 %v1978, 0.0
    %v2033 = vmax.f32 %v1983, 0.0
    %v2034 = vmax.f32 %v1986, 0.0
    %v2035 = vmax.f32 %v1991, 0.0
    %v2036 = vmax.f32 %v1994, 0.0
    %v2037 = vpack.c.bf16 %v2022, %v2021
    %v2038 = vpack.c.bf16 %v2024, %v2023
    %v2039 = vpack.c.bf16 %v2026, %v2025
    %v2040 = vpack.c.bf16 %v2028, %v2027
    %v2041 = vpack.c.bf16 %v2030, %v2029
    %v2042 = vpack.c.bf16 %v2032, %v2031
    %v2043 = vpack.c.bf16 %v2034, %v2033
    %v2044 = vpack.c.bf16 %v2036, %v2035
    %s2045 = scalar_lea.vmem [#allocation2], 384
    %v2046 = vld [vmem:[%s2045] sm:$0xf]
    %v2047 = vld [vmem:[%s2045 + $0x4] sm:$0xf]
    %v2048 = vld [vmem:[%s2045 + $0x8] sm:$0xf]
    %v2049 = vld [vmem:[%s2045 + $0xc] sm:$0xf]
    %v2050 = vld [vmem:[%s2045 + $0x10] sm:$0xf]
    %v2051 = vld [vmem:[%s2045 + $0x14] sm:$0xf]
    %v2052 = vld [vmem:[%s2045 + $0x18] sm:$0xf]
    %v2053 = vld [vmem:[%s2045 + $0x1c] sm:$0xf]
    %v2054 = vld [vmem:[%s2045 + $0x20] sm:$0xf]
    %v2055 = vld [vmem:[%s2045 + $0x24] sm:$0xf]
    %v2056 = vld [vmem:[%s2045 + $0x28] sm:$0xf]
    %v2057 = vld [vmem:[%s2045 + $0x2c] sm:$0xf]
    %v2058 = vld [vmem:[%s2045 + $0x30] sm:$0xf]
    %v2059 = vld [vmem:[%s2045 + $0x34] sm:$0xf]
    %v2060 = vld [vmem:[%s2045 + $0x38] sm:$0xf]
    %v2061 = vld [vmem:[%s2045 + $0x3c] sm:$0xf]
    %s2062 = scalar_lea.vmem %s2, 6
    %v2063 = vld [vmem:[%s2062] sm:$0x1]
    %v2065 = vlaneseq
    %v2066 = vshrl.u32 %v2065, 7
    %v2067 = vsub.s32 0, %v2066
    %v2068 = vrot.slane %v2063, %v2067
    %v2086 = vunpack.c.l.b16 %v2046
    %v2087 = vunpack.c.l.b16 %v2047
    %v2088 = vunpack.c.l.b16 %v2048
    %v2089 = vunpack.c.l.b16 %v2049
    %v2090 = vunpack.c.l.b16 %v2050
    %v2091 = vunpack.c.l.b16 %v2051
    %v2092 = vunpack.c.l.b16 %v2052
    %v2093 = vunpack.c.l.b16 %v2053
    %v2094 = vunpack.c.l.b16 %v2054
    %v2095 = vunpack.c.l.b16 %v2055
    %v2096 = vunpack.c.l.b16 %v2056
    %v2097 = vunpack.c.l.b16 %v2057
    %v2098 = vunpack.c.l.b16 %v2058
    %v2099 = vunpack.c.l.b16 %v2059
    %v2100 = vunpack.c.l.b16 %v2060
    %v2101 = vunpack.c.l.b16 %v2061
    %v2102 = vpack.c.b16 %v2087, %v2086
    %v2103 = vpack.c.b16 %v2089, %v2088
    %v2104 = vpack.c.b16 %v2091, %v2090
    %v2105 = vpack.c.b16 %v2093, %v2092
    %v2106 = vpack.c.b16 %v2095, %v2094
    %v2107 = vpack.c.b16 %v2097, %v2096
    %v2108 = vpack.c.b16 %v2099, %v2098
    %v2109 = vpack.c.b16 %v2101, %v2100
    %2118 = vmatprep.subr.bf16.mxu0 0
    %2119 = vmatpush1.bf16.msra.mxu0 %v2102
    %2120 = vmatprep.subr.bf16.mxu0 0
    %2121 = vmatpush1.bf16.msra.mxu0 %v2103
    %2122 = vmatprep.subr.bf16.mxu0 0
    %2123 = vmatpush1.bf16.msra.mxu0 %v2104
    %2124 = vmatprep.subr.bf16.mxu0 0
    %2125 = vmatpush1.bf16.msra.mxu0 %v2105
    %2126 = vmatprep.subr.bf16.mxu0 0
    %2127 = vmatpush1.bf16.msra.mxu0 %v2106
    %2128 = vmatprep.subr.bf16.mxu0 0
    %2129 = vmatpush1.bf16.msra.mxu0 %v2107
    %2130 = vmatprep.subr.bf16.mxu0 0
    %2131 = vmatpush1.bf16.msra.mxu0 %v2108
    %2132 = vmatprep.subr.bf16.mxu0 0
    %2133 = vmatpush1.bf16.msra.mxu0 %v2109
    %2134 = vmatprep.subr.bf16.mxu0 0
    %2135 = vmatpush1.bf16.msra.mxu0 0
    %2136 = vmatprep.subr.bf16.mxu0 0
    %2137 = vmatpush1.bf16.msra.mxu0 0
    %2138 = vmatprep.subr.bf16.mxu0 0
    %2139 = vmatpush1.bf16.msra.mxu0 0
    %2140 = vmatprep.subr.bf16.mxu0 0
    %2141 = vmatpush1.bf16.msra.mxu0 0
    %2142 = vmatprep.subr.bf16.mxu0 0
    %2143 = vmatpush1.bf16.msra.mxu0 0
    %2144 = vmatprep.subr.bf16.mxu0 0
    %2145 = vmatpush1.bf16.msra.mxu0 0
    %2146 = vmatprep.subr.bf16.mxu0 0
    %2147 = vmatpush1.bf16.msra.mxu0 0
    %2148 = vmatprep.subr.bf16.mxu0 0
    %2149 = vmatpush1.bf16.msra.mxu0 0
    %2150 = vmatprep.mubr.bf16.mxu0 0
    %2151 = vmatmul.mubr.bf16.gmra.mrb[0].mxu0 %v2013
    %v2152 = vpop.f32.mrb[0].mxu0
    %v2153 = vadd.f32 %v2068, %v2152
    %v2154 = vpop.f32.mrb[0].mxu0
    %v2155 = vpop.f32.mrb[0].mxu0
    %v2156 = vadd.f32 %v2068, %v2155
    %v2157 = vpop.f32.mrb[0].mxu0
    %2158 = vmatprep.mubr.bf16.mxu0 0
    %2159 = vmatmul.mubr.bf16.gmra.mrb[0].mxu0 %v2014
    %v2160 = vpop.f32.mrb[0].mxu0
    %v2161 = vadd.f32 %v2068, %v2160
    %v2162 = vpop.f32.mrb[0].mxu0
    %v2163 = vpop.f32.mrb[0].mxu0
    %v2164 = vadd.f32 %v2068, %v2163
    %v2165 = vpop.f32.mrb[0].mxu0
    %2166 = vmatprep.mubr.bf16.mxu0 0
    %2167 = vmatmul.mubr.bf16.gmra.mrb[0].mxu0 %v2015
    %v2168 = vpop.f32.mrb[0].mxu0
    %v2169 = vadd.f32 %v2068, %v2168
    %v2170 = vpop.f32.mrb[0].mxu0
    %v2171 = vpop.f32.mrb[0].mxu0
    %v2172 = vadd.f32 %v2068, %v2171
    %v2173 = vpop.f32.mrb[0].mxu0
    %2174 = vmatprep.mubr.bf16.mxu0 0
    %2175 = vmatmul.mubr.bf16.gmra.mrb[0].mxu0 %v2016
    %v2176 = vpop.f32.mrb[0].mxu0
    %v2177 = vadd.f32 %v2068, %v2176
    %v2178 = vpop.f32.mrb[0].mxu0
    %v2179 = vpop.f32.mrb[0].mxu0
    %v2180 = vadd.f32 %v2068, %v2179
    %v2181 = vpop.f32.mrb[0].mxu0
    %2182 = vmatprep.mubr.bf16.mxu0 0
    %2183 = vmatmul.mubr.bf16.gmra.mrb[0].mxu0 %v2017
    %v2184 = vpop.f32.mrb[0].mxu0
    %v2185 = vadd.f32 %v2068, %v2184
    %v2186 = vpop.f32.mrb[0].mxu0
    %v2187 = vpop.f32.mrb[0].mxu0
    %v2188 = vadd.f32 %v2068, %v2187
    %v2189 = vpop.f32.mrb[0].mxu0
    %2190 = vmatprep.mubr.bf16.mxu0 0
    %2191 = vmatmul.mubr.bf16.gmra.mrb[0].mxu0 %v2018
    %v2192 = vpop.f32.mrb[0].mxu0
    %v2193 = vadd.f32 %v2068, %v2192
    %v2194 = vpop.f32.mrb[0].mxu0
    %v2195 = vpop.f32.mrb[0].mxu0
    %v2196 = vadd.f32 %v2068, %v2195
    %v2197 = vpop.f32.mrb[0].mxu0
    %2198 = vmatprep.mubr.bf16.mxu0 0
    %2199 = vmatmul.mubr.bf16.gmra.mrb[0].mxu0 %v2019
    %v2200 = vpop.f32.mrb[0].mxu0
    %v2201 = vadd.f32 %v2068, %v2200
    %v2202 = vpop.f32.mrb[0].mxu0
    %v2203 = vpop.f32.mrb[0].mxu0
    %v2204 = vadd.f32 %v2068, %v2203
    %v2205 = vpop.f32.mrb[0].mxu0
    %2206 = vmatprep.mubr.bf16.mxu0 0
    %2207 = vmatmul.mubr.bf16.gmra.mrb[0].mxu0 %v2020
    %v2208 = vpop.f32.mrb[0].mxu0
    %v2209 = vadd.f32 %v2068, %v2208
    %v2210 = vpop.f32.mrb[0].mxu0
    %v2211 = vpop.f32.mrb[0].mxu0
    %v2212 = vadd.f32 %v2068, %v2211
    %v2213 = vpop.f32.mrb[0].mxu0
    %2214 = vdwg.mxu0
    %2215 = vmatprep.subr.bf16.mxu0 0
    %2216 = vmatpush1.bf16.msra.mxu0 %v2102
    %2217 = vmatprep.subr.bf16.mxu0 0
    %2218 = vmatpush1.bf16.msra.mxu0 %v2103
    %2219 = vmatprep.subr.bf16.mxu0 0
    %2220 = vmatpush1.bf16.msra.mxu0 %v2104
    %2221 = vmatprep.subr.bf16.mxu0 0
    %2222 = vmatpush1.bf16.msra.mxu0 %v2105
    %2223 = vmatprep.subr.bf16.mxu0 0
    %2224 = vmatpush1.bf16.msra.mxu0 %v2106
    %2225 = vmatprep.subr.bf16.mxu0 0
    %2226 = vmatpush1.bf16.msra.mxu0 %v2107
    %2227 = vmatprep.subr.bf16.mxu0 0
    %2228 = vmatpush1.bf16.msra.mxu0 %v2108
    %2229 = vmatprep.subr.bf16.mxu0 0
    %2230 = vmatpush1.bf16.msra.mxu0 %v2109
    %2231 = vmatprep.subr.bf16.mxu0 0
    %2232 = vmatpush1.bf16.msra.mxu0 0
    %2233 = vmatprep.subr.bf16.mxu0 0
    %2234 = vmatpush1.bf16.msra.mxu0 0
    %2235 = vmatprep.subr.bf16.mxu0 0
    %2236 = vmatpush1.bf16.msra.mxu0 0
    %2237 = vmatprep.subr.bf16.mxu0 0
    %2238 = vmatpush1.bf16.msra.mxu0 0
    %2239 = vmatprep.subr.bf16.mxu0 0
    %2240 = vmatpush1.bf16.msra.mxu0 0
    %2241 = vmatprep.subr.bf16.mxu0 0
    %2242 = vmatpush1.bf16.msra.mxu0 0
    %2243 = vmatprep.subr.bf16.mxu0 0
    %2244 = vmatpush1.bf16.msra.mxu0 0
    %2245 = vmatprep.subr.bf16.mxu0 0
    %2246 = vmatpush1.bf16.msra.mxu0 0
    %2247 = vmatprep.mubr.bf16.mxu0 0
    %2248 = vmatmul.mubr.bf16.gmra.mrb[0].mxu0 %v2037
    %v2249 = vpop.f32.mrb[0].mxu0
    %v2250 = vadd.f32 %v2068, %v2249
    %v2251 = vpop.f32.mrb[0].mxu0
    %v2252 = vpop.f32.mrb[0].mxu0
    %v2253 = vadd.f32 %v2068, %v2252
    %v2254 = vpop.f32.mrb[0].mxu0
    %2255 = vmatprep.mubr.bf16.mxu0 0
    %2256 = vmatmul.mubr.bf16.gmra.mrb[0].mxu0 %v2038
    %v2257 = vpop.f32.mrb[0].mxu0
    %v2258 = vadd.f32 %v2068, %v2257
    %v2259 = vpop.f32.mrb[0].mxu0
    %v2260 = vpop.f32.mrb[0].mxu0
    %v2261 = vadd.f32 %v2068, %v2260
    %v2262 = vpop.f32.mrb[0].mxu0
    %2263 = vmatprep.mubr.bf16.mxu0 0
    %2264 = vmatmul.mubr.bf16.gmra.mrb[0].mxu0 %v2039
    %v2265 = vpop.f32.mrb[0].mxu0
    %v2266 = vadd.f32 %v2068, %v2265
    %v2267 = vpop.f32.mrb[0].mxu0
    %v2268 = vpop.f32.mrb[0].mxu0
    %v2269 = vadd.f32 %v2068, %v2268
    %v2270 = vpop.f32.mrb[0].mxu0
    %2271 = vmatprep.mubr.bf16.mxu0 0
    %2272 = vmatmul.mubr.bf16.gmra.mrb[0].mxu0 %v2040
    %v2273 = vpop.f32.mrb[0].mxu0
    %v2274 = vadd.f32 %v2068, %v2273
    %v2275 = vpop.f32.mrb[0].mxu0
    %v2276 = vpop.f32.mrb[0].mxu0
    %v2277 = vadd.f32 %v2068, %v2276
    %v2278 = vpop.f32.mrb[0].mxu0
    %2279 = vmatprep.mubr.bf16.mxu0 0
    %2280 = vmatmul.mubr.bf16.gmra.mrb[0].mxu0 %v2041
    %v2281 = vpop.f32.mrb[0].mxu0
    %v2282 = vadd.f32 %v2068, %v2281
    %v2283 = vpop.f32.mrb[0].mxu0
    %v2284 = vpop.f32.mrb[0].mxu0
    %v2285 = vadd.f32 %v2068, %v2284
    %v2286 = vpop.f32.mrb[0].mxu0
    %2287 = vmatprep.mubr.bf16.mxu0 0
    %2288 = vmatmul.mubr.bf16.gmra.mrb[0].mxu0 %v2042
    %v2289 = vpop.f32.mrb[0].mxu0
    %v2290 = vadd.f32 %v2068, %v2289
    %v2291 = vpop.f32.mrb[0].mxu0
    %v2292 = vpop.f32.mrb[0].mxu0
    %v2293 = vadd.f32 %v2068, %v2292
    %v2294 = vpop.f32.mrb[0].mxu0
    %2295 = vmatprep.mubr.bf16.mxu0 0
    %2296 = vmatmul.mubr.bf16.gmra.mrb[0].mxu0 %v2043
    %v2297 = vpop.f32.mrb[0].mxu0
    %v2298 = vadd.f32 %v2068, %v2297
    %v2299 = vpop.f32.mrb[0].mxu0
    %v2300 = vpop.f32.mrb[0].mxu0
    %v2301 = vadd.f32 %v2068, %v2300
    %v2302 = vpop.f32.mrb[0].mxu0
    %2303 = vmatprep.mubr.bf16.mxu0 0
    %2304 = vmatmul.mubr.bf16.gmra.mrb[0].mxu0 %v2044
    %v2305 = vpop.f32.mrb[0].mxu0
    %v2306 = vadd.f32 %v2068, %v2305
    %v2307 = vpop.f32.mrb[0].mxu0
    %v2308 = vpop.f32.mrb[0].mxu0
    %v2309 = vadd.f32 %v2068, %v2308
    %v2310 = vpop.f32.mrb[0].mxu0
    %2311 = vdwg.mxu0
    %v2312 = vmax.f32 %v2153, 0.0
    %v2313 = vmax.f32 %v2156, 0.0
    %v2314 = vmax.f32 %v2161, 0.0
    %v2315 = vmax.f32 %v2164, 0.0
    %v2316 = vmax.f32 %v2169, 0.0
    %v2317 = vmax.f32 %v2172, 0.0
    %v2318 = vmax.f32 %v2177, 0.0
    %v2319 = vmax.f32 %v2180, 0.0
    %v2320 = vmax.f32 %v2185, 0.0
    %v2321 = vmax.f32 %v2188, 0.0
    %v2322 = vmax.f32 %v2193, 0.0
    %v2323 = vmax.f32 %v2196, 0.0
    %v2324 = vmax.f32 %v2201, 0.0
    %v2325 = vmax.f32 %v2204, 0.0
    %v2326 = vmax.f32 %v2209, 0.0
    %v2327 = vmax.f32 %v2212, 0.0
    %v2328 = vpack.c.bf16 %v2313, %v2312
    %v2329 = vpack.c.bf16 %v2315, %v2314
    %v2330 = vpack.c.bf16 %v2317, %v2316
    %v2331 = vpack.c.bf16 %v2319, %v2318
    %v2332 = vpack.c.bf16 %v2321, %v2320
    %v2333 = vpack.c.bf16 %v2323, %v2322
    %v2334 = vpack.c.bf16 %v2325, %v2324
    %v2335 = vpack.c.bf16 %v2327, %v2326
    %v2336 = vmax.f32 %v2250, 0.0
    %v2337 = vmax.f32 %v2253, 0.0
    %v2338 = vmax.f32 %v2258, 0.0
    %v2339 = vmax.f32 %v2261, 0.0
    %v2340 = vmax.f32 %v2266, 0.0
    %v2341 = vmax.f32 %v2269, 0.0
    %v2342 = vmax.f32 %v2274, 0.0
    %v2343 = vmax.f32 %v2277, 0.0
    %v2344 = vmax.f32 %v2282, 0.0
    %v2345 = vmax.f32 %v2285, 0.0
    %v2346 = vmax.f32 %v2290, 0.0
    %v2347 = vmax.f32 %v2293, 0.0
    %v2348 = vmax.f32 %v2298, 0.0
    %v2349 = vmax.f32 %v2301, 0.0
    %v2350 = vmax.f32 %v2306, 0.0
    %v2351 = vmax.f32 %v2309, 0.0
    %v2352 = vpack.c.bf16 %v2337, %v2336
    %v2353 = vpack.c.bf16 %v2339, %v2338
    %v2354 = vpack.c.bf16 %v2341, %v2340
    %v2355 = vpack.c.bf16 %v2343, %v2342
    %v2356 = vpack.c.bf16 %v2345, %v2344
    %v2357 = vpack.c.bf16 %v2347, %v2346
    %v2358 = vpack.c.bf16 %v2349, %v2348
    %v2359 = vpack.c.bf16 %v2351, %v2350
    %s2360 = scalar_lea.vmem [#allocation2], 448
    %v2361 = vld [vmem:[%s2360] sm:$0xf]
    %v2362 = vld [vmem:[%s2360 + $0x4] sm:$0xf]
    %v2363 = vld [vmem:[%s2360 + $0x8] sm:$0xf]
    %v2364 = vld [vmem:[%s2360 + $0xc] sm:$0xf]
    %v2365 = vld [vmem:[%s2360 + $0x10] sm:$0xf]
    %v2366 = vld [vmem:[%s2360 + $0x14] sm:$0xf]
    %v2367 = vld [vmem:[%s2360 + $0x18] sm:$0xf]
    %v2368 = vld [vmem:[%s2360 + $0x1c] sm:$0xf]
    %v2369 = vld [vmem:[%s2360 + $0x20] sm:$0xf]
    %v2370 = vld [vmem:[%s2360 + $0x24] sm:$0xf]
    %v2371 = vld [vmem:[%s2360 + $0x28] sm:$0xf]
    %v2372 = vld [vmem:[%s2360 + $0x2c] sm:$0xf]
    %v2373 = vld [vmem:[%s2360 + $0x30] sm:$0xf]
    %v2374 = vld [vmem:[%s2360 + $0x34] sm:$0xf]
    %v2375 = vld [vmem:[%s2360 + $0x38] sm:$0xf]
    %v2376 = vld [vmem:[%s2360 + $0x3c] sm:$0xf]
    %s2377 = scalar_lea.vmem %s2, 7
    %v2378 = vld [vmem:[%s2377] sm:$0x1]
    %v2380 = vlaneseq
    %v2381 = vshrl.u32 %v2380, 7
    %v2382 = vsub.s32 0, %v2381
    %v2383 = vrot.slane %v2378, %v2382
    %v2401 = vunpack.c.l.b16 %v2361
    %v2402 = vunpack.c.l.b16 %v2362
    %v2403 = vunpack.c.l.b16 %v2363
    %v2404 = vunpack.c.l.b16 %v2364
    %v2405 = vunpack.c.l.b16 %v2365
    %v2406 = vunpack.c.l.b16 %v2366
    %v2407 = vunpack.c.l.b16 %v2367
    %v2408 = vunpack.c.l.b16 %v2368
    %v2409 = vunpack.c.l.b16 %v2369
    %v2410 = vunpack.c.l.b16 %v2370
    %v2411 = vunpack.c.l.b16 %v2371
    %v2412 = vunpack.c.l.b16 %v2372
    %v2413 = vunpack.c.l.b16 %v2373
    %v2414 = vunpack.c.l.b16 %v2374
    %v2415 = vunpack.c.l.b16 %v2375
    %v2416 = vunpack.c.l.b16 %v2376
    %v2417 = vpack.c.b16 %v2402, %v2401
    %v2418 = vpack.c.b16 %v2404, %v2403
    %v2419 = vpack.c.b16 %v2406, %v2405
    %v2420 = vpack.c.b16 %v2408, %v2407
    %v2421 = vpack.c.b16 %v2410, %v2409
    %v2422 = vpack.c.b16 %v2412, %v2411
    %v2423 = vpack.c.b16 %v2414, %v2413
    %v2424 = vpack.c.b16 %v2416, %v2415
    %2433 = vmatprep.subr.bf16.mxu0 0
    %2434 = vmatpush1.bf16.msra.mxu0 %v2417
    %2435 = vmatprep.subr.bf16.mxu0 0
    %2436 = vmatpush1.bf16.msra.mxu0 %v2418
    %2437 = vmatprep.subr.bf16.mxu0 0
    %2438 = vmatpush1.bf16.msra.mxu0 %v2419
    %2439 = vmatprep.subr.bf16.mxu0 0
    %2440 = vmatpush1.bf16.msra.mxu0 %v2420
    %2441 = vmatprep.subr.bf16.mxu0 0
    %2442 = vmatpush1.bf16.msra.mxu0 %v2421
    %2443 = vmatprep.subr.bf16.mxu0 0
    %2444 = vmatpush1.bf16.msra.mxu0 %v2422
    %2445 = vmatprep.subr.bf16.mxu0 0
    %2446 = vmatpush1.bf16.msra.mxu0 %v2423
    %2447 = vmatprep.subr.bf16.mxu0 0
    %2448 = vmatpush1.bf16.msra.mxu0 %v2424
    %2449 = vmatprep.subr.bf16.mxu0 0
    %2450 = vmatpush1.bf16.msra.mxu0 0
    %2451 = vmatprep.subr.bf16.mxu0 0
    %2452 = vmatpush1.bf16.msra.mxu0 0
    %2453 = vmatprep.subr.bf16.mxu0 0
    %2454 = vmatpush1.bf16.msra.mxu0 0
    %2455 = vmatprep.subr.bf16.mxu0 0
    %2456 = vmatpush1.bf16.msra.mxu0 0
    %2457 = vmatprep.subr.bf16.mxu0 0
    %2458 = vmatpush1.bf16.msra.mxu0 0
    %2459 = vmatprep.subr.bf16.mxu0 0
    %2460 = vmatpush1.bf16.msra.mxu0 0
    %2461 = vmatprep.subr.bf16.mxu0 0
    %2462 = vmatpush1.bf16.msra.mxu0 0
    %2463 = vmatprep.subr.bf16.mxu0 0
    %2464 = vmatpush1.bf16.msra.mxu0 0
    %2465 = vmatprep.mubr.bf16.mxu0 0
    %2466 = vmatmul.mubr.bf16.gmra.mrb[0].mxu0 %v2328
    %v2467 = vpop.f32.mrb[0].mxu0
    %v2468 = vadd.f32 %v2383, %v2467
    %v2469 = vpop.f32.mrb[0].mxu0
    %v2470 = vpop.f32.mrb[0].mxu0
    %v2471 = vadd.f32 %v2383, %v2470
    %v2472 = vpop.f32.mrb[0].mxu0
    %2473 = vmatprep.mubr.bf16.mxu0 0
    %2474 = vmatmul.mubr.bf16.gmra.mrb[0].mxu0 %v2329
    %v2475 = vpop.f32.mrb[0].mxu0
    %v2476 = vadd.f32 %v2383, %v2475
    %v2477 = vpop.f32.mrb[0].mxu0
    %v2478 = vpop.f32.mrb[0].mxu0
    %v2479 = vadd.f32 %v2383, %v2478
    %v2480 = vpop.f32.mrb[0].mxu0
    %2481 = vmatprep.mubr.bf16.mxu0 0
    %2482 = vmatmul.mubr.bf16.gmra.mrb[0].mxu0 %v2330
    %v2483 = vpop.f32.mrb[0].mxu0
    %v2484 = vadd.f32 %v2383, %v2483
    %v2485 = vpop.f32.mrb[0].mxu0
    %v2486 = vpop.f32.mrb[0].mxu0
    %v2487 = vadd.f32 %v2383, %v2486
    %v2488 = vpop.f32.mrb[0].mxu0
    %2489 = vmatprep.mubr.bf16.mxu0 0
    %2490 = vmatmul.mubr.bf16.gmra.mrb[0].mxu0 %v2331
    %v2491 = vpop.f32.mrb[0].mxu0
    %v2492 = vadd.f32 %v2383, %v2491
    %v2493 = vpop.f32.mrb[0].mxu0
    %v2494 = vpop.f32.mrb[0].mxu0
    %v2495 = vadd.f32 %v2383, %v2494
    %v2496 = vpop.f32.mrb[0].mxu0
    %2497 = vmatprep.mubr.bf16.mxu0 0
    %2498 = vmatmul.mubr.bf16.gmra.mrb[0].mxu0 %v2332
    %v2499 = vpop.f32.mrb[0].mxu0
    %v2500 = vadd.f32 %v2383, %v2499
    %v2501 = vpop.f32.mrb[0].mxu0
    %v2502 = vpop.f32.mrb[0].mxu0
    %v2503 = vadd.f32 %v2383, %v2502
    %v2504 = vpop.f32.mrb[0].mxu0
    %2505 = vmatprep.mubr.bf16.mxu0 0
    %2506 = vmatmul.mubr.bf16.gmra.mrb[0].mxu0 %v2333
    %v2507 = vpop.f32.mrb[0].mxu0
    %v2508 = vadd.f32 %v2383, %v2507
    %v2509 = vpop.f32.mrb[0].mxu0
    %v2510 = vpop.f32.mrb[0].mxu0
    %v2511 = vadd.f32 %v2383, %v2510
    %v2512 = vpop.f32.mrb[0].mxu0
    %2513 = vmatprep.mubr.bf16.mxu0 0
    %2514 = vmatmul.mubr.bf16.gmra.mrb[0].mxu0 %v2334
    %v2515 = vpop.f32.mrb[0].mxu0
    %v2516 = vadd.f32 %v2383, %v2515
    %v2517 = vpop.f32.mrb[0].mxu0
    %v2518 = vpop.f32.mrb[0].mxu0
    %v2519 = vadd.f32 %v2383, %v2518
    %v2520 = vpop.f32.mrb[0].mxu0
    %2521 = vmatprep.mubr.bf16.mxu0 0
    %2522 = vmatmul.mubr.bf16.gmra.mrb[0].mxu0 %v2335
    %v2523 = vpop.f32.mrb[0].mxu0
    %v2524 = vadd.f32 %v2383, %v2523
    %v2525 = vpop.f32.mrb[0].mxu0
    %v2526 = vpop.f32.mrb[0].mxu0
    %v2527 = vadd.f32 %v2383, %v2526
    %v2528 = vpop.f32.mrb[0].mxu0
    %2529 = vdwg.mxu0
    %2530 = vmatprep.subr.bf16.mxu0 0
    %2531 = vmatpush1.bf16.msra.mxu0 %v2417
    %2532 = vmatprep.subr.bf16.mxu0 0
    %2533 = vmatpush1.bf16.msra.mxu0 %v2418
    %2534 = vmatprep.subr.bf16.mxu0 0
    %2535 = vmatpush1.bf16.msra.mxu0 %v2419
    %2536 = vmatprep.subr.bf16.mxu0 0
    %2537 = vmatpush1.bf16.msra.mxu0 %v2420
    %2538 = vmatprep.subr.bf16.mxu0 0
    %2539 = vmatpush1.bf16.msra.mxu0 %v2421
    %2540 = vmatprep.subr.bf16.mxu0 0
    %2541 = vmatpush1.bf16.msra.mxu0 %v2422
    %2542 = vmatprep.subr.bf16.mxu0 0
    %2543 = vmatpush1.bf16.msra.mxu0 %v2423
    %2544 = vmatprep.subr.bf16.mxu0 0
    %2545 = vmatpush1.bf16.msra.mxu0 %v2424
    %2546 = vmatprep.subr.bf16.mxu0 0
    %2547 = vmatpush1.bf16.msra.mxu0 0
    %2548 = vmatprep.subr.bf16.mxu0 0
    %2549 = vmatpush1.bf16.msra.mxu0 0
    %2550 = vmatprep.subr.bf16.mxu0 0
    %2551 = vmatpush1.bf16.msra.mxu0 0
    %2552 = vmatprep.subr.bf16.mxu0 0
    %2553 = vmatpush1.bf16.msra.mxu0 0
    %2554 = vmatprep.subr.bf16.mxu0 0
    %2555 = vmatpush1.bf16.msra.mxu0 0
    %2556 = vmatprep.subr.bf16.mxu0 0
    %2557 = vmatpush1.bf16.msra.mxu0 0
    %2558 = vmatprep.subr.bf16.mxu0 0
    %2559 = vmatpush1.bf16.msra.mxu0 0
    %2560 = vmatprep.subr.bf16.mxu0 0
    %2561 = vmatpush1.bf16.msra.mxu0 0
    %2562 = vmatprep.mubr.bf16.mxu0 0
    %2563 = vmatmul.mubr.bf16.gmra.mrb[0].mxu0 %v2352
    %v2564 = vpop.f32.mrb[0].mxu0
    %v2565 = vadd.f32 %v2383, %v2564
    %v2566 = vpop.f32.mrb[0].mxu0
    %v2567 = vpop.f32.mrb[0].mxu0
    %v2568 = vadd.f32 %v2383, %v2567
    %v2569 = vpop.f32.mrb[0].mxu0
    %2570 = vmatprep.mubr.bf16.mxu0 0
    %2571 = vmatmul.mubr.bf16.gmra.mrb[0].mxu0 %v2353
    %v2572 = vpop.f32.mrb[0].mxu0
    %v2573 = vadd.f32 %v2383, %v2572
    %v2574 = vpop.f32.mrb[0].mxu0
    %v2575 = vpop.f32.mrb[0].mxu0
    %v2576 = vadd.f32 %v2383, %v2575
    %v2577 = vpop.f32.mrb[0].mxu0
    %2578 = vmatprep.mubr.bf16.mxu0 0
    %2579 = vmatmul.mubr.bf16.gmra.mrb[0].mxu0 %v2354
    %v2580 = vpop.f32.mrb[0].mxu0
    %v2581 = vadd.f32 %v2383, %v2580
    %v2582 = vpop.f32.mrb[0].mxu0
    %v2583 = vpop.f32.mrb[0].mxu0
    %v2584 = vadd.f32 %v2383, %v2583
    %v2585 = vpop.f32.mrb[0].mxu0
    %2586 = vmatprep.mubr.bf16.mxu0 0
    %2587 = vmatmul.mubr.bf16.gmra.mrb[0].mxu0 %v2355
    %v2588 = vpop.f32.mrb[0].mxu0
    %v2589 = vadd.f32 %v2383, %v2588
    %v2590 = vpop.f32.mrb[0].mxu0
    %v2591 = vpop.f32.mrb[0].mxu0
    %v2592 = vadd.f32 %v2383, %v2591
    %v2593 = vpop.f32.mrb[0].mxu0
    %2594 = vmatprep.mubr.bf16.mxu0 0
    %2595 = vmatmul.mubr.bf16.gmra.mrb[0].mxu0 %v2356
    %v2596 = vpop.f32.mrb[0].mxu0
    %v2597 = vadd.f32 %v2383, %v2596
    %v2598 = vpop.f32.mrb[0].mxu0
    %v2599 = vpop.f32.mrb[0].mxu0
    %v2600 = vadd.f32 %v2383, %v2599
    %v2601 = vpop.f32.mrb[0].mxu0
    %2602 = vmatprep.mubr.bf16.mxu0 0
    %2603 = vmatmul.mubr.bf16.gmra.mrb[0].mxu0 %v2357
    %v2604 = vpop.f32.mrb[0].mxu0
    %v2605 = vadd.f32 %v2383, %v2604
    %v2606 = vpop.f32.mrb[0].mxu0
    %v2607 = vpop.f32.mrb[0].mxu0
    %v2608 = vadd.f32 %v2383, %v2607
    %v2609 = vpop.f32.mrb[0].mxu0
    %2610 = vmatprep.mubr.bf16.mxu0 0
    %2611 = vmatmul.mubr.bf16.gmra.mrb[0].mxu0 %v2358
    %v2612 = vpop.f32.mrb[0].mxu0
    %v2613 = vadd.f32 %v2383, %v2612
    %v2614 = vpop.f32.mrb[0].mxu0
    %v2615 = vpop.f32.mrb[0].mxu0
    %v2616 = vadd.f32 %v2383, %v2615
    %v2617 = vpop.f32.mrb[0].mxu0
    %2618 = vmatprep.mubr.bf16.mxu0 0
    %2619 = vmatmul.mubr.bf16.gmra.mrb[0].mxu0 %v2359
    %v2620 = vpop.f32.mrb[0].mxu0
    %v2621 = vadd.f32 %v2383, %v2620
    %v2622 = vpop.f32.mrb[0].mxu0
    %v2623 = vpop.f32.mrb[0].mxu0
    %v2624 = vadd.f32 %v2383, %v2623
    %v2625 = vpop.f32.mrb[0].mxu0
    %2626 = vdwg.mxu0
    %v2627 = vmax.f32 %v2468, 0.0
    %v2628 = vmax.f32 %v2471, 0.0
    %v2629 = vmax.f32 %v2476, 0.0
    %v2630 = vmax.f32 %v2479, 0.0
    %v2631 = vmax.f32 %v2484, 0.0
    %v2632 = vmax.f32 %v2487, 0.0
    %v2633 = vmax.f32 %v2492, 0.0
    %v2634 = vmax.f32 %v2495, 0.0
    %v2635 = vmax.f32 %v2500, 0.0
    %v2636 = vmax.f32 %v2503, 0.0
    %v2637 = vmax.f32 %v2508, 0.0
    %v2638 = vmax.f32 %v2511, 0.0
    %v2639 = vmax.f32 %v2516, 0.0
    %v2640 = vmax.f32 %v2519, 0.0
    %v2641 = vmax.f32 %v2524, 0.0
    %v2642 = vmax.f32 %v2527, 0.0
    %v2643 = vpack.c.bf16 %v2628, %v2627
    %v2644 = vpack.c.bf16 %v2630, %v2629
    %v2645 = vpack.c.bf16 %v2632, %v2631
    %v2646 = vpack.c.bf16 %v2634, %v2633
    %v2647 = vpack.c.bf16 %v2636, %v2635
    %v2648 = vpack.c.bf16 %v2638, %v2637
    %v2649 = vpack.c.bf16 %v2640, %v2639
    %v2650 = vpack.c.bf16 %v2642, %v2641
    %v2651 = vmax.f32 %v2565, 0.0
    %v2652 = vmax.f32 %v2568, 0.0
    %v2653 = vmax.f32 %v2573, 0.0
    %v2654 = vmax.f32 %v2576, 0.0
    %v2655 = vmax.f32 %v2581, 0.0
    %v2656 = vmax.f32 %v2584, 0.0
    %v2657 = vmax.f32 %v2589, 0.0
    %v2658 = vmax.f32 %v2592, 0.0
    %v2659 = vmax.f32 %v2597, 0.0
    %v2660 = vmax.f32 %v2600, 0.0
    %v2661 = vmax.f32 %v2605, 0.0
    %v2662 = vmax.f32 %v2608, 0.0
    %v2663 = vmax.f32 %v2613, 0.0
    %v2664 = vmax.f32 %v2616, 0.0
    %v2665 = vmax.f32 %v2621, 0.0
    %v2666 = vmax.f32 %v2624, 0.0
    %v2667 = vpack.c.bf16 %v2652, %v2651
    %v2668 = vpack.c.bf16 %v2654, %v2653
    %v2669 = vpack.c.bf16 %v2656, %v2655
    %v2670 = vpack.c.bf16 %v2658, %v2657
    %v2671 = vpack.c.bf16 %v2660, %v2659
    %v2672 = vpack.c.bf16 %v2662, %v2661
    %v2673 = vpack.c.bf16 %v2664, %v2663
    %v2674 = vpack.c.bf16 %v2666, %v2665
    %s2675 = scalar_lea.vmem [#allocation2], 512
    %v2676 = vld [vmem:[%s2675] sm:$0xf]
    %v2677 = vld [vmem:[%s2675 + $0x4] sm:$0xf]
    %v2678 = vld [vmem:[%s2675 + $0x8] sm:$0xf]
    %v2679 = vld [vmem:[%s2675 + $0xc] sm:$0xf]
    %v2680 = vld [vmem:[%s2675 + $0x10] sm:$0xf]
    %v2681 = vld [vmem:[%s2675 + $0x14] sm:$0xf]
    %v2682 = vld [vmem:[%s2675 + $0x18] sm:$0xf]
    %v2683 = vld [vmem:[%s2675 + $0x1c] sm:$0xf]
    %v2684 = vld [vmem:[%s2675 + $0x20] sm:$0xf]
    %v2685 = vld [vmem:[%s2675 + $0x24] sm:$0xf]
    %v2686 = vld [vmem:[%s2675 + $0x28] sm:$0xf]
    %v2687 = vld [vmem:[%s2675 + $0x2c] sm:$0xf]
    %v2688 = vld [vmem:[%s2675 + $0x30] sm:$0xf]
    %v2689 = vld [vmem:[%s2675 + $0x34] sm:$0xf]
    %v2690 = vld [vmem:[%s2675 + $0x38] sm:$0xf]
    %v2691 = vld [vmem:[%s2675 + $0x3c] sm:$0xf]
    %s2692 = scalar_lea.vmem %s2, 8
    %v2693 = vld [vmem:[%s2692] sm:$0x1]
    %v2695 = vlaneseq
    %v2696 = vshrl.u32 %v2695, 7
    %v2697 = vsub.s32 0, %v2696
    %v2698 = vrot.slane %v2693, %v2697
    %v2716 = vunpack.c.l.b16 %v2676
    %v2717 = vunpack.c.l.b16 %v2677
    %v2718 = vunpack.c.l.b16 %v2678
    %v2719 = vunpack.c.l.b16 %v2679
    %v2720 = vunpack.c.l.b16 %v2680
    %v2721 = vunpack.c.l.b16 %v2681
    %v2722 = vunpack.c.l.b16 %v2682
    %v2723 = vunpack.c.l.b16 %v2683
    %v2724 = vunpack.c.l.b16 %v2684
    %v2725 = vunpack.c.l.b16 %v2685
    %v2726 = vunpack.c.l.b16 %v2686
    %v2727 = vunpack.c.l.b16 %v2687
    %v2728 = vunpack.c.l.b16 %v2688
    %v2729 = vunpack.c.l.b16 %v2689
    %v2730 = vunpack.c.l.b16 %v2690
    %v2731 = vunpack.c.l.b16 %v2691
    %v2732 = vpack.c.b16 %v2717, %v2716
    %v2733 = vpack.c.b16 %v2719, %v2718
    %v2734 = vpack.c.b16 %v2721, %v2720
    %v2735 = vpack.c.b16 %v2723, %v2722
    %v2736 = vpack.c.b16 %v2725, %v2724
    %v2737 = vpack.c.b16 %v2727, %v2726
    %v2738 = vpack.c.b16 %v2729, %v2728
    %v2739 = vpack.c.b16 %v2731, %v2730
    %2748 = vmatprep.subr.bf16.mxu0 0
    %2749 = vmatpush1.bf16.msra.mxu0 %v2732
    %2750 = vmatprep.subr.bf16.mxu0 0
    %2751 = vmatpush1.bf16.msra.mxu0 %v2733
    %2752 = vmatprep.subr.bf16.mxu0 0
    %2753 = vmatpush1.bf16.msra.mxu0 %v2734
    %2754 = vmatprep.subr.bf16.mxu0 0
    %2755 = vmatpush1.bf16.msra.mxu0 %v2735
    %2756 = vmatprep.subr.bf16.mxu0 0
    %2757 = vmatpush1.bf16.msra.mxu0 %v2736
    %2758 = vmatprep.subr.bf16.mxu0 0
    %2759 = vmatpush1.bf16.msra.mxu0 %v2737
    %2760 = vmatprep.subr.bf16.mxu0 0
    %2761 = vmatpush1.bf16.msra.mxu0 %v2738
    %2762 = vmatprep.subr.bf16.mxu0 0
    %2763 = vmatpush1.bf16.msra.mxu0 %v2739
    %2764 = vmatprep.subr.bf16.mxu0 0
    %2765 = vmatpush1.bf16.msra.mxu0 0
    %2766 = vmatprep.subr.bf16.mxu0 0
    %2767 = vmatpush1.bf16.msra.mxu0 0
    %2768 = vmatprep.subr.bf16.mxu0 0
    %2769 = vmatpush1.bf16.msra.mxu0 0
    %2770 = vmatprep.subr.bf16.mxu0 0
    %2771 = vmatpush1.bf16.msra.mxu0 0
    %2772 = vmatprep.subr.bf16.mxu0 0
    %2773 = vmatpush1.bf16.msra.mxu0 0
    %2774 = vmatprep.subr.bf16.mxu0 0
    %2775 = vmatpush1.bf16.msra.mxu0 0
    %2776 = vmatprep.subr.bf16.mxu0 0
    %2777 = vmatpush1.bf16.msra.mxu0 0
    %2778 = vmatprep.subr.bf16.mxu0 0
    %2779 = vmatpush1.bf16.msra.mxu0 0
    %2780 = vmatprep.mubr.bf16.mxu0 0
    %2781 = vmatmul.mubr.bf16.gmra.mrb[0].mxu0 %v2643
    %v2782 = vpop.f32.mrb[0].mxu0
    %v2783 = vadd.f32 %v2698, %v2782
    %v2784 = vpop.f32.mrb[0].mxu0
    %v2785 = vpop.f32.mrb[0].mxu0
    %v2786 = vadd.f32 %v2698, %v2785
    %v2787 = vpop.f32.mrb[0].mxu0
    %2788 = vmatprep.mubr.bf16.mxu0 0
    %2789 = vmatmul.mubr.bf16.gmra.mrb[0].mxu0 %v2644
    %v2790 = vpop.f32.mrb[0].mxu0
    %v2791 = vadd.f32 %v2698, %v2790
    %v2792 = vpop.f32.mrb[0].mxu0
    %v2793 = vpop.f32.mrb[0].mxu0
    %v2794 = vadd.f32 %v2698, %v2793
    %v2795 = vpop.f32.mrb[0].mxu0
    %2796 = vmatprep.mubr.bf16.mxu0 0
    %2797 = vmatmul.mubr.bf16.gmra.mrb[0].mxu0 %v2645
    %v2798 = vpop.f32.mrb[0].mxu0
    %v2799 = vadd.f32 %v2698, %v2798
    %v2800 = vpop.f32.mrb[0].mxu0
    %v2801 = vpop.f32.mrb[0].mxu0
    %v2802 = vadd.f32 %v2698, %v2801
    %v2803 = vpop.f32.mrb[0].mxu0
    %2804 = vmatprep.mubr.bf16.mxu0 0
    %2805 = vmatmul.mubr.bf16.gmra.mrb[0].mxu0 %v2646
    %v2806 = vpop.f32.mrb[0].mxu0
    %v2807 = vadd.f32 %v2698, %v2806
    %v2808 = vpop.f32.mrb[0].mxu0
    %v2809 = vpop.f32.mrb[0].mxu0
    %v2810 = vadd.f32 %v2698, %v2809
    %v2811 = vpop.f32.mrb[0].mxu0
    %2812 = vmatprep.mubr.bf16.mxu0 0
    %2813 = vmatmul.mubr.bf16.gmra.mrb[0].mxu0 %v2647
    %v2814 = vpop.f32.mrb[0].mxu0
    %v2815 = vadd.f32 %v2698, %v2814
    %v2816 = vpop.f32.mrb[0].mxu0
    %v2817 = vpop.f32.mrb[0].mxu0
    %v2818 = vadd.f32 %v2698, %v2817
    %v2819 = vpop.f32.mrb[0].mxu0
    %2820 = vmatprep.mubr.bf16.mxu0 0
    %2821 = vmatmul.mubr.bf16.gmra.mrb[0].mxu0 %v2648
    %v2822 = vpop.f32.mrb[0].mxu0
    %v2823 = vadd.f32 %v2698, %v2822
    %v2824 = vpop.f32.mrb[0].mxu0
    %v2825 = vpop.f32.mrb[0].mxu0
    %v2826 = vadd.f32 %v2698, %v2825
    %v2827 = vpop.f32.mrb[0].mxu0
    %2828 = vmatprep.mubr.bf16.mxu0 0
    %2829 = vmatmul.mubr.bf16.gmra.mrb[0].mxu0 %v2649
    %v2830 = vpop.f32.mrb[0].mxu0
    %v2831 = vadd.f32 %v2698, %v2830
    %v2832 = vpop.f32.mrb[0].mxu0
    %v2833 = vpop.f32.mrb[0].mxu0
    %v2834 = vadd.f32 %v2698, %v2833
    %v2835 = vpop.f32.mrb[0].mxu0
    %2836 = vmatprep.mubr.bf16.mxu0 0
    %2837 = vmatmul.mubr.bf16.gmra.mrb[0].mxu0 %v2650
    %v2838 = vpop.f32.mrb[0].mxu0
    %v2839 = vadd.f32 %v2698, %v2838
    %v2840 = vpop.f32.mrb[0].mxu0
    %v2841 = vpop.f32.mrb[0].mxu0
    %v2842 = vadd.f32 %v2698, %v2841
    %v2843 = vpop.f32.mrb[0].mxu0
    %2844 = vdwg.mxu0
    %2845 = vmatprep.subr.bf16.mxu0 0
    %2846 = vmatpush1.bf16.msra.mxu0 %v2732
    %2847 = vmatprep.subr.bf16.mxu0 0
    %2848 = vmatpush1.bf16.msra.mxu0 %v2733
    %2849 = vmatprep.subr.bf16.mxu0 0
    %2850 = vmatpush1.bf16.msra.mxu0 %v2734
    %2851 = vmatprep.subr.bf16.mxu0 0
    %2852 = vmatpush1.bf16.msra.mxu0 %v2735
    %2853 = vmatprep.subr.bf16.mxu0 0
    %2854 = vmatpush1.bf16.msra.mxu0 %v2736
    %2855 = vmatprep.subr.bf16.mxu0 0
    %2856 = vmatpush1.bf16.msra.mxu0 %v2737
    %2857 = vmatprep.subr.bf16.mxu0 0
    %2858 = vmatpush1.bf16.msra.mxu0 %v2738
    %2859 = vmatprep.subr.bf16.mxu0 0
    %2860 = vmatpush1.bf16.msra.mxu0 %v2739
    %2861 = vmatprep.subr.bf16.mxu0 0
    %2862 = vmatpush1.bf16.msra.mxu0 0
    %2863 = vmatprep.subr.bf16.mxu0 0
    %2864 = vmatpush1.bf16.msra.mxu0 0
    %2865 = vmatprep.subr.bf16.mxu0 0
    %2866 = vmatpush1.bf16.msra.mxu0 0
    %2867 = vmatprep.subr.bf16.mxu0 0
    %2868 = vmatpush1.bf16.msra.mxu0 0
    %2869 = vmatprep.subr.bf16.mxu0 0
    %2870 = vmatpush1.bf16.msra.mxu0 0
    %2871 = vmatprep.subr.bf16.mxu0 0
    %2872 = vmatpush1.bf16.msra.mxu0 0
    %2873 = vmatprep.subr.bf16.mxu0 0
    %2874 = vmatpush1.bf16.msra.mxu0 0
    %2875 = vmatprep.subr.bf16.mxu0 0
    %2876 = vmatpush1.bf16.msra.mxu0 0
    %2877 = vmatprep.mubr.bf16.mxu0 0
    %2878 = vmatmul.mubr.bf16.gmra.mrb[0].mxu0 %v2667
    %v2879 = vpop.f32.mrb[0].mxu0
    %v2880 = vadd.f32 %v2698, %v2879
    %v2881 = vpop.f32.mrb[0].mxu0
    %v2882 = vpop.f32.mrb[0].mxu0
    %v2883 = vadd.f32 %v2698, %v2882
    %v2884 = vpop.f32.mrb[0].mxu0
    %2885 = vmatprep.mubr.bf16.mxu0 0
    %2886 = vmatmul.mubr.bf16.gmra.mrb[0].mxu0 %v2668
    %v2887 = vpop.f32.mrb[0].mxu0
    %v2888 = vadd.f32 %v2698, %v2887
    %v2889 = vpop.f32.mrb[0].mxu0
    %v2890 = vpop.f32.mrb[0].mxu0
    %v2891 = vadd.f32 %v2698, %v2890
    %v2892 = vpop.f32.mrb[0].mxu0
    %2893 = vmatprep.mubr.bf16.mxu0 0
    %2894 = vmatmul.mubr.bf16.gmra.mrb[0].mxu0 %v2669
    %v2895 = vpop.f32.mrb[0].mxu0
    %v2896 = vadd.f32 %v2698, %v2895
    %v2897 = vpop.f32.mrb[0].mxu0
    %v2898 = vpop.f32.mrb[0].mxu0
    %v2899 = vadd.f32 %v2698, %v2898
    %v2900 = vpop.f32.mrb[0].mxu0
    %2901 = vmatprep.mubr.bf16.mxu0 0
    %2902 = vmatmul.mubr.bf16.gmra.mrb[0].mxu0 %v2670
    %v2903 = vpop.f32.mrb[0].mxu0
    %v2904 = vadd.f32 %v2698, %v2903
    %v2905 = vpop.f32.mrb[0].mxu0
    %v2906 = vpop.f32.mrb[0].mxu0
    %v2907 = vadd.f32 %v2698, %v2906
    %v2908 = vpop.f32.mrb[0].mxu0
    %2909 = vmatprep.mubr.bf16.mxu0 0
    %2910 = vmatmul.mubr.bf16.gmra.mrb[0].mxu0 %v2671
    %v2911 = vpop.f32.mrb[0].mxu0
    %v2912 = vadd.f32 %v2698, %v2911
    %v2913 = vpop.f32.mrb[0].mxu0
    %v2914 = vpop.f32.mrb[0].mxu0
    %v2915 = vadd.f32 %v2698, %v2914
    %v2916 = vpop.f32.mrb[0].mxu0
    %2917 = vmatprep.mubr.bf16.mxu0 0
    %2918 = vmatmul.mubr.bf16.gmra.mrb[0].mxu0 %v2672
    %v2919 = vpop.f32.mrb[0].mxu0
    %v2920 = vadd.f32 %v2698, %v2919
    %v2921 = vpop.f32.mrb[0].mxu0
    %v2922 = vpop.f32.mrb[0].mxu0
    %v2923 = vadd.f32 %v2698, %v2922
    %v2924 = vpop.f32.mrb[0].mxu0
    %2925 = vmatprep.mubr.bf16.mxu0 0
    %2926 = vmatmul.mubr.bf16.gmra.mrb[0].mxu0 %v2673
    %v2927 = vpop.f32.mrb[0].mxu0
    %v2928 = vadd.f32 %v2698, %v2927
    %v2929 = vpop.f32.mrb[0].mxu0
    %v2930 = vpop.f32.mrb[0].mxu0
    %v2931 = vadd.f32 %v2698, %v2930
    %v2932 = vpop.f32.mrb[0].mxu0
    %2933 = vmatprep.mubr.bf16.mxu0 0
    %2934 = vmatmul.mubr.bf16.gmra.mrb[0].mxu0 %v2674
    %v2935 = vpop.f32.mrb[0].mxu0
    %v2936 = vadd.f32 %v2698, %v2935
    %v2937 = vpop.f32.mrb[0].mxu0
    %v2938 = vpop.f32.mrb[0].mxu0
    %v2939 = vadd.f32 %v2698, %v2938
    %v2940 = vpop.f32.mrb[0].mxu0
    %2941 = vdwg.mxu0
    %v2942 = vmax.f32 %v2783, 0.0
    %v2943 = vmax.f32 %v2786, 0.0
    %v2944 = vmax.f32 %v2791, 0.0
    %v2945 = vmax.f32 %v2794, 0.0
    %v2946 = vmax.f32 %v2799, 0.0
    %v2947 = vmax.f32 %v2802, 0.0
    %v2948 = vmax.f32 %v2807, 0.0
    %v2949 = vmax.f32 %v2810, 0.0
    %v2950 = vmax.f32 %v2815, 0.0
    %v2951 = vmax.f32 %v2818, 0.0
    %v2952 = vmax.f32 %v2823, 0.0
    %v2953 = vmax.f32 %v2826, 0.0
    %v2954 = vmax.f32 %v2831, 0.0
    %v2955 = vmax.f32 %v2834, 0.0
    %v2956 = vmax.f32 %v2839, 0.0
    %v2957 = vmax.f32 %v2842, 0.0
    %v2958 = vpack.c.bf16 %v2943, %v2942
    %v2959 = vpack.c.bf16 %v2945, %v2944
    %v2960 = vpack.c.bf16 %v2947, %v2946
    %v2961 = vpack.c.bf16 %v2949, %v2948
    %v2962 = vpack.c.bf16 %v2951, %v2950
    %v2963 = vpack.c.bf16 %v2953, %v2952
    %v2964 = vpack.c.bf16 %v2955, %v2954
    %v2965 = vpack.c.bf16 %v2957, %v2956
    %v2966 = vmax.f32 %v2880, 0.0
    %v2967 = vmax.f32 %v2883, 0.0
    %v2968 = vmax.f32 %v2888, 0.0
    %v2969 = vmax.f32 %v2891, 0.0
    %v2970 = vmax.f32 %v2896, 0.0
    %v2971 = vmax.f32 %v2899, 0.0
    %v2972 = vmax.f32 %v2904, 0.0
    %v2973 = vmax.f32 %v2907, 0.0
    %v2974 = vmax.f32 %v2912, 0.0
    %v2975 = vmax.f32 %v2915, 0.0
    %v2976 = vmax.f32 %v2920, 0.0
    %v2977 = vmax.f32 %v2923, 0.0
    %v2978 = vmax.f32 %v2928, 0.0
    %v2979 = vmax.f32 %v2931, 0.0
    %v2980 = vmax.f32 %v2936, 0.0
    %v2981 = vmax.f32 %v2939, 0.0
    %v2982 = vpack.c.bf16 %v2967, %v2966
    %v2983 = vpack.c.bf16 %v2969, %v2968
    %v2984 = vpack.c.bf16 %v2971, %v2970
    %v2985 = vpack.c.bf16 %v2973, %v2972
    %v2986 = vpack.c.bf16 %v2975, %v2974
    %v2987 = vpack.c.bf16 %v2977, %v2976
    %v2988 = vpack.c.bf16 %v2979, %v2978
    %v2989 = vpack.c.bf16 %v2981, %v2980
    %v2998 = vunpack.c.l.b16 %v2958
    %v2999 = vunpack.c.h.b16 %v2958
    %v3000 = vunpack.c.l.b16 %v2959
    %v3001 = vunpack.c.h.b16 %v2959
    %v3002 = vunpack.c.l.b16 %v2960
    %v3003 = vunpack.c.h.b16 %v2960
    %v3004 = vunpack.c.l.b16 %v2961
    %v3005 = vunpack.c.h.b16 %v2961
    %v3006 = vunpack.c.l.b16 %v2962
    %v3007 = vunpack.c.h.b16 %v2962
    %v3008 = vunpack.c.l.b16 %v2963
    %v3009 = vunpack.c.h.b16 %v2963
    %v3010 = vunpack.c.l.b16 %v2964
    %v3011 = vunpack.c.h.b16 %v2964
    %v3012 = vunpack.c.l.b16 %v2965
    %v3013 = vunpack.c.h.b16 %v2965
    %v3014 = vpack.c.b16 %v2998, %v2998
    %v3015 = vpack.c.b16 %v2999, %v2999
    %v3016 = vpack.c.b16 %v3000, %v3000
    %v3017 = vpack.c.b16 %v3001, %v3001
    %v3018 = vpack.c.b16 %v3002, %v3002
    %v3019 = vpack.c.b16 %v3003, %v3003
    %v3020 = vpack.c.b16 %v3004, %v3004
    %v3021 = vpack.c.b16 %v3005, %v3005
    %v3022 = vpack.c.b16 %v3006, %v3006
    %v3023 = vpack.c.b16 %v3007, %v3007
    %v3024 = vpack.c.b16 %v3008, %v3008
    %v3025 = vpack.c.b16 %v3009, %v3009
    %v3026 = vpack.c.b16 %v3010, %v3010
    %v3027 = vpack.c.b16 %v3011, %v3011
    %v3028 = vpack.c.b16 %v3012, %v3012
    %v3029 = vpack.c.b16 %v3013, %v3013
    %3046 = vst [vmem:[#allocation4] sm:$0xf] %v3014
    %3047 = vst [vmem:[#allocation4 + $0x4] sm:$0xf] %v3015
    %3048 = vst [vmem:[#allocation4 + $0x8] sm:$0xf] %v3016
    %3049 = vst [vmem:[#allocation4 + $0xc] sm:$0xf] %v3017
    %3050 = vst [vmem:[#allocation4 + $0x10] sm:$0xf] %v3018
    %3051 = vst [vmem:[#allocation4 + $0x14] sm:$0xf] %v3019
    %3052 = vst [vmem:[#allocation4 + $0x18] sm:$0xf] %v3020
    %3053 = vst [vmem:[#allocation4 + $0x1c] sm:$0xf] %v3021
    %3054 = vst [vmem:[#allocation4 + $0x20] sm:$0xf] %v3022
    %3055 = vst [vmem:[#allocation4 + $0x24] sm:$0xf] %v3023
    %3056 = vst [vmem:[#allocation4 + $0x28] sm:$0xf] %v3024
    %3057 = vst [vmem:[#allocation4 + $0x2c] sm:$0xf] %v3025
    %3058 = vst [vmem:[#allocation4 + $0x30] sm:$0xf] %v3026
    %3059 = vst [vmem:[#allocation4 + $0x34] sm:$0xf] %v3027
    %3060 = vst [vmem:[#allocation4 + $0x38] sm:$0xf] %v3028
    %3061 = vst [vmem:[#allocation4 + $0x3c] sm:$0xf] %v3029
    %v3070 = vunpack.c.l.b16 %v2982
    %v3071 = vunpack.c.h.b16 %v2982
    %v3072 = vunpack.c.l.b16 %v2983
    %v3073 = vunpack.c.h.b16 %v2983
    %v3074 = vunpack.c.l.b16 %v2984
    %v3075 = vunpack.c.h.b16 %v2984
    %v3076 = vunpack.c.l.b16 %v2985
    %v3077 = vunpack.c.h.b16 %v2985
    %v3078 = vunpack.c.l.b16 %v2986
    %v3079 = vunpack.c.h.b16 %v2986
    %v3080 = vunpack.c.l.b16 %v2987
    %v3081 = vunpack.c.h.b16 %v2987
    %v3082 = vunpack.c.l.b16 %v2988
    %v3083 = vunpack.c.h.b16 %v2988
    %v3084 = vunpack.c.l.b16 %v2989
    %v3085 = vunpack.c.h.b16 %v2989
    %v3086 = vpack.c.b16 %v3070, %v3070
    %v3087 = vpack.c.b16 %v3071, %v3071
    %v3088 = vpack.c.b16 %v3072, %v3072
    %v3089 = vpack.c.b16 %v3073, %v3073
    %v3090 = vpack.c.b16 %v3074, %v3074
    %v3091 = vpack.c.b16 %v3075, %v3075
    %v3092 = vpack.c.b16 %v3076, %v3076
    %v3093 = vpack.c.b16 %v3077, %v3077
    %v3094 = vpack.c.b16 %v3078, %v3078
    %v3095 = vpack.c.b16 %v3079, %v3079
    %v3096 = vpack.c.b16 %v3080, %v3080
    %v3097 = vpack.c.b16 %v3081, %v3081
    %v3098 = vpack.c.b16 %v3082, %v3082
    %v3099 = vpack.c.b16 %v3083, %v3083
    %v3100 = vpack.c.b16 %v3084, %v3084
    %v3101 = vpack.c.b16 %v3085, %v3085
    %3118 = vst [vmem:[#allocation4 + $0x40] sm:$0xf] %v3086
    %3119 = vst [vmem:[#allocation4 + $0x44] sm:$0xf] %v3087
    %3120 = vst [vmem:[#allocation4 + $0x48] sm:$0xf] %v3088
    %3121 = vst [vmem:[#allocation4 + $0x4c] sm:$0xf] %v3089
    %3122 = vst [vmem:[#allocation4 + $0x50] sm:$0xf] %v3090
    %3123 = vst [vmem:[#allocation4 + $0x54] sm:$0xf] %v3091
    %3124 = vst [vmem:[#allocation4 + $0x58] sm:$0xf] %v3092
    %3125 = vst [vmem:[#allocation4 + $0x5c] sm:$0xf] %v3093
    %3126 = vst [vmem:[#allocation4 + $0x60] sm:$0xf] %v3094
    %3127 = vst [vmem:[#allocation4 + $0x64] sm:$0xf] %v3095
    %3128 = vst [vmem:[#allocation4 + $0x68] sm:$0xf] %v3096
    %3129 = vst [vmem:[#allocation4 + $0x6c] sm:$0xf] %v3097
    %3130 = vst [vmem:[#allocation4 + $0x70] sm:$0xf] %v3098
    %3131 = vst [vmem:[#allocation4 + $0x74] sm:$0xf] %v3099
    %3132 = vst [vmem:[#allocation4 + $0x78] sm:$0xf] %v3100
    %3133 = vst [vmem:[#allocation4 + $0x7c] sm:$0xf] %v3101
    // Predicated region
    $region18: #{autoencoder_forward.1} parent=1 // pred_check
      _
    $region19: #{autoencoder_forward.1} parent=1 // pred_check_branch
      %3135 = sbr.rel (0) target = $region21
    $region20: #{autoencoder_forward.1} parent=1 // pred_region
      // Predicated region
      $region22: #{autoencoder_forward.1} parent=20 // pred_check
        _
      $region23: #{autoencoder_forward.1} parent=20 // pred_check_branch
        %3137 = sbr.rel (0) target = $region25
      $region24: #{autoencoder_forward.1} parent=20 // pred_region
        // Predicated region
        $region26: #{autoencoder_forward.1} parent=24 // pred_check
          _
        $region27: #{autoencoder_forward.1} parent=24 // pred_check_branch
          %3139 = sbr.rel target = $region29
        $region28: #{autoencoder_forward.1} parent=24 // pred_region
          // Predicated region
          $region41: #{autoencoder_forward.1} parent=28 // pred_check
            _
          $region42: #{autoencoder_forward.1} parent=28 // pred_check_branch
            %3154 = sbr.rel (0) target = $region44
          $region43: #{autoencoder_forward.1} parent=28 // pred_region
            loop: start=0, step=1, limit=1
            $region45: #{autoencoder_forward.1} parent=43 // loop_pre_header
              _
            $region46: #{autoencoder_forward.1} parent=43 // loop_header
              %s3157 = sphi 0, %s3161
              %p3158 = scmp.ge.s32.totalorder %s3157, 1
              %s3162 = sphi [#allocation4], [#allocation4]
              %s3163 = sphi %s3, %s3
            $region47: #{autoencoder_forward.1} parent=43 // loop_header_branch
              %3160 = sbr.rel (%p3158) target = $region51
            $region48: #{autoencoder_forward.1} parent=43 // loop_body
              %v3164 = vld [vmem:[%s3162] sm:$0xf]
              %3165 = vst [vmem:[%s3163] sm:$0xf] %v3164
            $region49: #{autoencoder_forward.1} parent=43 // loop_footer
              %s3161 = sadd.s32 1, %s3157
            $region50: #{autoencoder_forward.1} parent=43 // loop_footer_branch
              %3156 = sbr.rel target = $region46
            $region51: #{autoencoder_forward.1} parent=43 // loop_exit
              _
          $region44: #{autoencoder_forward.1} parent=28 // pred_fallthru
            _
        $region29: #{autoencoder_forward.1} parent=24 // pred_fallthru
          _
        // Predicated region
        $region30: #{autoencoder_forward.1} parent=24 // pred_check
          _
        $region31: #{autoencoder_forward.1} parent=24 // pred_check_branch
          %3141 = sbr.rel (0) target = $region33
        $region32: #{autoencoder_forward.1} parent=24 // pred_region
          loop: start=0, step=1, limit=1
          $region34: #{autoencoder_forward.1} parent=32 // loop_pre_header
            _
          $region35: #{autoencoder_forward.1} parent=32 // loop_header
            %s3144 = sphi 0, %s3148
            %p3145 = scmp.ge.s32.totalorder %s3144, 1
            %s3149 = sphi [#allocation4], [#allocation4]
            %s3150 = sphi %s3, %s3
          $region36: #{autoencoder_forward.1} parent=32 // loop_header_branch
            %3147 = sbr.rel (%p3145) target = $region40
          $region37: #{autoencoder_forward.1} parent=32 // loop_body
            %v3151 = vld [vmem:[%s3149] sm:$0xf]
            %3152 = vst [vmem:[%s3150] sm:$0xf] %v3151
          $region38: #{autoencoder_forward.1} parent=32 // loop_footer
            %s3148 = sadd.s32 1, %s3144
          $region39: #{autoencoder_forward.1} parent=32 // loop_footer_branch
            %3143 = sbr.rel target = $region35
          $region40: #{autoencoder_forward.1} parent=32 // loop_exit
            _
        $region33: #{autoencoder_forward.1} parent=24 // pred_fallthru
          _
      $region25: #{autoencoder_forward.1} parent=20 // pred_fallthru
        _
      %3166 = vnop
    $region21: #{autoencoder_forward.1} parent=1 // pred_fallthru
      _
    // Predicated region
    $region52: #{autoencoder_forward.1} parent=1 // pred_check
      _
    $region53: #{autoencoder_forward.1} parent=1 // pred_check_branch
      %3168 = sbr.rel (0) target = $region55
    $region54: #{autoencoder_forward.1} parent=1 // pred_region
      _
    $region55: #{autoencoder_forward.1} parent=1 // pred_fallthru
      _
    %3169 = vsyncpa [#allocation3], 1

</llo_original>
